<compile_context>
chip_gen: v5e
topology: v5e:2x2
jax: 0.10.0
libtpu: 0.0.40
codegen_flags: <defaults>
</compile_context>

<pallas_src>
import functools

import numpy as np
import jax
import jax.numpy as jnp
from jax.experimental import pallas as pl
from jax.experimental.pallas import tpu as pltpu

BN_EPS = 1e-5


def _cdiv(a, b):
    return (a + b - 1) // b


def _round_up(a, b):
    return _cdiv(a, b) * b


def _guess_num_tensorcores():
    """Best-effort TensorCore count per chip (1 on v2/v3/v5e/v6e, 2 on v4/v5p/v7x)."""
    try:
        kind = jax.devices()[0].device_kind.lower()
    except Exception:
        return 1
    if "lite" in kind or "v5e" in kind or "v6" in kind:
        return 1
    if "v4" in kind or "v5p" in kind or "v5" in kind or "7" in kind:
        return 2
    return 1


def _choose_tiling(batch, n_cores, max_tile=1024):
    """grid=1 (single big tile) on 1-TC chips; even, equal-sized grid on 2-TC chips."""
    b8 = _round_up(max(batch, 8), 8)
    if n_cores <= 1:
        n_tiles = max(1, _cdiv(b8, max_tile))
    else:
        n_tiles = n_cores * max(1, _cdiv(b8, n_cores * max_tile))
    tile_b = _round_up(_cdiv(batch, n_tiles), 8)
    return tile_b, n_tiles, tile_b * n_tiles


def field_offsets(field_dims):
    offs = [0]
    for d in field_dims[:-1]:
        offs.append(offs[-1] + d)
    return tuple(int(o) for o in offs)


def _fold_bn(w, b, gamma, beta, mean, var):
    """Fold eval-mode BatchNorm1d into the preceding Linear (exact in eval mode)."""
    scale = gamma / jnp.sqrt(var + BN_EPS)                # (1, dout)
    return w * scale, (b - mean) * scale + beta


# ---------------------------------------------------------------------------
# Kernel
# ---------------------------------------------------------------------------
def pnn_kernel(idx_ref, slab_ref, lr_ref, out_ref, *, layout):
    """PNN-inner hot path. One batch tile stays fully resident in VMEM.

    Inputs (per grid step):
      idx_ref  (TB, NF)       raw int32 feature indices (field offsets are static)
      slab_ref (R, W)         row-packed params: block-diag embedding matrix,
                              BN-folded Linear weights/biases, output layer
      lr_ref   (NF*D, 2*P128) merged 0/1 pair-selection matrix [L_pad | R_pad]
    Output:
      out_ref  (TB, 1)        sigmoid(logit)
    """
    NF, V, D, FD = layout["nf"], layout["v"], layout["d"], layout["fd"]
    NPD_pad = layout["npd_pad"]
    mlp_dims = layout["mlp_dims"]
    offs = layout["offsets"]
    H0 = mlp_dims[0]
    TB = idx_ref.shape[0]

    # --- fused embedding gather: one-hot compare (VPU) + block-diag matmul (MXU)
    lane = jax.lax.broadcasted_iota(jnp.int32, (TB, V), 1)
    flat = jnp.zeros((TB, FD), jnp.float32)
    for f in range(NF):
        target = idx_ref[:, f:f + 1] + offs[f]            # static field offset
        onehot = (lane == target).astype(jnp.float32)     # (TB, V)
        be_f = slab_ref[pl.ds(layout["o_be"] + f * V, V), pl.ds(0, FD)]
        flat = flat + jnp.dot(onehot, be_f, preferred_element_type=jnp.float32)

    # --- inner-product cross term: one merged selection matmul, 128-aligned split.
    # Per-pair sum over D (and the concat with `flat`) is folded into w0b, whose
    # rows are repeated D times, so no XLU reduction / lane concat is needed.
    lr = jnp.dot(flat, lr_ref[...], preferred_element_type=jnp.float32)
    prod = lr[:, :NPD_pad] * lr[:, NPD_pad:]              # (TB, NPD_pad), pad lanes = 0

    # --- MLP (BatchNorm folded; Dropout identity in eval mode)
    w0a = slab_ref[pl.ds(layout["o_w0a"], FD), pl.ds(0, H0)]
    w0b = slab_ref[pl.ds(layout["o_w0b"], NPD_pad), pl.ds(0, H0)]
    b0 = slab_ref[pl.ds(layout["o_b0"], 1), pl.ds(0, H0)]
    h = (jnp.dot(flat, w0a, preferred_element_type=jnp.float32)
         + jnp.dot(prod, w0b, preferred_element_type=jnp.float32)
         + b0)
    h = jnp.maximum(h, 0.0)

    prev = H0
    for (ow, ob), hdim in zip(layout["extra"], mlp_dims[1:]):
        w = slab_ref[pl.ds(ow, prev), pl.ds(0, hdim)]
        b = slab_ref[pl.ds(ob, 1), pl.ds(0, hdim)]
        h = jnp.maximum(jnp.dot(h, w, preferred_element_type=jnp.float32) + b, 0.0)
        prev = hdim

    w_out = slab_ref[pl.ds(layout["o_wout"], prev), pl.ds(0, 1)]
    b_out = slab_ref[pl.ds(layout["o_bout"], 1), pl.ds(0, 1)]
    logit = jnp.dot(h, w_out, preferred_element_type=jnp.float32) + b_out
    out_ref[...] = jax.nn.sigmoid(logit)


# ---------------------------------------------------------------------------
# Parameters & one-time host-side preparation
# ---------------------------------------------------------------------------
def init_params(key, field_dims, embed_dim, mlp_dims):
    num_fields = len(field_dims)
    vocab = int(sum(field_dims))
    num_pairs = num_fields * (num_fields - 1) // 2
    in_dim = num_fields * embed_dim + num_pairs

    keys = jax.random.split(key, 3 * len(mlp_dims) + 4)
    k = 0

    params = {}
    params["emb_table"] = 0.1 * jax.random.normal(
        keys[k], (vocab, embed_dim), jnp.float32); k += 1

    layers = []
    dims = [in_dim] + list(mlp_dims)
    for din, dout in zip(dims[:-1], dims[1:]):
        w = jax.random.normal(keys[k], (din, dout), jnp.float32) / jnp.sqrt(
            jnp.float32(din)); k += 1
        b = 0.01 * jax.random.normal(keys[k], (1, dout), jnp.float32); k += 1
        stats = jax.random.normal(keys[k], (4, dout), jnp.float32); k += 1
        gamma = 1.0 + 0.1 * stats[0:1]
        beta = 0.1 * stats[1:2]
        rmean = 0.1 * stats[2:3]
        rvar = 1.0 + 0.25 * jnp.abs(stats[3:4])
        layers.append((w, b, gamma, beta, rmean, rvar))
    params["layers"] = layers

    w_out = jax.random.normal(keys[k], (dims[-1], 1), jnp.float32) / jnp.sqrt(
        jnp.float32(dims[-1])); k += 1
    b_out = jnp.zeros((1, 1), jnp.float32)
    params["out"] = (w_out, b_out)
    return params


def _prepare_kernel_params(params, field_dims, embed_dim):
    """Runs ONCE: BN fold, merged [L|R] selectors, block-diag embedding matrix,
    and packing of all parameters into two VMEM slabs."""
    NF = len(field_dims)
    D = embed_dim
    vocab = int(sum(field_dims))
    V = _round_up(vocab, 128)                      # one-hot lane width
    NP = NF * (NF - 1) // 2
    FD = NF * D
    NPD = NP * D
    NPD_pad = _round_up(NPD, 128)
    layers = params["layers"]
    mlp_dims = tuple(int(w.shape[1]) for (w, *_r) in layers)
    H0 = mlp_dims[0]

    # Merged pair-selection matrix [L_pad | R_pad] (same i<j order as torchfm).
    eye = np.eye(D, dtype=np.float32)
    LR = np.zeros((FD, 2 * NPD_pad), np.float32)
    p = 0
    for i in range(NF - 1):
        for j in range(i + 1, NF):
            LR[i * D:(i + 1) * D, p * D:(p + 1) * D] = eye                       # e_i
            LR[j * D:(j + 1) * D, NPD_pad + p * D:NPD_pad + (p + 1) * D] = eye   # e_j
            p += 1
    slab_lr = jnp.asarray(LR)

    # Block-diagonal embedding matrix: per-field one-hot (over padded vocab) -> flat.
    emb = jnp.asarray(params["emb_table"], jnp.float32)
    emb_pad = jnp.zeros((V, D), jnp.float32).at[:vocab].set(emb)
    be = jnp.zeros((NF * V, FD), jnp.float32)
    for f in range(NF):
        be = be.at[f * V:(f + 1) * V, f * D:(f + 1) * D].set(emb_pad)

    # BN folding; split first layer into embedding part and cross part
    # (cross rows repeated D times -> folds the per-pair sum over D).
    w0, b0, g0, bt0, m0, v0 = layers[0]
    w0f, b0f = _fold_bn(w0, b0, g0, bt0, m0, v0)
    w0a = w0f[:FD]                                          # (FD, H0)
    w0b = jnp.zeros((NPD_pad, H0), jnp.float32).at[:NPD].set(
        jnp.repeat(w0f[FD:], D, axis=0))                    # (NPD_pad, H0)

    # Row-packed main slab (all row offsets multiple of 8).
    W = int(max(FD, max(mlp_dims), 1))
    entries, row_off = [], {}
    off = 0

    def _alloc(name, arr):
        nonlocal off
        row_off[name] = off
        entries.append((off, arr))
        off += _round_up(int(arr.shape[0]), 8)

    _alloc("be", be)
    _alloc("w0b", w0b)
    _alloc("w0a", w0a)
    _alloc("b0", b0f)
    extra = []
    for li, (w, b, g, bt, m, v) in enumerate(layers[1:], start=1):
        wf, bf = _fold_bn(w, b, g, bt, m, v)
        _alloc("w%d" % li, wf)
        _alloc("b%d" % li, bf)
        extra.append((row_off["w%d" % li], row_off["b%d" % li]))
    w_out, b_out = params["out"]
    _alloc("wout", w_out)
    _alloc("bout", b_out)

    slab = jnp.zeros((off, W), jnp.float32)
    for r0, arr in entries:
        slab = slab.at[r0:r0 + arr.shape[0], :arr.shape[1]].set(
            arr.astype(jnp.float32))

    layout = dict(
        nf=NF, d=D, v=V, fd=FD, npd_pad=NPD_pad, mlp_dims=mlp_dims,
        offsets=field_offsets(field_dims),
        o_be=row_off["be"], o_w0b=row_off["w0b"], o_w0a=row_off["w0a"],
        o_b0=row_off["b0"], extra=tuple(extra),
        o_wout=row_off["wout"], o_bout=row_off["bout"],
    )
    return slab, slab_lr, layout


# ---------------------------------------------------------------------------
# Forward
# ---------------------------------------------------------------------------
def _forward_impl(x_idx, slab, slab_lr, *, layout, n_cores):
    NF = layout["nf"]
    B = x_idx.shape[0]
    tile_b, n_tiles, B_pad = _choose_tiling(B, n_cores)
    idx = x_idx.astype(jnp.int32)
    if B_pad != B:
        idx = jnp.concatenate(
            [idx, jnp.zeros((B_pad - B, NF), jnp.int32)], axis=0)

    kernel = functools.partial(pnn_kernel, layout=layout)
    out = pl.pallas_call(
        kernel,
        out_shape=jax.ShapeDtypeStruct((B_pad, 1), jnp.float32),
        grid=(n_tiles,),
        in_specs=[
            pl.BlockSpec((tile_b, NF), lambda b: (b, 0)),
            pl.BlockSpec(slab.shape, lambda b: (0, 0)),
            pl.BlockSpec(slab_lr.shape, lambda b: (0, 0)),
        ],
        out_specs=pl.BlockSpec((tile_b, 1), lambda b: (b, 0)),
        compiler_params=pltpu.CompilerParams(
            dimension_semantics=("parallel",)),
    )(idx, slab, slab_lr)
    return out[:B, 0]                                       # squeeze(1)


def make_pnn_forward(params, field_dims, embed_dim):
    """Builds a jitted forward; all host-side prep runs exactly once here."""
    slab, slab_lr, layout = _prepare_kernel_params(params, field_dims, embed_dim)
    n_cores = _guess_num_tensorcores()
    fwd = jax.jit(functools.partial(_forward_impl, layout=layout, n_cores=n_cores))

    def call(x_idx):
        return fwd(x_idx, slab, slab_lr)

    return call


# ---------------------------------------------------------------------------
# Pure-JAX reference mirroring the PyTorch forward (eval mode)
# ---------------------------------------------------------------------------
def pnn_reference(x_idx, params, field_dims, embed_dim):
    num_fields = len(field_dims)
    offs = jnp.asarray(field_offsets(field_dims), jnp.int32)
    ex = jnp.take(params["emb_table"], x_idx + offs[None, :], axis=0)
    cross = []
    for i in range(num_fields - 1):
        for j in range(i + 1, num_fields):
            cross.append(jnp.sum(ex[:, i, :] * ex[:, j, :], axis=-1))
    cross = jnp.stack(cross, axis=1)
    h = jnp.concatenate([ex.reshape(ex.shape[0], -1), cross], axis=1)
    for (w, b, g, beta, mean, var) in params["layers"]:
        h = h @ w + b
        h = (h - mean) * (g / jnp.sqrt(var + BN_EPS)) + beta
        h = jnp.maximum(h, 0.0)
    w_out, b_out = params["out"]
    logit = h @ w_out + b_out
    return jax.nn.sigmoid(logit)[:, 0]


if __name__ == "__main__":
    field_dims = (10, 20, 30, 40)    # num_fields = 4, vocab = 100
    embed_dim = 16
    mlp_dims = (32, 16)
    dropout = 0.2                    # identity in eval mode
    batch = 256

    key = jax.random.PRNGKey(0)
    kp, kx = jax.random.split(key)
    params = init_params(kp, field_dims, embed_dim, mlp_dims)

    xkeys = jax.random.split(kx, len(field_dims))
    cols = [jax.random.randint(k, (batch,), 0, d, dtype=jnp.int32)
            for k, d in zip(xkeys, field_dims)]
    x_idx = jnp.stack(cols, axis=1)  # (batch, num_fields) int32 feature indices

    pnn_fwd = make_pnn_forward(params, field_dims, embed_dim)
    y = jax.block_until_ready(pnn_fwd(x_idx))
    y_ref = jax.block_until_ready(pnn_reference(x_idx, params, field_dims, embed_dim))

    assert y.shape == (batch,)
    err = float(jnp.max(jnp.abs(y - y_ref)))
    assert jnp.allclose(y, y_ref, atol=1e-4, rtol=1e-4), err

    print("KERNEL_OK")
</pallas_src>

<mosaic_0001>
module attributes {stable_mosaic.version = 11 : i64} {
  func.func @pnn_kernel(%arg0: i32, %arg1: memref<256x4xi32, #tpu.memory_space<vmem>>, %arg2: memref<776x64xf32, #tpu.memory_space<vmem>>, %arg3: memref<64x256xf32, #tpu.memory_space<vmem>>, %arg4: memref<256x1xf32, #tpu.memory_space<vmem>>) attributes {dimension_semantics = [#tpu.dimension_semantics<parallel>], iteration_bounds = array<i64: 1>, scalar_prefetch = 0 : i64, scratch_operands = 0 : i64, tpu.core_type = #tpu.core_type<tc>, window_params = [{transform_indices = @transform_0, window_bounds = array<i64: 256, 4>}, {pipeline_mode = #tpu.pipeline_mode<synchronous>, transform_indices = @transform_1, window_bounds = array<i64: 776, 64>}, {pipeline_mode = #tpu.pipeline_mode<synchronous>, transform_indices = @transform_2, window_bounds = array<i64: 64, 256>}, {transform_indices = @transform_3, window_bounds = array<i64: 256, 1>}]} {
    %0 = tpu.iota {dimensions = array<i32: 1>} : vector<256x128xi32>
    %cst = arith.constant 0.000000e+00 : f32
    %1 = vector.broadcast %cst : f32 to vector<256x64xf32>
    %c0 = arith.constant 0 : index
    %c0_0 = arith.constant 0 : index
    %2 = vector.load %arg1[%c0, %c0_0] : memref<256x4xi32, #tpu.memory_space<vmem>>, vector<256x1xi32>
    %c0_i32 = arith.constant 0 : i32
    %3 = vector.broadcast %c0_i32 : i32 to vector<256x1xi32>
    %4 = arith.addi %2, %3 : vector<256x1xi32>
    %5 = vector.broadcast %4 : vector<256x1xi32> to vector<256x128xi32>
    %6 = arith.cmpi eq, %0, %5 : vector<256x128xi32>
    %7 = arith.extui %6 : vector<256x128xi1> to vector<256x128xi32>
    %8 = arith.sitofp %7 : vector<256x128xi32> to vector<256x128xf32>
    %c0_1 = arith.constant 0 : index
    %c0_2 = arith.constant 0 : index
    %9 = vector.load %arg2[%c0_1, %c0_2] : memref<776x64xf32, #tpu.memory_space<vmem>>, vector<128x64xf32>
    %cst_3 = arith.constant dense<0.000000e+00> : vector<256x64xf32>
    %10 = tpu.matmul %8, %9, %cst_3 {dimension_numbers = #tpu.dot_dimension_numbers<[1], [0], [0], [1], [0, 0, 1, 1], [], []>} : vector<256x128xf32>, vector<128x64xf32>, vector<256x64xf32> -> vector<256x64xf32>
    %11 = arith.addf %1, %10 : vector<256x64xf32>
    %c0_4 = arith.constant 0 : index
    %c1 = arith.constant 1 : index
    %12 = vector.load %arg1[%c0_4, %c1] : memref<256x4xi32, #tpu.memory_space<vmem>>, vector<256x1xi32>
    %c10_i32 = arith.constant 10 : i32
    %13 = vector.broadcast %c10_i32 : i32 to vector<256x1xi32>
    %14 = arith.addi %12, %13 : vector<256x1xi32>
    %15 = vector.broadcast %14 : vector<256x1xi32> to vector<256x128xi32>
    %16 = arith.cmpi eq, %0, %15 : vector<256x128xi32>
    %17 = arith.extui %16 : vector<256x128xi1> to vector<256x128xi32>
    %18 = arith.sitofp %17 : vector<256x128xi32> to vector<256x128xf32>
    %c128 = arith.constant 128 : index
    %c0_5 = arith.constant 0 : index
    %19 = vector.load %arg2[%c128, %c0_5] : memref<776x64xf32, #tpu.memory_space<vmem>>, vector<128x64xf32>
    %cst_6 = arith.constant dense<0.000000e+00> : vector<256x64xf32>
    %20 = tpu.matmul %18, %19, %cst_6 {dimension_numbers = #tpu.dot_dimension_numbers<[1], [0], [0], [1], [0, 0, 1, 1], [], []>} : vector<256x128xf32>, vector<128x64xf32>, vector<256x64xf32> -> vector<256x64xf32>
    %21 = arith.addf %11, %20 : vector<256x64xf32>
    %c0_7 = arith.constant 0 : index
    %c2 = arith.constant 2 : index
    %22 = vector.load %arg1[%c0_7, %c2] : memref<256x4xi32, #tpu.memory_space<vmem>>, vector<256x1xi32>
    %c30_i32 = arith.constant 30 : i32
    %23 = vector.broadcast %c30_i32 : i32 to vector<256x1xi32>
    %24 = arith.addi %22, %23 : vector<256x1xi32>
    %25 = vector.broadcast %24 : vector<256x1xi32> to vector<256x128xi32>
    %26 = arith.cmpi eq, %0, %25 : vector<256x128xi32>
    %27 = arith.extui %26 : vector<256x128xi1> to vector<256x128xi32>
    %28 = arith.sitofp %27 : vector<256x128xi32> to vector<256x128xf32>
    %c256 = arith.constant 256 : index
    %c0_8 = arith.constant 0 : index
    %29 = vector.load %arg2[%c256, %c0_8] : memref<776x64xf32, #tpu.memory_space<vmem>>, vector<128x64xf32>
    %cst_9 = arith.constant dense<0.000000e+00> : vector<256x64xf32>
    %30 = tpu.matmul %28, %29, %cst_9 {dimension_numbers = #tpu.dot_dimension_numbers<[1], [0], [0], [1], [0, 0, 1, 1], [], []>} : vector<256x128xf32>, vector<128x64xf32>, vector<256x64xf32> -> vector<256x64xf32>
    %31 = arith.addf %21, %30 : vector<256x64xf32>
    %c0_10 = arith.constant 0 : index
    %c3 = arith.constant 3 : index
    %32 = vector.load %arg1[%c0_10, %c3] : memref<256x4xi32, #tpu.memory_space<vmem>>, vector<256x1xi32>
    %c60_i32 = arith.constant 60 : i32
    %33 = vector.broadcast %c60_i32 : i32 to vector<256x1xi32>
    %34 = arith.addi %32, %33 : vector<256x1xi32>
    %35 = vector.broadcast %34 : vector<256x1xi32> to vector<256x128xi32>
    %36 = arith.cmpi eq, %0, %35 : vector<256x128xi32>
    %37 = arith.extui %36 : vector<256x128xi1> to vector<256x128xi32>
    %38 = arith.sitofp %37 : vector<256x128xi32> to vector<256x128xf32>
    %c384 = arith.constant 384 : index
    %c0_11 = arith.constant 0 : index
    %39 = vector.load %arg2[%c384, %c0_11] : memref<776x64xf32, #tpu.memory_space<vmem>>, vector<128x64xf32>
    %cst_12 = arith.constant dense<0.000000e+00> : vector<256x64xf32>
    %40 = tpu.matmul %38, %39, %cst_12 {dimension_numbers = #tpu.dot_dimension_numbers<[1], [0], [0], [1], [0, 0, 1, 1], [], []>} : vector<256x128xf32>, vector<128x64xf32>, vector<256x64xf32> -> vector<256x64xf32>
    %41 = arith.addf %31, %40 : vector<256x64xf32>
    %c0_13 = arith.constant 0 : index
    %c0_14 = arith.constant 0 : index
    %42 = vector.load %arg3[%c0_13, %c0_14] : memref<64x256xf32, #tpu.memory_space<vmem>>, vector<64x256xf32>
    %cst_15 = arith.constant dense<0.000000e+00> : vector<256x256xf32>
    %43 = tpu.matmul %41, %42, %cst_15 {dimension_numbers = #tpu.dot_dimension_numbers<[1], [0], [0], [1], [0, 0, 1, 1], [], []>} : vector<256x64xf32>, vector<64x256xf32>, vector<256x256xf32> -> vector<256x256xf32>
    %44 = vector.extract_strided_slice %43 {offsets = [0, 0], sizes = [256, 128], strides = [1, 1]} : vector<256x256xf32> to vector<256x128xf32>
    %45 = vector.extract_strided_slice %43 {offsets = [0, 128], sizes = [256, 128], strides = [1, 1]} : vector<256x256xf32> to vector<256x128xf32>
    %46 = arith.mulf %44, %45 : vector<256x128xf32>
    %c640 = arith.constant 640 : index
    %c0_16 = arith.constant 0 : index
    %47 = vector.load %arg2[%c640, %c0_16] : memref<776x64xf32, #tpu.memory_space<vmem>>, vector<64x32xf32>
    %c512 = arith.constant 512 : index
    %c0_17 = arith.constant 0 : index
    %48 = vector.load %arg2[%c512, %c0_17] : memref<776x64xf32, #tpu.memory_space<vmem>>, vector<128x32xf32>
    %c704 = arith.constant 704 : index
    %c0_18 = arith.constant 0 : index
    %49 = vector.load %arg2[%c704, %c0_18] : memref<776x64xf32, #tpu.memory_space<vmem>>, vector<1x32xf32>
    %cst_19 = arith.constant dense<0.000000e+00> : vector<256x32xf32>
    %50 = tpu.matmul %41, %47, %cst_19 {dimension_numbers = #tpu.dot_dimension_numbers<[1], [0], [0], [1], [0, 0, 1, 1], [], []>} : vector<256x64xf32>, vector<64x32xf32>, vector<256x32xf32> -> vector<256x32xf32>
    %cst_20 = arith.constant dense<0.000000e+00> : vector<256x32xf32>
    %51 = tpu.matmul %46, %48, %cst_20 {dimension_numbers = #tpu.dot_dimension_numbers<[1], [0], [0], [1], [0, 0, 1, 1], [], []>} : vector<256x128xf32>, vector<128x32xf32>, vector<256x32xf32> -> vector<256x32xf32>
    %52 = arith.addf %50, %51 : vector<256x32xf32>
    %53 = vector.broadcast %49 : vector<1x32xf32> to vector<256x32xf32>
    %54 = arith.addf %52, %53 : vector<256x32xf32>
    %cst_21 = arith.constant 0.000000e+00 : f32
    %55 = vector.broadcast %cst_21 : f32 to vector<256x32xf32>
    %56 = arith.maximumf %54, %55 : vector<256x32xf32>
    %c712 = arith.constant 712 : index
    %c0_22 = arith.constant 0 : index
    %57 = vector.load %arg2[%c712, %c0_22] : memref<776x64xf32, #tpu.memory_space<vmem>>, vector<32x16xf32>
    %c744 = arith.constant 744 : index
    %c0_23 = arith.constant 0 : index
    %58 = vector.load %arg2[%c744, %c0_23] : memref<776x64xf32, #tpu.memory_space<vmem>>, vector<1x16xf32>
    %cst_24 = arith.constant dense<0.000000e+00> : vector<256x16xf32>
    %59 = tpu.matmul %56, %57, %cst_24 {dimension_numbers = #tpu.dot_dimension_numbers<[1], [0], [0], [1], [0, 0, 1, 1], [], []>} : vector<256x32xf32>, vector<32x16xf32>, vector<256x16xf32> -> vector<256x16xf32>
    %60 = vector.broadcast %58 : vector<1x16xf32> to vector<256x16xf32>
    %61 = arith.addf %59, %60 : vector<256x16xf32>
    %cst_25 = arith.constant 0.000000e+00 : f32
    %62 = vector.broadcast %cst_25 : f32 to vector<256x16xf32>
    %63 = arith.maximumf %61, %62 : vector<256x16xf32>
    %c752 = arith.constant 752 : index
    %c0_26 = arith.constant 0 : index
    %64 = vector.load %arg2[%c752, %c0_26] : memref<776x64xf32, #tpu.memory_space<vmem>>, vector<16x1xf32>
    %c768 = arith.constant 768 : index
    %c0_27 = arith.constant 0 : index
    %65 = vector.load %arg2[%c768, %c0_27] : memref<776x64xf32, #tpu.memory_space<vmem>>, vector<1x1xf32>
    %cst_28 = arith.constant dense<0.000000e+00> : vector<256x1xf32>
    %66 = tpu.matmul %63, %64, %cst_28 {dimension_numbers = #tpu.dot_dimension_numbers<[1], [0], [0], [1], [0, 0, 1, 1], [], []>} : vector<256x16xf32>, vector<16x1xf32>, vector<256x1xf32> -> vector<256x1xf32>
    %67 = vector.broadcast %65 : vector<1x1xf32> to vector<256x1xf32>
    %68 = arith.addf %66, %67 : vector<256x1xf32>
    %69 = arith.negf %68 : vector<256x1xf32>
    %70 = math.exp %69 : vector<256x1xf32>
    %cst_29 = arith.constant 1.000000e+00 : f32
    %71 = vector.broadcast %cst_29 : f32 to vector<256x1xf32>
    %72 = arith.addf %71, %70 : vector<256x1xf32>
    %73 = arith.divf %71, %72 : vector<256x1xf32>
    %c0_30 = arith.constant 0 : index
    %c0_31 = arith.constant 0 : index
    %74 = vector.load %arg4[%c0_30, %c0_31] : memref<256x1xf32, #tpu.memory_space<vmem>>, vector<256x1xf32>
    tpu.vector_store %arg4[%c0_30, %c0_31], %73 {strides = array<i32>} : memref<256x1xf32, #tpu.memory_space<vmem>>, vector<256x1xf32>,
    return
  }
  func.func @transform_0(%arg0: i32) -> (i32, i32) {
    %c0_i32 = arith.constant 0 : i32
    %c0_i32_0 = arith.constant 0 : i32
    return %arg0, %c0_i32 : i32, i32
  }
  func.func @transform_1(%arg0: i32) -> (i32, i32) {
    %c0_i32 = arith.constant 0 : i32
    %c0_i32_0 = arith.constant 0 : i32
    %c0_i32_1 = arith.constant 0 : i32
    return %c0_i32, %c0_i32_0 : i32, i32
  }
  func.func @transform_2(%arg0: i32) -> (i32, i32) {
    %c0_i32 = arith.constant 0 : i32
    %c0_i32_0 = arith.constant 0 : i32
    %c0_i32_1 = arith.constant 0 : i32
    return %c0_i32, %c0_i32_0 : i32, i32
  }
  func.func @transform_3(%arg0: i32) -> (i32, i32) {
    %c0_i32 = arith.constant 0 : i32
    %c0_i32_0 = arith.constant 0 : i32
    return %arg0, %c0_i32 : i32, i32
  }
}

</mosaic_0001>

<llo_original>
// kernel: _forward_impl.1
$region0: #{_forward_impl.1}
  #allocation0 [shape = 'u32[]', space=smem, size = 0x4, offset = 0x4, fixed_abs, tag = 'smem constant byte address 0x4 - core index']
  #allocation1 [shape = 'u32[72,128]{1,0:T(1,128)}', space=vmem, size = 0x9000, scoped, tag = 'internal scratch']
  %s0 = inlined_call_operand.vmem [shape: s32[256,4], index: 0, kind: input, shape index: {}]
  %s1 = inlined_call_operand.vmem [shape: f32[776,64], index: 1, kind: input, shape index: {}]
  %s2 = inlined_call_operand.vmem [shape: f32[64,256], index: 2, kind: input, shape index: {}]
  %s3 = inlined_call_operand.vmem [shape: f32[256,1], index: 3, kind: output, shape index: {}]
  %s4 = sld [smem:[#allocation0]]
  $region22: #{_forward_impl.1} parent=0
    _
  %s6 = ssub.s32 1, %s4
  %s7 = scalar_select 0, %s6, %s4
  // Predicated region
  $region2: #{_forward_impl.1} parent=0 // pred_check
    _
  $region3: #{_forward_impl.1} parent=0 // pred_check_branch
    %9 = sbr.rel (0) target = $region5
  $region4: #{_forward_impl.1} parent=0 // pred_region
    _
  $region5: #{_forward_impl.1} parent=0 // pred_fallthru
    _
  // Predicated region
  $region6: #{_forward_impl.1} parent=0 // pred_check
    _
  $region7: #{_forward_impl.1} parent=0 // pred_check_branch
    %11 = sbr.rel (0) target = $region9
  $region8: #{_forward_impl.1} parent=0 // pred_region
    _
  $region9: #{_forward_impl.1} parent=0 // pred_fallthru
    _
  // Predicated region
  $region10: #{_forward_impl.1} parent=0 // pred_check
    _
  $region11: #{_forward_impl.1} parent=0 // pred_check_branch
    %13 = sbr.rel (0) target = $region13
  $region12: #{_forward_impl.1} parent=0 // pred_region
    _
  $region13: #{_forward_impl.1} parent=0 // pred_fallthru
    _
  %v14 = vlaneseq
  %v15 = vand.u32 %v14, 127
  %v16 = vld [vmem:[%s0] sm:$0xff]
  %v17 = vld [vmem:[%s0 + $0x8] sm:$0xff]
  %v18 = vld [vmem:[%s0 + $0x10] sm:$0xff]
  %v19 = vld [vmem:[%s0 + $0x18] sm:$0xff]
  %v20 = vld [vmem:[%s0 + $0x20] sm:$0xff]
  %v21 = vld [vmem:[%s0 + $0x28] sm:$0xff]
  %v22 = vld [vmem:[%s0 + $0x30] sm:$0xff]
  %v23 = vld [vmem:[%s0 + $0x38] sm:$0xff]
  %v24 = vld [vmem:[%s0 + $0x40] sm:$0xff]
  %v25 = vld [vmem:[%s0 + $0x48] sm:$0xff]
  %v26 = vld [vmem:[%s0 + $0x50] sm:$0xff]
  %v27 = vld [vmem:[%s0 + $0x58] sm:$0xff]
  %v28 = vld [vmem:[%s0 + $0x60] sm:$0xff]
  %v29 = vld [vmem:[%s0 + $0x68] sm:$0xff]
  %v30 = vld [vmem:[%s0 + $0x70] sm:$0xff]
  %v31 = vld [vmem:[%s0 + $0x78] sm:$0xff]
  %v32 = vld [vmem:[%s0 + $0x80] sm:$0xff]
  %v33 = vld [vmem:[%s0 + $0x88] sm:$0xff]
  %v34 = vld [vmem:[%s0 + $0x90] sm:$0xff]
  %v35 = vld [vmem:[%s0 + $0x98] sm:$0xff]
  %v36 = vld [vmem:[%s0 + $0xa0] sm:$0xff]
  %v37 = vld [vmem:[%s0 + $0xa8] sm:$0xff]
  %v38 = vld [vmem:[%s0 + $0xb0] sm:$0xff]
  %v39 = vld [vmem:[%s0 + $0xb8] sm:$0xff]
  %v40 = vld [vmem:[%s0 + $0xc0] sm:$0xff]
  %v41 = vld [vmem:[%s0 + $0xc8] sm:$0xff]
  %v42 = vld [vmem:[%s0 + $0xd0] sm:$0xff]
  %v43 = vld [vmem:[%s0 + $0xd8] sm:$0xff]
  %v44 = vld [vmem:[%s0 + $0xe0] sm:$0xff]
  %v45 = vld [vmem:[%s0 + $0xe8] sm:$0xff]
  %v46 = vld [vmem:[%s0 + $0xf0] sm:$0xff]
  %v47 = vld [vmem:[%s0 + $0xf8] sm:$0xff]
  %48 = vset.pattern.permute.xlu0 0
  %49 = vperm.xlu0 %48, %v16
  %v50 = vpop.permute.xlu0 %49
  %51 = vset.pattern.permute.xlu0 0
  %52 = vperm.xlu0 %51, %v17
  %v53 = vpop.permute.xlu0 %52
  %54 = vset.pattern.permute.xlu0 0
  %55 = vperm.xlu0 %54, %v18
  %v56 = vpop.permute.xlu0 %55
  %57 = vset.pattern.permute.xlu0 0
  %58 = vperm.xlu0 %57, %v19
  %v59 = vpop.permute.xlu0 %58
  %60 = vset.pattern.permute.xlu0 0
  %61 = vperm.xlu0 %60, %v20
  %v62 = vpop.permute.xlu0 %61
  %63 = vset.pattern.permute.xlu0 0
  %64 = vperm.xlu0 %63, %v21
  %v65 = vpop.permute.xlu0 %64
  %66 = vset.pattern.permute.xlu0 0
  %67 = vperm.xlu0 %66, %v22
  %v68 = vpop.permute.xlu0 %67
  %69 = vset.pattern.permute.xlu0 0
  %70 = vperm.xlu0 %69, %v23
  %v71 = vpop.permute.xlu0 %70
  %72 = vset.pattern.permute.xlu0 0
  %73 = vperm.xlu0 %72, %v24
  %v74 = vpop.permute.xlu0 %73
  %75 = vset.pattern.permute.xlu0 0
  %76 = vperm.xlu0 %75, %v25
  %v77 = vpop.permute.xlu0 %76
  %78 = vset.pattern.permute.xlu0 0
  %79 = vperm.xlu0 %78, %v26
  %v80 = vpop.permute.xlu0 %79
  %81 = vset.pattern.permute.xlu0 0
  %82 = vperm.xlu0 %81, %v27
  %v83 = vpop.permute.xlu0 %82
  %84 = vset.pattern.permute.xlu0 0
  %85 = vperm.xlu0 %84, %v28
  %v86 = vpop.permute.xlu0 %85
  %87 = vset.pattern.permute.xlu0 0
  %88 = vperm.xlu0 %87, %v29
  %v89 = vpop.permute.xlu0 %88
  %90 = vset.pattern.permute.xlu0 0
  %91 = vperm.xlu0 %90, %v30
  %v92 = vpop.permute.xlu0 %91
  %93 = vset.pattern.permute.xlu0 0
  %94 = vperm.xlu0 %93, %v31
  %v95 = vpop.permute.xlu0 %94
  %96 = vset.pattern.permute.xlu0 0
  %97 = vperm.xlu0 %96, %v32
  %v98 = vpop.permute.xlu0 %97
  %99 = vset.pattern.permute.xlu0 0
  %100 = vperm.xlu0 %99, %v33
  %v101 = vpop.permute.xlu0 %100
  %102 = vset.pattern.permute.xlu0 0
  %103 = vperm.xlu0 %102, %v34
  %v104 = vpop.permute.xlu0 %103
  %105 = vset.pattern.permute.xlu0 0
  %106 = vperm.xlu0 %105, %v35
  %v107 = vpop.permute.xlu0 %106
  %108 = vset.pattern.permute.xlu0 0
  %109 = vperm.xlu0 %108, %v36
  %v110 = vpop.permute.xlu0 %109
  %111 = vset.pattern.permute.xlu0 0
  %112 = vperm.xlu0 %111, %v37
  %v113 = vpop.permute.xlu0 %112
  %114 = vset.pattern.permute.xlu0 0
  %115 = vperm.xlu0 %114, %v38
  %v116 = vpop.permute.xlu0 %115
  %117 = vset.pattern.permute.xlu0 0
  %118 = vperm.xlu0 %117, %v39
  %v119 = vpop.permute.xlu0 %118
  %120 = vset.pattern.permute.xlu0 0
  %121 = vperm.xlu0 %120, %v40
  %v122 = vpop.permute.xlu0 %121
  %123 = vset.pattern.permute.xlu0 0
  %124 = vperm.xlu0 %123, %v41
  %v125 = vpop.permute.xlu0 %124
  %126 = vset.pattern.permute.xlu0 0
  %127 = vperm.xlu0 %126, %v42
  %v128 = vpop.permute.xlu0 %127
  %129 = vset.pattern.permute.xlu0 0
  %130 = vperm.xlu0 %129, %v43
  %v131 = vpop.permute.xlu0 %130
  %132 = vset.pattern.permute.xlu0 0
  %133 = vperm.xlu0 %132, %v44
  %v134 = vpop.permute.xlu0 %133
  %135 = vset.pattern.permute.xlu0 0
  %136 = vperm.xlu0 %135, %v45
  %v137 = vpop.permute.xlu0 %136
  %138 = vset.pattern.permute.xlu0 0
  %139 = vperm.xlu0 %138, %v46
  %v140 = vpop.permute.xlu0 %139
  %141 = vset.pattern.permute.xlu0 0
  %142 = vperm.xlu0 %141, %v47
  %v143 = vpop.permute.xlu0 %142
  %vm144 = vcmp.eq.s32.totalorder %v15, %v50
  %vm145 = vcmp.eq.s32.totalorder %v15, %v53
  %vm146 = vcmp.eq.s32.totalorder %v15, %v56
  %vm147 = vcmp.eq.s32.totalorder %v15, %v59
  %vm148 = vcmp.eq.s32.totalorder %v15, %v62
  %vm149 = vcmp.eq.s32.totalorder %v15, %v65
  %vm150 = vcmp.eq.s32.totalorder %v15, %v68
  %vm151 = vcmp.eq.s32.totalorder %v15, %v71
  %vm152 = vcmp.eq.s32.totalorder %v15, %v74
  %vm153 = vcmp.eq.s32.totalorder %v15, %v77
  %vm154 = vcmp.eq.s32.totalorder %v15, %v80
  %vm155 = vcmp.eq.s32.totalorder %v15, %v83
  %vm156 = vcmp.eq.s32.totalorder %v15, %v86
  %vm157 = vcmp.eq.s32.totalorder %v15, %v89
  %vm158 = vcmp.eq.s32.totalorder %v15, %v92
  %vm159 = vcmp.eq.s32.totalorder %v15, %v95
  %vm160 = vcmp.eq.s32.totalorder %v15, %v98
  %vm161 = vcmp.eq.s32.totalorder %v15, %v101
  %vm162 = vcmp.eq.s32.totalorder %v15, %v104
  %vm163 = vcmp.eq.s32.totalorder %v15, %v107
  %vm164 = vcmp.eq.s32.totalorder %v15, %v110
  %vm165 = vcmp.eq.s32.totalorder %v15, %v113
  %vm166 = vcmp.eq.s32.totalorder %v15, %v116
  %vm167 = vcmp.eq.s32.totalorder %v15, %v119
  %vm168 = vcmp.eq.s32.totalorder %v15, %v122
  %vm169 = vcmp.eq.s32.totalorder %v15, %v125
  %vm170 = vcmp.eq.s32.totalorder %v15, %v128
  %vm171 = vcmp.eq.s32.totalorder %v15, %v131
  %vm172 = vcmp.eq.s32.totalorder %v15, %v134
  %vm173 = vcmp.eq.s32.totalorder %v15, %v137
  %vm174 = vcmp.eq.s32.totalorder %v15, %v140
  %vm175 = vcmp.eq.s32.totalorder %v15, %v143
  %v176 = vsel %vm144, 1, 0
  %v177 = vsel %vm145, 1, 0
  %v178 = vsel %vm146, 1, 0
  %v179 = vsel %vm147, 1, 0
  %v180 = vsel %vm148, 1, 0
  %v181 = vsel %vm149, 1, 0
  %v182 = vsel %vm150, 1, 0
  %v183 = vsel %vm151, 1, 0
  %v184 = vsel %vm152, 1, 0
  %v185 = vsel %vm153, 1, 0
  %v186 = vsel %vm154, 1, 0
  %v187 = vsel %vm155, 1, 0
  %v188 = vsel %vm156, 1, 0
  %v189 = vsel %vm157, 1, 0
  %v190 = vsel %vm158, 1, 0
  %v191 = vsel %vm159, 1, 0
  %v192 = vsel %vm160, 1, 0
  %v193 = vsel %vm161, 1, 0
  %v194 = vsel %vm162, 1, 0
  %v195 = vsel %vm163, 1, 0
  %v196 = vsel %vm164, 1, 0
  %v197 = vsel %vm165, 1, 0
  %v198 = vsel %vm166, 1, 0
  %v199 = vsel %vm167, 1, 0
  %v200 = vsel %vm168, 1, 0
  %v201 = vsel %vm169, 1, 0
  %v202 = vsel %vm170, 1, 0
  %v203 = vsel %vm171, 1, 0
  %v204 = vsel %vm172, 1, 0
  %v205 = vsel %vm173, 1, 0
  %v206 = vsel %vm174, 1, 0
  %v207 = vsel %vm175, 1, 0
  %v208 = vcvt.s32.f32 %v176
  %v209 = vcvt.s32.f32 %v177
  %v210 = vcvt.s32.f32 %v178
  %v211 = vcvt.s32.f32 %v179
  %v212 = vcvt.s32.f32 %v180
  %v213 = vcvt.s32.f32 %v181
  %v214 = vcvt.s32.f32 %v182
  %v215 = vcvt.s32.f32 %v183
  %v216 = vcvt.s32.f32 %v184
  %v217 = vcvt.s32.f32 %v185
  %v218 = vcvt.s32.f32 %v186
  %v219 = vcvt.s32.f32 %v187
  %v220 = vcvt.s32.f32 %v188
  %v221 = vcvt.s32.f32 %v189
  %v222 = vcvt.s32.f32 %v190
  %v223 = vcvt.s32.f32 %v191
  %v224 = vcvt.s32.f32 %v192
  %v225 = vcvt.s32.f32 %v193
  %v226 = vcvt.s32.f32 %v194
  %v227 = vcvt.s32.f32 %v195
  %v228 = vcvt.s32.f32 %v196
  %v229 = vcvt.s32.f32 %v197
  %v230 = vcvt.s32.f32 %v198
  %v231 = vcvt.s32.f32 %v199
  %v232 = vcvt.s32.f32 %v200
  %v233 = vcvt.s32.f32 %v201
  %v234 = vcvt.s32.f32 %v202
  %v235 = vcvt.s32.f32 %v203
  %v236 = vcvt.s32.f32 %v204
  %v237 = vcvt.s32.f32 %v205
  %v238 = vcvt.s32.f32 %v206
  %v239 = vcvt.s32.f32 %v207
  %v240 = vld [vmem:[%s1] sm:$0xff]
  %v241 = vld [vmem:[%s1 + $0x8] sm:$0xff]
  %v242 = vld [vmem:[%s1 + $0x10] sm:$0xff]
  %v243 = vld [vmem:[%s1 + $0x18] sm:$0xff]
  %v244 = vld [vmem:[%s1 + $0x20] sm:$0xff]
  %v245 = vld [vmem:[%s1 + $0x28] sm:$0xff]
  %v246 = vld [vmem:[%s1 + $0x30] sm:$0xff]
  %v247 = vld [vmem:[%s1 + $0x38] sm:$0xff]
  %v248 = vld [vmem:[%s1 + $0x40] sm:$0xff]
  %v249 = vld [vmem:[%s1 + $0x48] sm:$0xff]
  %v250 = vld [vmem:[%s1 + $0x50] sm:$0xff]
  %v251 = vld [vmem:[%s1 + $0x58] sm:$0xff]
  %v252 = vld [vmem:[%s1 + $0x60] sm:$0xff]
  %v253 = vld [vmem:[%s1 + $0x68] sm:$0xff]
  %v254 = vld [vmem:[%s1 + $0x70] sm:$0xff]
  %v255 = vld [vmem:[%s1 + $0x78] sm:$0xff]
  %v256 = vadd.s32 %v16, 10
  %v257 = vadd.s32 %v17, 10
  %v258 = vadd.s32 %v18, 10
  %v259 = vadd.s32 %v19, 10
  %v260 = vadd.s32 %v20, 10
  %v261 = vadd.s32 %v21, 10
  %v262 = vadd.s32 %v22, 10
  %v263 = vadd.s32 %v23, 10
  %v264 = vadd.s32 %v24, 10
  %v265 = vadd.s32 %v25, 10
  %v266 = vadd.s32 %v26, 10
  %v267 = vadd.s32 %v27, 10
  %v268 = vadd.s32 %v28, 10
  %v269 = vadd.s32 %v29, 10
  %v270 = vadd.s32 %v30, 10
  %v271 = vadd.s32 %v31, 10
  %v272 = vadd.s32 %v32, 10
  %v273 = vadd.s32 %v33, 10
  %v274 = vadd.s32 %v34, 10
  %v275 = vadd.s32 %v35, 10
  %v276 = vadd.s32 %v36, 10
  %v277 = vadd.s32 %v37, 10
  %v278 = vadd.s32 %v38, 10
  %v279 = vadd.s32 %v39, 10
  %v280 = vadd.s32 %v40, 10
  %v281 = vadd.s32 %v41, 10
  %v282 = vadd.s32 %v42, 10
  %v283 = vadd.s32 %v43, 10
  %v284 = vadd.s32 %v44, 10
  %v285 = vadd.s32 %v45, 10
  %v286 = vadd.s32 %v46, 10
  %v287 = vadd.s32 %v47, 10
  %288 = vset.pattern.permute.xlu0 1
  %289 = vperm.xlu0 %288, %v256
  %v290 = vpop.permute.xlu0 %289
  %291 = vset.pattern.permute.xlu0 1
  %292 = vperm.xlu0 %291, %v257
  %v293 = vpop.permute.xlu0 %292
  %294 = vset.pattern.permute.xlu0 1
  %295 = vperm.xlu0 %294, %v258
  %v296 = vpop.permute.xlu0 %295
  %297 = vset.pattern.permute.xlu0 1
  %298 = vperm.xlu0 %297, %v259
  %v299 = vpop.permute.xlu0 %298
  %300 = vset.pattern.permute.xlu0 1
  %301 = vperm.xlu0 %300, %v260
  %v302 = vpop.permute.xlu0 %301
  %303 = vset.pattern.permute.xlu0 1
  %304 = vperm.xlu0 %303, %v261
  %v305 = vpop.permute.xlu0 %304
  %306 = vset.pattern.permute.xlu0 1
  %307 = vperm.xlu0 %306, %v262
  %v308 = vpop.permute.xlu0 %307
  %309 = vset.pattern.permute.xlu0 1
  %310 = vperm.xlu0 %309, %v263
  %v311 = vpop.permute.xlu0 %310
  %312 = vset.pattern.permute.xlu0 1
  %313 = vperm.xlu0 %312, %v264
  %v314 = vpop.permute.xlu0 %313
  %315 = vset.pattern.permute.xlu0 1
  %316 = vperm.xlu0 %315, %v265
  %v317 = vpop.permute.xlu0 %316
  %318 = vset.pattern.permute.xlu0 1
  %319 = vperm.xlu0 %318, %v266
  %v320 = vpop.permute.xlu0 %319
  %321 = vset.pattern.permute.xlu0 1
  %322 = vperm.xlu0 %321, %v267
  %v323 = vpop.permute.xlu0 %322
  %324 = vset.pattern.permute.xlu0 1
  %325 = vperm.xlu0 %324, %v268
  %v326 = vpop.permute.xlu0 %325
  %327 = vset.pattern.permute.xlu0 1
  %328 = vperm.xlu0 %327, %v269
  %v329 = vpop.permute.xlu0 %328
  %330 = vset.pattern.permute.xlu0 1
  %331 = vperm.xlu0 %330, %v270
  %v332 = vpop.permute.xlu0 %331
  %333 = vset.pattern.permute.xlu0 1
  %334 = vperm.xlu0 %333, %v271
  %v335 = vpop.permute.xlu0 %334
  %336 = vset.pattern.permute.xlu0 1
  %337 = vperm.xlu0 %336, %v272
  %v338 = vpop.permute.xlu0 %337
  %339 = vset.pattern.permute.xlu0 1
  %340 = vperm.xlu0 %339, %v273
  %v341 = vpop.permute.xlu0 %340
  %342 = vset.pattern.permute.xlu0 1
  %343 = vperm.xlu0 %342, %v274
  %v344 = vpop.permute.xlu0 %343
  %345 = vset.pattern.permute.xlu0 1
  %346 = vperm.xlu0 %345, %v275
  %v347 = vpop.permute.xlu0 %346
  %348 = vset.pattern.permute.xlu0 1
  %349 = vperm.xlu0 %348, %v276
  %v350 = vpop.permute.xlu0 %349
  %351 = vset.pattern.permute.xlu0 1
  %352 = vperm.xlu0 %351, %v277
  %v353 = vpop.permute.xlu0 %352
  %354 = vset.pattern.permute.xlu0 1
  %355 = vperm.xlu0 %354, %v278
  %v356 = vpop.permute.xlu0 %355
  %357 = vset.pattern.permute.xlu0 1
  %358 = vperm.xlu0 %357, %v279
  %v359 = vpop.permute.xlu0 %358
  %360 = vset.pattern.permute.xlu0 1
  %361 = vperm.xlu0 %360, %v280
  %v362 = vpop.permute.xlu0 %361
  %363 = vset.pattern.permute.xlu0 1
  %364 = vperm.xlu0 %363, %v281
  %v365 = vpop.permute.xlu0 %364
  %366 = vset.pattern.permute.xlu0 1
  %367 = vperm.xlu0 %366, %v282
  %v368 = vpop.permute.xlu0 %367
  %369 = vset.pattern.permute.xlu0 1
  %370 = vperm.xlu0 %369, %v283
  %v371 = vpop.permute.xlu0 %370
  %372 = vset.pattern.permute.xlu0 1
  %373 = vperm.xlu0 %372, %v284
  %v374 = vpop.permute.xlu0 %373
  %375 = vset.pattern.permute.xlu0 1
  %376 = vperm.xlu0 %375, %v285
  %v377 = vpop.permute.xlu0 %376
  %378 = vset.pattern.permute.xlu0 1
  %379 = vperm.xlu0 %378, %v286
  %v380 = vpop.permute.xlu0 %379
  %381 = vset.pattern.permute.xlu0 1
  %382 = vperm.xlu0 %381, %v287
  %v383 = vpop.permute.xlu0 %382
  %vm384 = vcmp.eq.s32.totalorder %v15, %v290
  %vm385 = vcmp.eq.s32.totalorder %v15, %v293
  %vm386 = vcmp.eq.s32.totalorder %v15, %v296
  %vm387 = vcmp.eq.s32.totalorder %v15, %v299
  %vm388 = vcmp.eq.s32.totalorder %v15, %v302
  %vm389 = vcmp.eq.s32.totalorder %v15, %v305
  %vm390 = vcmp.eq.s32.totalorder %v15, %v308
  %vm391 = vcmp.eq.s32.totalorder %v15, %v311
  %vm392 = vcmp.eq.s32.totalorder %v15, %v314
  %vm393 = vcmp.eq.s32.totalorder %v15, %v317
  %vm394 = vcmp.eq.s32.totalorder %v15, %v320
  %vm395 = vcmp.eq.s32.totalorder %v15, %v323
  %vm396 = vcmp.eq.s32.totalorder %v15, %v326
  %vm397 = vcmp.eq.s32.totalorder %v15, %v329
  %vm398 = vcmp.eq.s32.totalorder %v15, %v332
  %vm399 = vcmp.eq.s32.totalorder %v15, %v335
  %vm400 = vcmp.eq.s32.totalorder %v15, %v338
  %vm401 = vcmp.eq.s32.totalorder %v15, %v341
  %vm402 = vcmp.eq.s32.totalorder %v15, %v344
  %vm403 = vcmp.eq.s32.totalorder %v15, %v347
  %vm404 = vcmp.eq.s32.totalorder %v15, %v350
  %vm405 = vcmp.eq.s32.totalorder %v15, %v353
  %vm406 = vcmp.eq.s32.totalorder %v15, %v356
  %vm407 = vcmp.eq.s32.totalorder %v15, %v359
  %vm408 = vcmp.eq.s32.totalorder %v15, %v362
  %vm409 = vcmp.eq.s32.totalorder %v15, %v365
  %vm410 = vcmp.eq.s32.totalorder %v15, %v368
  %vm411 = vcmp.eq.s32.totalorder %v15, %v371
  %vm412 = vcmp.eq.s32.totalorder %v15, %v374
  %vm413 = vcmp.eq.s32.totalorder %v15, %v377
  %vm414 = vcmp.eq.s32.totalorder %v15, %v380
  %vm415 = vcmp.eq.s32.totalorder %v15, %v383
  %v416 = vsel %vm384, 1, 0
  %v417 = vsel %vm385, 1, 0
  %v418 = vsel %vm386, 1, 0
  %v419 = vsel %vm387, 1, 0
  %v420 = vsel %vm388, 1, 0
  %v421 = vsel %vm389, 1, 0
  %v422 = vsel %vm390, 1, 0
  %v423 = vsel %vm391, 1, 0
  %v424 = vsel %vm392, 1, 0
  %v425 = vsel %vm393, 1, 0
  %v426 = vsel %vm394, 1, 0
  %v427 = vsel %vm395, 1, 0
  %v428 = vsel %vm396, 1, 0
  %v429 = vsel %vm397, 1, 0
  %v430 = vsel %vm398, 1, 0
  %v431 = vsel %vm399, 1, 0
  %v432 = vsel %vm400, 1, 0
  %v433 = vsel %vm401, 1, 0
  %v434 = vsel %vm402, 1, 0
  %v435 = vsel %vm403, 1, 0
  %v436 = vsel %vm404, 1, 0
  %v437 = vsel %vm405, 1, 0
  %v438 = vsel %vm406, 1, 0
  %v439 = vsel %vm407, 1, 0
  %v440 = vsel %vm408, 1, 0
  %v441 = vsel %vm409, 1, 0
  %v442 = vsel %vm410, 1, 0
  %v443 = vsel %vm411, 1, 0
  %v444 = vsel %vm412, 1, 0
  %v445 = vsel %vm413, 1, 0
  %v446 = vsel %vm414, 1, 0
  %v447 = vsel %vm415, 1, 0
  %v448 = vcvt.s32.f32 %v416
  %v449 = vcvt.s32.f32 %v417
  %v450 = vcvt.s32.f32 %v418
  %v451 = vcvt.s32.f32 %v419
  %v452 = vcvt.s32.f32 %v420
  %v453 = vcvt.s32.f32 %v421
  %v454 = vcvt.s32.f32 %v422
  %v455 = vcvt.s32.f32 %v423
  %v456 = vcvt.s32.f32 %v424
  %v457 = vcvt.s32.f32 %v425
  %v458 = vcvt.s32.f32 %v426
  %v459 = vcvt.s32.f32 %v427
  %v460 = vcvt.s32.f32 %v428
  %v461 = vcvt.s32.f32 %v429
  %v462 = vcvt.s32.f32 %v430
  %v463 = vcvt.s32.f32 %v431
  %v464 = vcvt.s32.f32 %v432
  %v465 = vcvt.s32.f32 %v433
  %v466 = vcvt.s32.f32 %v434
  %v467 = vcvt.s32.f32 %v435
  %v468 = vcvt.s32.f32 %v436
  %v469 = vcvt.s32.f32 %v437
  %v470 = vcvt.s32.f32 %v438
  %v471 = vcvt.s32.f32 %v439
  %v472 = vcvt.s32.f32 %v440
  %v473 = vcvt.s32.f32 %v441
  %v474 = vcvt.s32.f32 %v442
  %v475 = vcvt.s32.f32 %v443
  %v476 = vcvt.s32.f32 %v444
  %v477 = vcvt.s32.f32 %v445
  %v478 = vcvt.s32.f32 %v446
  %v479 = vcvt.s32.f32 %v447
  %v480 = vld [vmem:[%s1 + $0x80] sm:$0xff]
  %v481 = vld [vmem:[%s1 + $0x88] sm:$0xff]
  %v482 = vld [vmem:[%s1 + $0x90] sm:$0xff]
  %v483 = vld [vmem:[%s1 + $0x98] sm:$0xff]
  %v484 = vld [vmem:[%s1 + $0xa0] sm:$0xff]
  %v485 = vld [vmem:[%s1 + $0xa8] sm:$0xff]
  %v486 = vld [vmem:[%s1 + $0xb0] sm:$0xff]
  %v487 = vld [vmem:[%s1 + $0xb8] sm:$0xff]
  %v488 = vld [vmem:[%s1 + $0xc0] sm:$0xff]
  %v489 = vld [vmem:[%s1 + $0xc8] sm:$0xff]
  %v490 = vld [vmem:[%s1 + $0xd0] sm:$0xff]
  %v491 = vld [vmem:[%s1 + $0xd8] sm:$0xff]
  %v492 = vld [vmem:[%s1 + $0xe0] sm:$0xff]
  %v493 = vld [vmem:[%s1 + $0xe8] sm:$0xff]
  %v494 = vld [vmem:[%s1 + $0xf0] sm:$0xff]
  %v495 = vld [vmem:[%s1 + $0xf8] sm:$0xff]
  %496 = vmatpush.msra.mxu0 %v495
  %497 = vmatpush.msra.mxu0 %v494
  %498 = vmatpush.msra.mxu0 %v493
  %499 = vmatpush.msra.mxu0 %v492
  %500 = vmatpush.msra.mxu0 %v491
  %501 = vmatpush.msra.mxu0 %v490
  %502 = vmatpush.msra.mxu0 %v489
  %503 = vmatpush.msra.mxu0 %v488
  %504 = vmatpush.msra.mxu0 %v487
  %505 = vmatpush.msra.mxu0 %v486
  %506 = vmatpush.msra.mxu0 %v485
  %507 = vmatpush.msra.mxu0 %v484
  %508 = vmatpush.msra.mxu0 %v483
  %509 = vmatpush.msra.mxu0 %v482
  %510 = vmatpush.msra.mxu0 %v481
  %511 = vmatpush.msra.mxu0 %v480
  %512 = vmatmul.f32.gmra.mxu0 %v448
  %v513 = vpop.f32.mrf.mxu0
  %v514 = vadd.f32 0.0, %v513
  %515 = vmatmul.f32.gmra.mxu0 %v449
  %v516 = vpop.f32.mrf.mxu0
  %v517 = vadd.f32 0.0, %v516
  %518 = vmatmul.f32.gmra.mxu0 %v450
  %v519 = vpop.f32.mrf.mxu0
  %v520 = vadd.f32 0.0, %v519
  %521 = vmatmul.f32.gmra.mxu0 %v451
  %v522 = vpop.f32.mrf.mxu0
  %v523 = vadd.f32 0.0, %v522
  %524 = vmatmul.f32.gmra.mxu0 %v452
  %v525 = vpop.f32.mrf.mxu0
  %v526 = vadd.f32 0.0, %v525
  %527 = vmatmul.f32.gmra.mxu0 %v453
  %v528 = vpop.f32.mrf.mxu0
  %v529 = vadd.f32 0.0, %v528
  %530 = vmatmul.f32.gmra.mxu0 %v454
  %v531 = vpop.f32.mrf.mxu0
  %v532 = vadd.f32 0.0, %v531
  %533 = vmatmul.f32.gmra.mxu0 %v455
  %v534 = vpop.f32.mrf.mxu0
  %v535 = vadd.f32 0.0, %v534
  %536 = vmatmul.f32.gmra.mxu0 %v456
  %v537 = vpop.f32.mrf.mxu0
  %v538 = vadd.f32 0.0, %v537
  %539 = vmatmul.f32.gmra.mxu0 %v457
  %v540 = vpop.f32.mrf.mxu0
  %v541 = vadd.f32 0.0, %v540
  %542 = vmatmul.f32.gmra.mxu0 %v458
  %v543 = vpop.f32.mrf.mxu0
  %v544 = vadd.f32 0.0, %v543
  %545 = vmatmul.f32.gmra.mxu0 %v459
  %v546 = vpop.f32.mrf.mxu0
  %v547 = vadd.f32 0.0, %v546
  %548 = vmatmul.f32.gmra.mxu0 %v460
  %v549 = vpop.f32.mrf.mxu0
  %v550 = vadd.f32 0.0, %v549
  %551 = vmatmul.f32.gmra.mxu0 %v461
  %v552 = vpop.f32.mrf.mxu0
  %v553 = vadd.f32 0.0, %v552
  %554 = vmatmul.f32.gmra.mxu0 %v462
  %v555 = vpop.f32.mrf.mxu0
  %v556 = vadd.f32 0.0, %v555
  %557 = vmatmul.f32.gmra.mxu0 %v463
  %v558 = vpop.f32.mrf.mxu0
  %v559 = vadd.f32 0.0, %v558
  %560 = vmatmul.f32.gmra.mxu0 %v464
  %v561 = vpop.f32.mrf.mxu0
  %v562 = vadd.f32 0.0, %v561
  %563 = vmatmul.f32.gmra.mxu0 %v465
  %v564 = vpop.f32.mrf.mxu0
  %v565 = vadd.f32 0.0, %v564
  %566 = vmatmul.f32.gmra.mxu0 %v466
  %v567 = vpop.f32.mrf.mxu0
  %v568 = vadd.f32 0.0, %v567
  %569 = vmatmul.f32.gmra.mxu0 %v467
  %v570 = vpop.f32.mrf.mxu0
  %v571 = vadd.f32 0.0, %v570
  %572 = vmatmul.f32.gmra.mxu0 %v468
  %v573 = vpop.f32.mrf.mxu0
  %v574 = vadd.f32 0.0, %v573
  %575 = vmatmul.f32.gmra.mxu0 %v469
  %v576 = vpop.f32.mrf.mxu0
  %v577 = vadd.f32 0.0, %v576
  %578 = vmatmul.f32.gmra.mxu0 %v470
  %v579 = vpop.f32.mrf.mxu0
  %v580 = vadd.f32 0.0, %v579
  %581 = vmatmul.f32.gmra.mxu0 %v471
  %v582 = vpop.f32.mrf.mxu0
  %v583 = vadd.f32 0.0, %v582
  %584 = vmatmul.f32.gmra.mxu0 %v472
  %v585 = vpop.f32.mrf.mxu0
  %v586 = vadd.f32 0.0, %v585
  %587 = vmatmul.f32.gmra.mxu0 %v473
  %v588 = vpop.f32.mrf.mxu0
  %v589 = vadd.f32 0.0, %v588
  %590 = vmatmul.f32.gmra.mxu0 %v474
  %v591 = vpop.f32.mrf.mxu0
  %v592 = vadd.f32 0.0, %v591
  %593 = vmatmul.f32.gmra.mxu0 %v475
  %v594 = vpop.f32.mrf.mxu0
  %v595 = vadd.f32 0.0, %v594
  %596 = vmatmul.f32.gmra.mxu0 %v476
  %v597 = vpop.f32.mrf.mxu0
  %v598 = vadd.f32 0.0, %v597
  %599 = vmatmul.f32.gmra.mxu0 %v477
  %v600 = vpop.f32.mrf.mxu0
  %v601 = vadd.f32 0.0, %v600
  %602 = vmatmul.f32.gmra.mxu0 %v478
  %v603 = vpop.f32.mrf.mxu0
  %v604 = vadd.f32 0.0, %v603
  %605 = vmatmul.f32.gmra.mxu0 %v479
  %v606 = vpop.f32.mrf.mxu0
  %v607 = vadd.f32 0.0, %v606
  %608 = vdwg.mxu0
  %609 = vmatpush.msra.mxu0 %v255
  %610 = vmatpush.msra.mxu0 %v254
  %611 = vmatpush.msra.mxu0 %v253
  %612 = vmatpush.msra.mxu0 %v252
  %613 = vmatpush.msra.mxu0 %v251
  %614 = vmatpush.msra.mxu0 %v250
  %615 = vmatpush.msra.mxu0 %v249
  %616 = vmatpush.msra.mxu0 %v248
  %617 = vmatpush.msra.mxu0 %v247
  %618 = vmatpush.msra.mxu0 %v246
  %619 = vmatpush.msra.mxu0 %v245
  %620 = vmatpush.msra.mxu0 %v244
  %621 = vmatpush.msra.mxu0 %v243
  %622 = vmatpush.msra.mxu0 %v242
  %623 = vmatpush.msra.mxu0 %v241
  %624 = vmatpush.msra.mxu0 %v240
  %625 = vmatmul.f32.gmra.mxu0 %v208
  %v626 = vpop.f32.mrf.mxu0
  %v627 = vadd.f32 %v514, %v626
  %628 = vmatmul.f32.gmra.mxu0 %v209
  %v629 = vpop.f32.mrf.mxu0
  %v630 = vadd.f32 %v517, %v629
  %631 = vmatmul.f32.gmra.mxu0 %v210
  %v632 = vpop.f32.mrf.mxu0
  %v633 = vadd.f32 %v520, %v632
  %634 = vmatmul.f32.gmra.mxu0 %v211
  %v635 = vpop.f32.mrf.mxu0
  %v636 = vadd.f32 %v523, %v635
  %637 = vmatmul.f32.gmra.mxu0 %v212
  %v638 = vpop.f32.mrf.mxu0
  %v639 = vadd.f32 %v526, %v638
  %640 = vmatmul.f32.gmra.mxu0 %v213
  %v641 = vpop.f32.mrf.mxu0
  %v642 = vadd.f32 %v529, %v641
  %643 = vmatmul.f32.gmra.mxu0 %v214
  %v644 = vpop.f32.mrf.mxu0
  %v645 = vadd.f32 %v532, %v644
  %646 = vmatmul.f32.gmra.mxu0 %v215
  %v647 = vpop.f32.mrf.mxu0
  %v648 = vadd.f32 %v535, %v647
  %649 = vmatmul.f32.gmra.mxu0 %v216
  %v650 = vpop.f32.mrf.mxu0
  %v651 = vadd.f32 %v538, %v650
  %652 = vmatmul.f32.gmra.mxu0 %v217
  %v653 = vpop.f32.mrf.mxu0
  %v654 = vadd.f32 %v541, %v653
  %655 = vmatmul.f32.gmra.mxu0 %v218
  %v656 = vpop.f32.mrf.mxu0
  %v657 = vadd.f32 %v544, %v656
  %658 = vmatmul.f32.gmra.mxu0 %v219
  %v659 = vpop.f32.mrf.mxu0
  %v660 = vadd.f32 %v547, %v659
  %661 = vmatmul.f32.gmra.mxu0 %v220
  %v662 = vpop.f32.mrf.mxu0
  %v663 = vadd.f32 %v550, %v662
  %664 = vmatmul.f32.gmra.mxu0 %v221
  %v665 = vpop.f32.mrf.mxu0
  %v666 = vadd.f32 %v553, %v665
  %667 = vmatmul.f32.gmra.mxu0 %v222
  %v668 = vpop.f32.mrf.mxu0
  %v669 = vadd.f32 %v556, %v668
  %670 = vmatmul.f32.gmra.mxu0 %v223
  %v671 = vpop.f32.mrf.mxu0
  %v672 = vadd.f32 %v559, %v671
  %673 = vmatmul.f32.gmra.mxu0 %v224
  %v674 = vpop.f32.mrf.mxu0
  %v675 = vadd.f32 %v562, %v674
  %676 = vmatmul.f32.gmra.mxu0 %v225
  %v677 = vpop.f32.mrf.mxu0
  %v678 = vadd.f32 %v565, %v677
  %679 = vmatmul.f32.gmra.mxu0 %v226
  %v680 = vpop.f32.mrf.mxu0
  %v681 = vadd.f32 %v568, %v680
  %682 = vmatmul.f32.gmra.mxu0 %v227
  %v683 = vpop.f32.mrf.mxu0
  %v684 = vadd.f32 %v571, %v683
  %685 = vmatmul.f32.gmra.mxu0 %v228
  %v686 = vpop.f32.mrf.mxu0
  %v687 = vadd.f32 %v574, %v686
  %688 = vmatmul.f32.gmra.mxu0 %v229
  %v689 = vpop.f32.mrf.mxu0
  %v690 = vadd.f32 %v577, %v689
  %691 = vmatmul.f32.gmra.mxu0 %v230
  %v692 = vpop.f32.mrf.mxu0
  %v693 = vadd.f32 %v580, %v692
  %694 = vmatmul.f32.gmra.mxu0 %v231
  %v695 = vpop.f32.mrf.mxu0
  %v696 = vadd.f32 %v583, %v695
  %697 = vmatmul.f32.gmra.mxu0 %v232
  %v698 = vpop.f32.mrf.mxu0
  %v699 = vadd.f32 %v586, %v698
  %700 = vmatmul.f32.gmra.mxu0 %v233
  %v701 = vpop.f32.mrf.mxu0
  %v702 = vadd.f32 %v589, %v701
  %703 = vmatmul.f32.gmra.mxu0 %v234
  %v704 = vpop.f32.mrf.mxu0
  %v705 = vadd.f32 %v592, %v704
  %706 = vmatmul.f32.gmra.mxu0 %v235
  %v707 = vpop.f32.mrf.mxu0
  %v708 = vadd.f32 %v595, %v707
  %709 = vmatmul.f32.gmra.mxu0 %v236
  %v710 = vpop.f32.mrf.mxu0
  %v711 = vadd.f32 %v598, %v710
  %712 = vmatmul.f32.gmra.mxu0 %v237
  %v713 = vpop.f32.mrf.mxu0
  %v714 = vadd.f32 %v601, %v713
  %715 = vmatmul.f32.gmra.mxu0 %v238
  %v716 = vpop.f32.mrf.mxu0
  %v717 = vadd.f32 %v604, %v716
  %718 = vmatmul.f32.gmra.mxu0 %v239
  %v719 = vpop.f32.mrf.mxu0
  %v720 = vadd.f32 %v607, %v719
  %721 = vdwg.mxu0
  %v722 = vadd.s32 %v16, 30
  %v723 = vadd.s32 %v17, 30
  %v724 = vadd.s32 %v18, 30
  %v725 = vadd.s32 %v19, 30
  %v726 = vadd.s32 %v20, 30
  %v727 = vadd.s32 %v21, 30
  %v728 = vadd.s32 %v22, 30
  %v729 = vadd.s32 %v23, 30
  %v730 = vadd.s32 %v24, 30
  %v731 = vadd.s32 %v25, 30
  %v732 = vadd.s32 %v26, 30
  %v733 = vadd.s32 %v27, 30
  %v734 = vadd.s32 %v28, 30
  %v735 = vadd.s32 %v29, 30
  %v736 = vadd.s32 %v30, 30
  %v737 = vadd.s32 %v31, 30
  %v738 = vadd.s32 %v32, 30
  %v739 = vadd.s32 %v33, 30
  %v740 = vadd.s32 %v34, 30
  %v741 = vadd.s32 %v35, 30
  %v742 = vadd.s32 %v36, 30
  %v743 = vadd.s32 %v37, 30
  %v744 = vadd.s32 %v38, 30
  %v745 = vadd.s32 %v39, 30
  %v746 = vadd.s32 %v40, 30
  %v747 = vadd.s32 %v41, 30
  %v748 = vadd.s32 %v42, 30
  %v749 = vadd.s32 %v43, 30
  %v750 = vadd.s32 %v44, 30
  %v751 = vadd.s32 %v45, 30
  %v752 = vadd.s32 %v46, 30
  %v753 = vadd.s32 %v47, 30
  %754 = vset.pattern.permute.xlu0 2
  %755 = vperm.xlu0 %754, %v722
  %v756 = vpop.permute.xlu0 %755
  %757 = vset.pattern.permute.xlu0 2
  %758 = vperm.xlu0 %757, %v723
  %v759 = vpop.permute.xlu0 %758
  %760 = vset.pattern.permute.xlu0 2
  %761 = vperm.xlu0 %760, %v724
  %v762 = vpop.permute.xlu0 %761
  %763 = vset.pattern.permute.xlu0 2
  %764 = vperm.xlu0 %763, %v725
  %v765 = vpop.permute.xlu0 %764
  %766 = vset.pattern.permute.xlu0 2
  %767 = vperm.xlu0 %766, %v726
  %v768 = vpop.permute.xlu0 %767
  %769 = vset.pattern.permute.xlu0 2
  %770 = vperm.xlu0 %769, %v727
  %v771 = vpop.permute.xlu0 %770
  %772 = vset.pattern.permute.xlu0 2
  %773 = vperm.xlu0 %772, %v728
  %v774 = vpop.permute.xlu0 %773
  %775 = vset.pattern.permute.xlu0 2
  %776 = vperm.xlu0 %775, %v729
  %v777 = vpop.permute.xlu0 %776
  %778 = vset.pattern.permute.xlu0 2
  %779 = vperm.xlu0 %778, %v730
  %v780 = vpop.permute.xlu0 %779
  %781 = vset.pattern.permute.xlu0 2
  %782 = vperm.xlu0 %781, %v731
  %v783 = vpop.permute.xlu0 %782
  %784 = vset.pattern.permute.xlu0 2
  %785 = vperm.xlu0 %784, %v732
  %v786 = vpop.permute.xlu0 %785
  %787 = vset.pattern.permute.xlu0 2
  %788 = vperm.xlu0 %787, %v733
  %v789 = vpop.permute.xlu0 %788
  %790 = vset.pattern.permute.xlu0 2
  %791 = vperm.xlu0 %790, %v734
  %v792 = vpop.permute.xlu0 %791
  %793 = vset.pattern.permute.xlu0 2
  %794 = vperm.xlu0 %793, %v735
  %v795 = vpop.permute.xlu0 %794
  %796 = vset.pattern.permute.xlu0 2
  %797 = vperm.xlu0 %796, %v736
  %v798 = vpop.permute.xlu0 %797
  %799 = vset.pattern.permute.xlu0 2
  %800 = vperm.xlu0 %799, %v737
  %v801 = vpop.permute.xlu0 %800
  %802 = vset.pattern.permute.xlu0 2
  %803 = vperm.xlu0 %802, %v738
  %v804 = vpop.permute.xlu0 %803
  %805 = vset.pattern.permute.xlu0 2
  %806 = vperm.xlu0 %805, %v739
  %v807 = vpop.permute.xlu0 %806
  %808 = vset.pattern.permute.xlu0 2
  %809 = vperm.xlu0 %808, %v740
  %v810 = vpop.permute.xlu0 %809
  %811 = vset.pattern.permute.xlu0 2
  %812 = vperm.xlu0 %811, %v741
  %v813 = vpop.permute.xlu0 %812
  %814 = vset.pattern.permute.xlu0 2
  %815 = vperm.xlu0 %814, %v742
  %v816 = vpop.permute.xlu0 %815
  %817 = vset.pattern.permute.xlu0 2
  %818 = vperm.xlu0 %817, %v743
  %v819 = vpop.permute.xlu0 %818
  %820 = vset.pattern.permute.xlu0 2
  %821 = vperm.xlu0 %820, %v744
  %v822 = vpop.permute.xlu0 %821
  %823 = vset.pattern.permute.xlu0 2
  %824 = vperm.xlu0 %823, %v745
  %v825 = vpop.permute.xlu0 %824
  %826 = vset.pattern.permute.xlu0 2
  %827 = vperm.xlu0 %826, %v746
  %v828 = vpop.permute.xlu0 %827
  %829 = vset.pattern.permute.xlu0 2
  %830 = vperm.xlu0 %829, %v747
  %v831 = vpop.permute.xlu0 %830
  %832 = vset.pattern.permute.xlu0 2
  %833 = vperm.xlu0 %832, %v748
  %v834 = vpop.permute.xlu0 %833
  %835 = vset.pattern.permute.xlu0 2
  %836 = vperm.xlu0 %835, %v749
  %v837 = vpop.permute.xlu0 %836
  %838 = vset.pattern.permute.xlu0 2
  %839 = vperm.xlu0 %838, %v750
  %v840 = vpop.permute.xlu0 %839
  %841 = vset.pattern.permute.xlu0 2
  %842 = vperm.xlu0 %841, %v751
  %v843 = vpop.permute.xlu0 %842
  %844 = vset.pattern.permute.xlu0 2
  %845 = vperm.xlu0 %844, %v752
  %v846 = vpop.permute.xlu0 %845
  %847 = vset.pattern.permute.xlu0 2
  %848 = vperm.xlu0 %847, %v753
  %v849 = vpop.permute.xlu0 %848
  %vm850 = vcmp.eq.s32.totalorder %v15, %v756
  %vm851 = vcmp.eq.s32.totalorder %v15, %v759
  %vm852 = vcmp.eq.s32.totalorder %v15, %v762
  %vm853 = vcmp.eq.s32.totalorder %v15, %v765
  %vm854 = vcmp.eq.s32.totalorder %v15, %v768
  %vm855 = vcmp.eq.s32.totalorder %v15, %v771
  %vm856 = vcmp.eq.s32.totalorder %v15, %v774
  %vm857 = vcmp.eq.s32.totalorder %v15, %v777
  %vm858 = vcmp.eq.s32.totalorder %v15, %v780
  %vm859 = vcmp.eq.s32.totalorder %v15, %v783
  %vm860 = vcmp.eq.s32.totalorder %v15, %v786
  %vm861 = vcmp.eq.s32.totalorder %v15, %v789
  %vm862 = vcmp.eq.s32.totalorder %v15, %v792
  %vm863 = vcmp.eq.s32.totalorder %v15, %v795
  %vm864 = vcmp.eq.s32.totalorder %v15, %v798
  %vm865 = vcmp.eq.s32.totalorder %v15, %v801
  %vm866 = vcmp.eq.s32.totalorder %v15, %v804
  %vm867 = vcmp.eq.s32.totalorder %v15, %v807
  %vm868 = vcmp.eq.s32.totalorder %v15, %v810
  %vm869 = vcmp.eq.s32.totalorder %v15, %v813
  %vm870 = vcmp.eq.s32.totalorder %v15, %v816
  %vm871 = vcmp.eq.s32.totalorder %v15, %v819
  %vm872 = vcmp.eq.s32.totalorder %v15, %v822
  %vm873 = vcmp.eq.s32.totalorder %v15, %v825
  %vm874 = vcmp.eq.s32.totalorder %v15, %v828
  %vm875 = vcmp.eq.s32.totalorder %v15, %v831
  %vm876 = vcmp.eq.s32.totalorder %v15, %v834
  %vm877 = vcmp.eq.s32.totalorder %v15, %v837
  %vm878 = vcmp.eq.s32.totalorder %v15, %v840
  %vm879 = vcmp.eq.s32.totalorder %v15, %v843
  %vm880 = vcmp.eq.s32.totalorder %v15, %v846
  %vm881 = vcmp.eq.s32.totalorder %v15, %v849
  %v882 = vsel %vm850, 1, 0
  %v883 = vsel %vm851, 1, 0
  %v884 = vsel %vm852, 1, 0
  %v885 = vsel %vm853, 1, 0
  %v886 = vsel %vm854, 1, 0
  %v887 = vsel %vm855, 1, 0
  %v888 = vsel %vm856, 1, 0
  %v889 = vsel %vm857, 1, 0
  %v890 = vsel %vm858, 1, 0
  %v891 = vsel %vm859, 1, 0
  %v892 = vsel %vm860, 1, 0
  %v893 = vsel %vm861, 1, 0
  %v894 = vsel %vm862, 1, 0
  %v895 = vsel %vm863, 1, 0
  %v896 = vsel %vm864, 1, 0
  %v897 = vsel %vm865, 1, 0
  %v898 = vsel %vm866, 1, 0
  %v899 = vsel %vm867, 1, 0
  %v900 = vsel %vm868, 1, 0
  %v901 = vsel %vm869, 1, 0
  %v902 = vsel %vm870, 1, 0
  %v903 = vsel %vm871, 1, 0
  %v904 = vsel %vm872, 1, 0
  %v905 = vsel %vm873, 1, 0
  %v906 = vsel %vm874, 1, 0
  %v907 = vsel %vm875, 1, 0
  %v908 = vsel %vm876, 1, 0
  %v909 = vsel %vm877, 1, 0
  %v910 = vsel %vm878, 1, 0
  %v911 = vsel %vm879, 1, 0
  %v912 = vsel %vm880, 1, 0
  %v913 = vsel %vm881, 1, 0
  %v914 = vcvt.s32.f32 %v882
  %v915 = vcvt.s32.f32 %v883
  %v916 = vcvt.s32.f32 %v884
  %v917 = vcvt.s32.f32 %v885
  %v918 = vcvt.s32.f32 %v886
  %v919 = vcvt.s32.f32 %v887
  %v920 = vcvt.s32.f32 %v888
  %v921 = vcvt.s32.f32 %v889
  %v922 = vcvt.s32.f32 %v890
  %v923 = vcvt.s32.f32 %v891
  %v924 = vcvt.s32.f32 %v892
  %v925 = vcvt.s32.f32 %v893
  %v926 = vcvt.s32.f32 %v894
  %v927 = vcvt.s32.f32 %v895
  %v928 = vcvt.s32.f32 %v896
  %v929 = vcvt.s32.f32 %v897
  %v930 = vcvt.s32.f32 %v898
  %v931 = vcvt.s32.f32 %v899
  %v932 = vcvt.s32.f32 %v900
  %v933 = vcvt.s32.f32 %v901
  %v934 = vcvt.s32.f32 %v902
  %v935 = vcvt.s32.f32 %v903
  %v936 = vcvt.s32.f32 %v904
  %v937 = vcvt.s32.f32 %v905
  %v938 = vcvt.s32.f32 %v906
  %v939 = vcvt.s32.f32 %v907
  %v940 = vcvt.s32.f32 %v908
  %v941 = vcvt.s32.f32 %v909
  %v942 = vcvt.s32.f32 %v910
  %v943 = vcvt.s32.f32 %v911
  %v944 = vcvt.s32.f32 %v912
  %v945 = vcvt.s32.f32 %v913
  %v946 = vld [vmem:[%s1 + $0x100] sm:$0xff]
  %v947 = vld [vmem:[%s1 + $0x108] sm:$0xff]
  %v948 = vld [vmem:[%s1 + $0x110] sm:$0xff]
  %v949 = vld [vmem:[%s1 + $0x118] sm:$0xff]
  %v950 = vld [vmem:[%s1 + $0x120] sm:$0xff]
  %v951 = vld [vmem:[%s1 + $0x128] sm:$0xff]
  %v952 = vld [vmem:[%s1 + $0x130] sm:$0xff]
  %v953 = vld [vmem:[%s1 + $0x138] sm:$0xff]
  %v954 = vld [vmem:[%s1 + $0x140] sm:$0xff]
  %v955 = vld [vmem:[%s1 + $0x148] sm:$0xff]
  %v956 = vld [vmem:[%s1 + $0x150] sm:$0xff]
  %v957 = vld [vmem:[%s1 + $0x158] sm:$0xff]
  %v958 = vld [vmem:[%s1 + $0x160] sm:$0xff]
  %v959 = vld [vmem:[%s1 + $0x168] sm:$0xff]
  %v960 = vld [vmem:[%s1 + $0x170] sm:$0xff]
  %v961 = vld [vmem:[%s1 + $0x178] sm:$0xff]
  %962 = vmatpush.msra.mxu0 %v961
  %963 = vmatpush.msra.mxu0 %v960
  %964 = vmatpush.msra.mxu0 %v959
  %965 = vmatpush.msra.mxu0 %v958
  %966 = vmatpush.msra.mxu0 %v957
  %967 = vmatpush.msra.mxu0 %v956
  %968 = vmatpush.msra.mxu0 %v955
  %969 = vmatpush.msra.mxu0 %v954
  %970 = vmatpush.msra.mxu0 %v953
  %971 = vmatpush.msra.mxu0 %v952
  %972 = vmatpush.msra.mxu0 %v951
  %973 = vmatpush.msra.mxu0 %v950
  %974 = vmatpush.msra.mxu0 %v949
  %975 = vmatpush.msra.mxu0 %v948
  %976 = vmatpush.msra.mxu0 %v947
  %977 = vmatpush.msra.mxu0 %v946
  %978 = vmatmul.f32.gmra.mxu0 %v914
  %v979 = vpop.f32.mrf.mxu0
  %v980 = vadd.f32 0.0, %v979
  %981 = vmatmul.f32.gmra.mxu0 %v915
  %v982 = vpop.f32.mrf.mxu0
  %v983 = vadd.f32 0.0, %v982
  %984 = vmatmul.f32.gmra.mxu0 %v916
  %v985 = vpop.f32.mrf.mxu0
  %v986 = vadd.f32 0.0, %v985
  %987 = vmatmul.f32.gmra.mxu0 %v917
  %v988 = vpop.f32.mrf.mxu0
  %v989 = vadd.f32 0.0, %v988
  %990 = vmatmul.f32.gmra.mxu0 %v918
  %v991 = vpop.f32.mrf.mxu0
  %v992 = vadd.f32 0.0, %v991
  %993 = vmatmul.f32.gmra.mxu0 %v919
  %v994 = vpop.f32.mrf.mxu0
  %v995 = vadd.f32 0.0, %v994
  %996 = vmatmul.f32.gmra.mxu0 %v920
  %v997 = vpop.f32.mrf.mxu0
  %v998 = vadd.f32 0.0, %v997
  %999 = vmatmul.f32.gmra.mxu0 %v921
  %v1000 = vpop.f32.mrf.mxu0
  %v1001 = vadd.f32 0.0, %v1000
  %1002 = vmatmul.f32.gmra.mxu0 %v922
  %v1003 = vpop.f32.mrf.mxu0
  %v1004 = vadd.f32 0.0, %v1003
  %1005 = vmatmul.f32.gmra.mxu0 %v923
  %v1006 = vpop.f32.mrf.mxu0
  %v1007 = vadd.f32 0.0, %v1006
  %1008 = vmatmul.f32.gmra.mxu0 %v924
  %v1009 = vpop.f32.mrf.mxu0
  %v1010 = vadd.f32 0.0, %v1009
  %1011 = vmatmul.f32.gmra.mxu0 %v925
  %v1012 = vpop.f32.mrf.mxu0
  %v1013 = vadd.f32 0.0, %v1012
  %1014 = vmatmul.f32.gmra.mxu0 %v926
  %v1015 = vpop.f32.mrf.mxu0
  %v1016 = vadd.f32 0.0, %v1015
  %1017 = vmatmul.f32.gmra.mxu0 %v927
  %v1018 = vpop.f32.mrf.mxu0
  %v1019 = vadd.f32 0.0, %v1018
  %1020 = vmatmul.f32.gmra.mxu0 %v928
  %v1021 = vpop.f32.mrf.mxu0
  %v1022 = vadd.f32 0.0, %v1021
  %1023 = vmatmul.f32.gmra.mxu0 %v929
  %v1024 = vpop.f32.mrf.mxu0
  %v1025 = vadd.f32 0.0, %v1024
  %1026 = vmatmul.f32.gmra.mxu0 %v930
  %v1027 = vpop.f32.mrf.mxu0
  %v1028 = vadd.f32 0.0, %v1027
  %1029 = vmatmul.f32.gmra.mxu0 %v931
  %v1030 = vpop.f32.mrf.mxu0
  %v1031 = vadd.f32 0.0, %v1030
  %1032 = vmatmul.f32.gmra.mxu0 %v932
  %v1033 = vpop.f32.mrf.mxu0
  %v1034 = vadd.f32 0.0, %v1033
  %1035 = vmatmul.f32.gmra.mxu0 %v933
  %v1036 = vpop.f32.mrf.mxu0
  %v1037 = vadd.f32 0.0, %v1036
  %1038 = vmatmul.f32.gmra.mxu0 %v934
  %v1039 = vpop.f32.mrf.mxu0
  %v1040 = vadd.f32 0.0, %v1039
  %1041 = vmatmul.f32.gmra.mxu0 %v935
  %v1042 = vpop.f32.mrf.mxu0
  %v1043 = vadd.f32 0.0, %v1042
  %1044 = vmatmul.f32.gmra.mxu0 %v936
  %v1045 = vpop.f32.mrf.mxu0
  %v1046 = vadd.f32 0.0, %v1045
  %1047 = vmatmul.f32.gmra.mxu0 %v937
  %v1048 = vpop.f32.mrf.mxu0
  %v1049 = vadd.f32 0.0, %v1048
  %1050 = vmatmul.f32.gmra.mxu0 %v938
  %v1051 = vpop.f32.mrf.mxu0
  %v1052 = vadd.f32 0.0, %v1051
  %1053 = vmatmul.f32.gmra.mxu0 %v939
  %v1054 = vpop.f32.mrf.mxu0
  %v1055 = vadd.f32 0.0, %v1054
  %1056 = vmatmul.f32.gmra.mxu0 %v940
  %v1057 = vpop.f32.mrf.mxu0
  %v1058 = vadd.f32 0.0, %v1057
  %1059 = vmatmul.f32.gmra.mxu0 %v941
  %v1060 = vpop.f32.mrf.mxu0
  %v1061 = vadd.f32 0.0, %v1060
  %1062 = vmatmul.f32.gmra.mxu0 %v942
  %v1063 = vpop.f32.mrf.mxu0
  %v1064 = vadd.f32 0.0, %v1063
  %1065 = vmatmul.f32.gmra.mxu0 %v943
  %v1066 = vpop.f32.mrf.mxu0
  %v1067 = vadd.f32 0.0, %v1066
  %1068 = vmatmul.f32.gmra.mxu0 %v944
  %v1069 = vpop.f32.mrf.mxu0
  %v1070 = vadd.f32 0.0, %v1069
  %1071 = vmatmul.f32.gmra.mxu0 %v945
  %v1072 = vpop.f32.mrf.mxu0
  %v1073 = vadd.f32 0.0, %v1072
  %1074 = vdwg.mxu0
  %v1075 = vadd.f32 %v627, %v980
  %v1076 = vadd.f32 %v630, %v983
  %v1077 = vadd.f32 %v633, %v986
  %v1078 = vadd.f32 %v636, %v989
  %v1079 = vadd.f32 %v639, %v992
  %v1080 = vadd.f32 %v642, %v995
  %v1081 = vadd.f32 %v645, %v998
  %v1082 = vadd.f32 %v648, %v1001
  %v1083 = vadd.f32 %v651, %v1004
  %v1084 = vadd.f32 %v654, %v1007
  %v1085 = vadd.f32 %v657, %v1010
  %v1086 = vadd.f32 %v660, %v1013
  %v1087 = vadd.f32 %v663, %v1016
  %v1088 = vadd.f32 %v666, %v1019
  %v1089 = vadd.f32 %v669, %v1022
  %v1090 = vadd.f32 %v672, %v1025
  %v1091 = vadd.f32 %v675, %v1028
  %v1092 = vadd.f32 %v678, %v1031
  %v1093 = vadd.f32 %v681, %v1034
  %v1094 = vadd.f32 %v684, %v1037
  %v1095 = vadd.f32 %v687, %v1040
  %v1096 = vadd.f32 %v690, %v1043
  %v1097 = vadd.f32 %v693, %v1046
  %v1098 = vadd.f32 %v696, %v1049
  %v1099 = vadd.f32 %v699, %v1052
  %v1100 = vadd.f32 %v702, %v1055
  %v1101 = vadd.f32 %v705, %v1058
  %v1102 = vadd.f32 %v708, %v1061
  %v1103 = vadd.f32 %v711, %v1064
  %v1104 = vadd.f32 %v714, %v1067
  %v1105 = vadd.f32 %v717, %v1070
  %v1106 = vadd.f32 %v720, %v1073
  %v1107 = vadd.s32 %v16, 60
  %v1108 = vadd.s32 %v17, 60
  %v1109 = vadd.s32 %v18, 60
  %v1110 = vadd.s32 %v19, 60
  %v1111 = vadd.s32 %v20, 60
  %v1112 = vadd.s32 %v21, 60
  %v1113 = vadd.s32 %v22, 60
  %v1114 = vadd.s32 %v23, 60
  %v1115 = vadd.s32 %v24, 60
  %v1116 = vadd.s32 %v25, 60
  %v1117 = vadd.s32 %v26, 60
  %v1118 = vadd.s32 %v27, 60
  %v1119 = vadd.s32 %v28, 60
  %v1120 = vadd.s32 %v29, 60
  %v1121 = vadd.s32 %v30, 60
  %v1122 = vadd.s32 %v31, 60
  %v1123 = vadd.s32 %v32, 60
  %v1124 = vadd.s32 %v33, 60
  %v1125 = vadd.s32 %v34, 60
  %v1126 = vadd.s32 %v35, 60
  %v1127 = vadd.s32 %v36, 60
  %v1128 = vadd.s32 %v37, 60
  %v1129 = vadd.s32 %v38, 60
  %v1130 = vadd.s32 %v39, 60
  %v1131 = vadd.s32 %v40, 60
  %v1132 = vadd.s32 %v41, 60
  %v1133 = vadd.s32 %v42, 60
  %v1134 = vadd.s32 %v43, 60
  %v1135 = vadd.s32 %v44, 60
  %v1136 = vadd.s32 %v45, 60
  %v1137 = vadd.s32 %v46, 60
  %v1138 = vadd.s32 %v47, 60
  %1139 = vset.pattern.permute.xlu0 3
  %1140 = vperm.xlu0 %1139, %v1107
  %v1141 = vpop.permute.xlu0 %1140
  %1142 = vset.pattern.permute.xlu0 3
  %1143 = vperm.xlu0 %1142, %v1108
  %v1144 = vpop.permute.xlu0 %1143
  %1145 = vset.pattern.permute.xlu0 3
  %1146 = vperm.xlu0 %1145, %v1109
  %v1147 = vpop.permute.xlu0 %1146
  %1148 = vset.pattern.permute.xlu0 3
  %1149 = vperm.xlu0 %1148, %v1110
  %v1150 = vpop.permute.xlu0 %1149
  %1151 = vset.pattern.permute.xlu0 3
  %1152 = vperm.xlu0 %1151, %v1111
  %v1153 = vpop.permute.xlu0 %1152
  %1154 = vset.pattern.permute.xlu0 3
  %1155 = vperm.xlu0 %1154, %v1112
  %v1156 = vpop.permute.xlu0 %1155
  %1157 = vset.pattern.permute.xlu0 3
  %1158 = vperm.xlu0 %1157, %v1113
  %v1159 = vpop.permute.xlu0 %1158
  %1160 = vset.pattern.permute.xlu0 3
  %1161 = vperm.xlu0 %1160, %v1114
  %v1162 = vpop.permute.xlu0 %1161
  %1163 = vset.pattern.permute.xlu0 3
  %1164 = vperm.xlu0 %1163, %v1115
  %v1165 = vpop.permute.xlu0 %1164
  %1166 = vset.pattern.permute.xlu0 3
  %1167 = vperm.xlu0 %1166, %v1116
  %v1168 = vpop.permute.xlu0 %1167
  %1169 = vset.pattern.permute.xlu0 3
  %1170 = vperm.xlu0 %1169, %v1117
  %v1171 = vpop.permute.xlu0 %1170
  %1172 = vset.pattern.permute.xlu0 3
  %1173 = vperm.xlu0 %1172, %v1118
  %v1174 = vpop.permute.xlu0 %1173
  %1175 = vset.pattern.permute.xlu0 3
  %1176 = vperm.xlu0 %1175, %v1119
  %v1177 = vpop.permute.xlu0 %1176
  %1178 = vset.pattern.permute.xlu0 3
  %1179 = vperm.xlu0 %1178, %v1120
  %v1180 = vpop.permute.xlu0 %1179
  %1181 = vset.pattern.permute.xlu0 3
  %1182 = vperm.xlu0 %1181, %v1121
  %v1183 = vpop.permute.xlu0 %1182
  %1184 = vset.pattern.permute.xlu0 3
  %1185 = vperm.xlu0 %1184, %v1122
  %v1186 = vpop.permute.xlu0 %1185
  %1187 = vset.pattern.permute.xlu0 3
  %1188 = vperm.xlu0 %1187, %v1123
  %v1189 = vpop.permute.xlu0 %1188
  %1190 = vset.pattern.permute.xlu0 3
  %1191 = vperm.xlu0 %1190, %v1124
  %v1192 = vpop.permute.xlu0 %1191
  %1193 = vset.pattern.permute.xlu0 3
  %1194 = vperm.xlu0 %1193, %v1125
  %v1195 = vpop.permute.xlu0 %1194
  %1196 = vset.pattern.permute.xlu0 3
  %1197 = vperm.xlu0 %1196, %v1126
  %v1198 = vpop.permute.xlu0 %1197
  %1199 = vset.pattern.permute.xlu0 3
  %1200 = vperm.xlu0 %1199, %v1127
  %v1201 = vpop.permute.xlu0 %1200
  %1202 = vset.pattern.permute.xlu0 3
  %1203 = vperm.xlu0 %1202, %v1128
  %v1204 = vpop.permute.xlu0 %1203
  %1205 = vset.pattern.permute.xlu0 3
  %1206 = vperm.xlu0 %1205, %v1129
  %v1207 = vpop.permute.xlu0 %1206
  %1208 = vset.pattern.permute.xlu0 3
  %1209 = vperm.xlu0 %1208, %v1130
  %v1210 = vpop.permute.xlu0 %1209
  %1211 = vset.pattern.permute.xlu0 3
  %1212 = vperm.xlu0 %1211, %v1131
  %v1213 = vpop.permute.xlu0 %1212
  %1214 = vset.pattern.permute.xlu0 3
  %1215 = vperm.xlu0 %1214, %v1132
  %v1216 = vpop.permute.xlu0 %1215
  %1217 = vset.pattern.permute.xlu0 3
  %1218 = vperm.xlu0 %1217, %v1133
  %v1219 = vpop.permute.xlu0 %1218
  %1220 = vset.pattern.permute.xlu0 3
  %1221 = vperm.xlu0 %1220, %v1134
  %v1222 = vpop.permute.xlu0 %1221
  %1223 = vset.pattern.permute.xlu0 3
  %1224 = vperm.xlu0 %1223, %v1135
  %v1225 = vpop.permute.xlu0 %1224
  %1226 = vset.pattern.permute.xlu0 3
  %1227 = vperm.xlu0 %1226, %v1136
  %v1228 = vpop.permute.xlu0 %1227
  %1229 = vset.pattern.permute.xlu0 3
  %1230 = vperm.xlu0 %1229, %v1137
  %v1231 = vpop.permute.xlu0 %1230
  %1232 = vset.pattern.permute.xlu0 3
  %1233 = vperm.xlu0 %1232, %v1138
  %v1234 = vpop.permute.xlu0 %1233
  %vm1235 = vcmp.eq.s32.totalorder %v15, %v1141
  %vm1236 = vcmp.eq.s32.totalorder %v15, %v1144
  %vm1237 = vcmp.eq.s32.totalorder %v15, %v1147
  %vm1238 = vcmp.eq.s32.totalorder %v15, %v1150
  %vm1239 = vcmp.eq.s32.totalorder %v15, %v1153
  %vm1240 = vcmp.eq.s32.totalorder %v15, %v1156
  %vm1241 = vcmp.eq.s32.totalorder %v15, %v1159
  %vm1242 = vcmp.eq.s32.totalorder %v15, %v1162
  %vm1243 = vcmp.eq.s32.totalorder %v15, %v1165
  %vm1244 = vcmp.eq.s32.totalorder %v15, %v1168
  %vm1245 = vcmp.eq.s32.totalorder %v15, %v1171
  %vm1246 = vcmp.eq.s32.totalorder %v15, %v1174
  %vm1247 = vcmp.eq.s32.totalorder %v15, %v1177
  %vm1248 = vcmp.eq.s32.totalorder %v15, %v1180
  %vm1249 = vcmp.eq.s32.totalorder %v15, %v1183
  %vm1250 = vcmp.eq.s32.totalorder %v15, %v1186
  %vm1251 = vcmp.eq.s32.totalorder %v15, %v1189
  %vm1252 = vcmp.eq.s32.totalorder %v15, %v1192
  %vm1253 = vcmp.eq.s32.totalorder %v15, %v1195
  %vm1254 = vcmp.eq.s32.totalorder %v15, %v1198
  %vm1255 = vcmp.eq.s32.totalorder %v15, %v1201
  %vm1256 = vcmp.eq.s32.totalorder %v15, %v1204
  %vm1257 = vcmp.eq.s32.totalorder %v15, %v1207
  %vm1258 = vcmp.eq.s32.totalorder %v15, %v1210
  %vm1259 = vcmp.eq.s32.totalorder %v15, %v1213
  %vm1260 = vcmp.eq.s32.totalorder %v15, %v1216
  %vm1261 = vcmp.eq.s32.totalorder %v15, %v1219
  %vm1262 = vcmp.eq.s32.totalorder %v15, %v1222
  %vm1263 = vcmp.eq.s32.totalorder %v15, %v1225
  %vm1264 = vcmp.eq.s32.totalorder %v15, %v1228
  %vm1265 = vcmp.eq.s32.totalorder %v15, %v1231
  %vm1266 = vcmp.eq.s32.totalorder %v15, %v1234
  %v1267 = vsel %vm1235, 1, 0
  %v1268 = vsel %vm1236, 1, 0
  %v1269 = vsel %vm1237, 1, 0
  %v1270 = vsel %vm1238, 1, 0
  %v1271 = vsel %vm1239, 1, 0
  %v1272 = vsel %vm1240, 1, 0
  %v1273 = vsel %vm1241, 1, 0
  %v1274 = vsel %vm1242, 1, 0
  %v1275 = vsel %vm1243, 1, 0
  %v1276 = vsel %vm1244, 1, 0
  %v1277 = vsel %vm1245, 1, 0
  %v1278 = vsel %vm1246, 1, 0
  %v1279 = vsel %vm1247, 1, 0
  %v1280 = vsel %vm1248, 1, 0
  %v1281 = vsel %vm1249, 1, 0
  %v1282 = vsel %vm1250, 1, 0
  %v1283 = vsel %vm1251, 1, 0
  %v1284 = vsel %vm1252, 1, 0
  %v1285 = vsel %vm1253, 1, 0
  %v1286 = vsel %vm1254, 1, 0
  %v1287 = vsel %vm1255, 1, 0
  %v1288 = vsel %vm1256, 1, 0
  %v1289 = vsel %vm1257, 1, 0
  %v1290 = vsel %vm1258, 1, 0
  %v1291 = vsel %vm1259, 1, 0
  %v1292 = vsel %vm1260, 1, 0
  %v1293 = vsel %vm1261, 1, 0
  %v1294 = vsel %vm1262, 1, 0
  %v1295 = vsel %vm1263, 1, 0
  %v1296 = vsel %vm1264, 1, 0
  %v1297 = vsel %vm1265, 1, 0
  %v1298 = vsel %vm1266, 1, 0
  %v1299 = vcvt.s32.f32 %v1267
  %v1300 = vcvt.s32.f32 %v1268
  %v1301 = vcvt.s32.f32 %v1269
  %v1302 = vcvt.s32.f32 %v1270
  %v1303 = vcvt.s32.f32 %v1271
  %v1304 = vcvt.s32.f32 %v1272
  %v1305 = vcvt.s32.f32 %v1273
  %v1306 = vcvt.s32.f32 %v1274
  %v1307 = vcvt.s32.f32 %v1275
  %v1308 = vcvt.s32.f32 %v1276
  %v1309 = vcvt.s32.f32 %v1277
  %v1310 = vcvt.s32.f32 %v1278
  %v1311 = vcvt.s32.f32 %v1279
  %v1312 = vcvt.s32.f32 %v1280
  %v1313 = vcvt.s32.f32 %v1281
  %v1314 = vcvt.s32.f32 %v1282
  %v1315 = vcvt.s32.f32 %v1283
  %v1316 = vcvt.s32.f32 %v1284
  %v1317 = vcvt.s32.f32 %v1285
  %v1318 = vcvt.s32.f32 %v1286
  %v1319 = vcvt.s32.f32 %v1287
  %v1320 = vcvt.s32.f32 %v1288
  %v1321 = vcvt.s32.f32 %v1289
  %v1322 = vcvt.s32.f32 %v1290
  %v1323 = vcvt.s32.f32 %v1291
  %v1324 = vcvt.s32.f32 %v1292
  %v1325 = vcvt.s32.f32 %v1293
  %v1326 = vcvt.s32.f32 %v1294
  %v1327 = vcvt.s32.f32 %v1295
  %v1328 = vcvt.s32.f32 %v1296
  %v1329 = vcvt.s32.f32 %v1297
  %v1330 = vcvt.s32.f32 %v1298
  %v1331 = vld [vmem:[%s1 + $0x180] sm:$0xff]
  %v1332 = vld [vmem:[%s1 + $0x188] sm:$0xff]
  %v1333 = vld [vmem:[%s1 + $0x190] sm:$0xff]
  %v1334 = vld [vmem:[%s1 + $0x198] sm:$0xff]
  %v1335 = vld [vmem:[%s1 + $0x1a0] sm:$0xff]
  %v1336 = vld [vmem:[%s1 + $0x1a8] sm:$0xff]
  %v1337 = vld [vmem:[%s1 + $0x1b0] sm:$0xff]
  %v1338 = vld [vmem:[%s1 + $0x1b8] sm:$0xff]
  %v1339 = vld [vmem:[%s1 + $0x1c0] sm:$0xff]
  %v1340 = vld [vmem:[%s1 + $0x1c8] sm:$0xff]
  %v1341 = vld [vmem:[%s1 + $0x1d0] sm:$0xff]
  %v1342 = vld [vmem:[%s1 + $0x1d8] sm:$0xff]
  %v1343 = vld [vmem:[%s1 + $0x1e0] sm:$0xff]
  %v1344 = vld [vmem:[%s1 + $0x1e8] sm:$0xff]
  %v1345 = vld [vmem:[%s1 + $0x1f0] sm:$0xff]
  %v1346 = vld [vmem:[%s1 + $0x1f8] sm:$0xff]
  %1347 = vmatpush.msra.mxu0 %v1346
  %1348 = vmatpush.msra.mxu0 %v1345
  %1349 = vmatpush.msra.mxu0 %v1344
  %1350 = vmatpush.msra.mxu0 %v1343
  %1351 = vmatpush.msra.mxu0 %v1342
  %1352 = vmatpush.msra.mxu0 %v1341
  %1353 = vmatpush.msra.mxu0 %v1340
  %1354 = vmatpush.msra.mxu0 %v1339
  %1355 = vmatpush.msra.mxu0 %v1338
  %1356 = vmatpush.msra.mxu0 %v1337
  %1357 = vmatpush.msra.mxu0 %v1336
  %1358 = vmatpush.msra.mxu0 %v1335
  %1359 = vmatpush.msra.mxu0 %v1334
  %1360 = vmatpush.msra.mxu0 %v1333
  %1361 = vmatpush.msra.mxu0 %v1332
  %1362 = vmatpush.msra.mxu0 %v1331
  %1363 = vmatmul.f32.gmra.mxu0 %v1299
  %v1364 = vpop.f32.mrf.mxu0
  %v1365 = vadd.f32 0.0, %v1364
  %1366 = vmatmul.f32.gmra.mxu0 %v1300
  %v1367 = vpop.f32.mrf.mxu0
  %v1368 = vadd.f32 0.0, %v1367
  %1369 = vmatmul.f32.gmra.mxu0 %v1301
  %v1370 = vpop.f32.mrf.mxu0
  %v1371 = vadd.f32 0.0, %v1370
  %1372 = vmatmul.f32.gmra.mxu0 %v1302
  %v1373 = vpop.f32.mrf.mxu0
  %v1374 = vadd.f32 0.0, %v1373
  %1375 = vmatmul.f32.gmra.mxu0 %v1303
  %v1376 = vpop.f32.mrf.mxu0
  %v1377 = vadd.f32 0.0, %v1376
  %1378 = vmatmul.f32.gmra.mxu0 %v1304
  %v1379 = vpop.f32.mrf.mxu0
  %v1380 = vadd.f32 0.0, %v1379
  %1381 = vmatmul.f32.gmra.mxu0 %v1305
  %v1382 = vpop.f32.mrf.mxu0
  %v1383 = vadd.f32 0.0, %v1382
  %1384 = vmatmul.f32.gmra.mxu0 %v1306
  %v1385 = vpop.f32.mrf.mxu0
  %v1386 = vadd.f32 0.0, %v1385
  %1387 = vmatmul.f32.gmra.mxu0 %v1307
  %v1388 = vpop.f32.mrf.mxu0
  %v1389 = vadd.f32 0.0, %v1388
  %1390 = vmatmul.f32.gmra.mxu0 %v1308
  %v1391 = vpop.f32.mrf.mxu0
  %v1392 = vadd.f32 0.0, %v1391
  %1393 = vmatmul.f32.gmra.mxu0 %v1309
  %v1394 = vpop.f32.mrf.mxu0
  %v1395 = vadd.f32 0.0, %v1394
  %1396 = vmatmul.f32.gmra.mxu0 %v1310
  %v1397 = vpop.f32.mrf.mxu0
  %v1398 = vadd.f32 0.0, %v1397
  %1399 = vmatmul.f32.gmra.mxu0 %v1311
  %v1400 = vpop.f32.mrf.mxu0
  %v1401 = vadd.f32 0.0, %v1400
  %1402 = vmatmul.f32.gmra.mxu0 %v1312
  %v1403 = vpop.f32.mrf.mxu0
  %v1404 = vadd.f32 0.0, %v1403
  %1405 = vmatmul.f32.gmra.mxu0 %v1313
  %v1406 = vpop.f32.mrf.mxu0
  %v1407 = vadd.f32 0.0, %v1406
  %1408 = vmatmul.f32.gmra.mxu0 %v1314
  %v1409 = vpop.f32.mrf.mxu0
  %v1410 = vadd.f32 0.0, %v1409
  %1411 = vmatmul.f32.gmra.mxu0 %v1315
  %v1412 = vpop.f32.mrf.mxu0
  %v1413 = vadd.f32 0.0, %v1412
  %1414 = vmatmul.f32.gmra.mxu0 %v1316
  %v1415 = vpop.f32.mrf.mxu0
  %v1416 = vadd.f32 0.0, %v1415
  %1417 = vmatmul.f32.gmra.mxu0 %v1317
  %v1418 = vpop.f32.mrf.mxu0
  %v1419 = vadd.f32 0.0, %v1418
  %1420 = vmatmul.f32.gmra.mxu0 %v1318
  %v1421 = vpop.f32.mrf.mxu0
  %v1422 = vadd.f32 0.0, %v1421
  %1423 = vmatmul.f32.gmra.mxu0 %v1319
  %v1424 = vpop.f32.mrf.mxu0
  %v1425 = vadd.f32 0.0, %v1424
  %1426 = vmatmul.f32.gmra.mxu0 %v1320
  %v1427 = vpop.f32.mrf.mxu0
  %v1428 = vadd.f32 0.0, %v1427
  %1429 = vmatmul.f32.gmra.mxu0 %v1321
  %v1430 = vpop.f32.mrf.mxu0
  %v1431 = vadd.f32 0.0, %v1430
  %1432 = vmatmul.f32.gmra.mxu0 %v1322
  %v1433 = vpop.f32.mrf.mxu0
  %v1434 = vadd.f32 0.0, %v1433
  %1435 = vmatmul.f32.gmra.mxu0 %v1323
  %v1436 = vpop.f32.mrf.mxu0
  %v1437 = vadd.f32 0.0, %v1436
  %1438 = vmatmul.f32.gmra.mxu0 %v1324
  %v1439 = vpop.f32.mrf.mxu0
  %v1440 = vadd.f32 0.0, %v1439
  %1441 = vmatmul.f32.gmra.mxu0 %v1325
  %v1442 = vpop.f32.mrf.mxu0
  %v1443 = vadd.f32 0.0, %v1442
  %1444 = vmatmul.f32.gmra.mxu0 %v1326
  %v1445 = vpop.f32.mrf.mxu0
  %v1446 = vadd.f32 0.0, %v1445
  %1447 = vmatmul.f32.gmra.mxu0 %v1327
  %v1448 = vpop.f32.mrf.mxu0
  %v1449 = vadd.f32 0.0, %v1448
  %1450 = vmatmul.f32.gmra.mxu0 %v1328
  %v1451 = vpop.f32.mrf.mxu0
  %v1452 = vadd.f32 0.0, %v1451
  %1453 = vmatmul.f32.gmra.mxu0 %v1329
  %v1454 = vpop.f32.mrf.mxu0
  %v1455 = vadd.f32 0.0, %v1454
  %1456 = vmatmul.f32.gmra.mxu0 %v1330
  %v1457 = vpop.f32.mrf.mxu0
  %v1458 = vadd.f32 0.0, %v1457
  %1459 = vdwg.mxu0
  %v1460 = vadd.f32 %v1075, %v1365
  %v1461 = vadd.f32 %v1076, %v1368
  %v1462 = vadd.f32 %v1077, %v1371
  %v1463 = vadd.f32 %v1078, %v1374
  %v1464 = vadd.f32 %v1079, %v1377
  %v1465 = vadd.f32 %v1080, %v1380
  %v1466 = vadd.f32 %v1081, %v1383
  %v1467 = vadd.f32 %v1082, %v1386
  %v1468 = vadd.f32 %v1083, %v1389
  %v1469 = vadd.f32 %v1084, %v1392
  %v1470 = vadd.f32 %v1085, %v1395
  %v1471 = vadd.f32 %v1086, %v1398
  %v1472 = vadd.f32 %v1087, %v1401
  %v1473 = vadd.f32 %v1088, %v1404
  %v1474 = vadd.f32 %v1089, %v1407
  %v1475 = vadd.f32 %v1090, %v1410
  %v1476 = vadd.f32 %v1091, %v1413
  %v1477 = vadd.f32 %v1092, %v1416
  %v1478 = vadd.f32 %v1093, %v1419
  %v1479 = vadd.f32 %v1094, %v1422
  %v1480 = vadd.f32 %v1095, %v1425
  %v1481 = vadd.f32 %v1096, %v1428
  %v1482 = vadd.f32 %v1097, %v1431
  %v1483 = vadd.f32 %v1098, %v1434
  %v1484 = vadd.f32 %v1099, %v1437
  %v1485 = vadd.f32 %v1100, %v1440
  %v1486 = vadd.f32 %v1101, %v1443
  %v1487 = vadd.f32 %v1102, %v1446
  %v1488 = vadd.f32 %v1103, %v1449
  %v1489 = vadd.f32 %v1104, %v1452
  %v1490 = vadd.f32 %v1105, %v1455
  %v1491 = vadd.f32 %v1106, %v1458
  %v1492 = vld [vmem:[%s2] sm:$0xff]
  %v1493 = vld [vmem:[%s2 + $0x8] sm:$0xff]
  %v1494 = vld [vmem:[%s2 + $0x10] sm:$0xff]
  %v1495 = vld [vmem:[%s2 + $0x18] sm:$0xff]
  %v1496 = vld [vmem:[%s2 + $0x20] sm:$0xff]
  %v1497 = vld [vmem:[%s2 + $0x28] sm:$0xff]
  %v1498 = vld [vmem:[%s2 + $0x30] sm:$0xff]
  %v1499 = vld [vmem:[%s2 + $0x38] sm:$0xff]
  %v1500 = vld [vmem:[%s2 + $0x40] sm:$0xff]
  %v1501 = vld [vmem:[%s2 + $0x48] sm:$0xff]
  %v1502 = vld [vmem:[%s2 + $0x50] sm:$0xff]
  %v1503 = vld [vmem:[%s2 + $0x58] sm:$0xff]
  %v1504 = vld [vmem:[%s2 + $0x60] sm:$0xff]
  %v1505 = vld [vmem:[%s2 + $0x68] sm:$0xff]
  %v1506 = vld [vmem:[%s2 + $0x70] sm:$0xff]
  %v1507 = vld [vmem:[%s2 + $0x78] sm:$0xff]
  %vm1508 = vcmask 523264
  %v1510 = vsel %vm1508, %v1460, 0
  %v1513 = vsel %vm1508, %v1461, 0
  %v1516 = vsel %vm1508, %v1462, 0
  %v1519 = vsel %vm1508, %v1463, 0
  %v1522 = vsel %vm1508, %v1464, 0
  %v1525 = vsel %vm1508, %v1465, 0
  %v1528 = vsel %vm1508, %v1466, 0
  %v1531 = vsel %vm1508, %v1467, 0
  %v1534 = vsel %vm1508, %v1468, 0
  %v1537 = vsel %vm1508, %v1469, 0
  %v1540 = vsel %vm1508, %v1470, 0
  %v1543 = vsel %vm1508, %v1471, 0
  %v1546 = vsel %vm1508, %v1472, 0
  %v1549 = vsel %vm1508, %v1473, 0
  %v1552 = vsel %vm1508, %v1474, 0
  %v1555 = vsel %vm1508, %v1475, 0
  %v1558 = vsel %vm1508, %v1476, 0
  %v1561 = vsel %vm1508, %v1477, 0
  %v1564 = vsel %vm1508, %v1478, 0
  %v1567 = vsel %vm1508, %v1479, 0
  %v1570 = vsel %vm1508, %v1480, 0
  %v1573 = vsel %vm1508, %v1481, 0
  %v1576 = vsel %vm1508, %v1482, 0
  %v1579 = vsel %vm1508, %v1483, 0
  %v1582 = vsel %vm1508, %v1484, 0
  %v1585 = vsel %vm1508, %v1485, 0
  %v1588 = vsel %vm1508, %v1486, 0
  %v1591 = vsel %vm1508, %v1487, 0
  %v1594 = vsel %vm1508, %v1488, 0
  %v1597 = vsel %vm1508, %v1489, 0
  %v1600 = vsel %vm1508, %v1490, 0
  %v1603 = vsel %vm1508, %v1491, 0
  %1605 = vmatpush.msra.mxu0 0.0
  %1606 = vmatpush.msra.mxu0 0.0
  %1607 = vmatpush.msra.mxu0 0.0
  %1608 = vmatpush.msra.mxu0 0.0
  %1609 = vmatpush.msra.mxu0 0.0
  %1610 = vmatpush.msra.mxu0 0.0
  %1611 = vmatpush.msra.mxu0 0.0
  %1612 = vmatpush.msra.mxu0 0.0
  %1613 = vmatpush.msra.mxu0 %v1506
  %1614 = vmatpush.msra.mxu0 %v1504
  %1615 = vmatpush.msra.mxu0 %v1502
  %1616 = vmatpush.msra.mxu0 %v1500
  %1617 = vmatpush.msra.mxu0 %v1498
  %1618 = vmatpush.msra.mxu0 %v1496
  %1619 = vmatpush.msra.mxu0 %v1494
  %1620 = vmatpush.msra.mxu0 %v1492
  %1621 = vmatmul.f32.gmra.mxu0 %v1510
  %v1622 = vpop.f32.mrf.mxu0
  %v1623 = vadd.f32 0.0, %v1622
  %1624 = vmatmul.f32.gmra.mxu0 %v1513
  %v1625 = vpop.f32.mrf.mxu0
  %v1626 = vadd.f32 0.0, %v1625
  %1627 = vmatmul.f32.gmra.mxu0 %v1516
  %v1628 = vpop.f32.mrf.mxu0
  %v1629 = vadd.f32 0.0, %v1628
  %1630 = vmatmul.f32.gmra.mxu0 %v1519
  %v1631 = vpop.f32.mrf.mxu0
  %v1632 = vadd.f32 0.0, %v1631
  %1633 = vmatmul.f32.gmra.mxu0 %v1522
  %v1634 = vpop.f32.mrf.mxu0
  %v1635 = vadd.f32 0.0, %v1634
  %1636 = vmatmul.f32.gmra.mxu0 %v1525
  %v1637 = vpop.f32.mrf.mxu0
  %v1638 = vadd.f32 0.0, %v1637
  %1639 = vmatmul.f32.gmra.mxu0 %v1528
  %v1640 = vpop.f32.mrf.mxu0
  %v1641 = vadd.f32 0.0, %v1640
  %1642 = vmatmul.f32.gmra.mxu0 %v1531
  %v1643 = vpop.f32.mrf.mxu0
  %v1644 = vadd.f32 0.0, %v1643
  %1645 = vmatmul.f32.gmra.mxu0 %v1534
  %v1646 = vpop.f32.mrf.mxu0
  %v1647 = vadd.f32 0.0, %v1646
  %1648 = vmatmul.f32.gmra.mxu0 %v1537
  %v1649 = vpop.f32.mrf.mxu0
  %v1650 = vadd.f32 0.0, %v1649
  %1651 = vmatmul.f32.gmra.mxu0 %v1540
  %v1652 = vpop.f32.mrf.mxu0
  %v1653 = vadd.f32 0.0, %v1652
  %1654 = vmatmul.f32.gmra.mxu0 %v1543
  %v1655 = vpop.f32.mrf.mxu0
  %v1656 = vadd.f32 0.0, %v1655
  %1657 = vmatmul.f32.gmra.mxu0 %v1546
  %v1658 = vpop.f32.mrf.mxu0
  %v1659 = vadd.f32 0.0, %v1658
  %1660 = vmatmul.f32.gmra.mxu0 %v1549
  %v1661 = vpop.f32.mrf.mxu0
  %v1662 = vadd.f32 0.0, %v1661
  %1663 = vmatmul.f32.gmra.mxu0 %v1552
  %v1664 = vpop.f32.mrf.mxu0
  %v1665 = vadd.f32 0.0, %v1664
  %1666 = vmatmul.f32.gmra.mxu0 %v1555
  %v1667 = vpop.f32.mrf.mxu0
  %v1668 = vadd.f32 0.0, %v1667
  %1669 = vmatmul.f32.gmra.mxu0 %v1558
  %v1670 = vpop.f32.mrf.mxu0
  %v1671 = vadd.f32 0.0, %v1670
  %1672 = vmatmul.f32.gmra.mxu0 %v1561
  %v1673 = vpop.f32.mrf.mxu0
  %v1674 = vadd.f32 0.0, %v1673
  %1675 = vmatmul.f32.gmra.mxu0 %v1564
  %v1676 = vpop.f32.mrf.mxu0
  %v1677 = vadd.f32 0.0, %v1676
  %1678 = vmatmul.f32.gmra.mxu0 %v1567
  %v1679 = vpop.f32.mrf.mxu0
  %v1680 = vadd.f32 0.0, %v1679
  %1681 = vmatmul.f32.gmra.mxu0 %v1570
  %v1682 = vpop.f32.mrf.mxu0
  %v1683 = vadd.f32 0.0, %v1682
  %1684 = vmatmul.f32.gmra.mxu0 %v1573
  %v1685 = vpop.f32.mrf.mxu0
  %v1686 = vadd.f32 0.0, %v1685
  %1687 = vmatmul.f32.gmra.mxu0 %v1576
  %v1688 = vpop.f32.mrf.mxu0
  %v1689 = vadd.f32 0.0, %v1688
  %1690 = vmatmul.f32.gmra.mxu0 %v1579
  %v1691 = vpop.f32.mrf.mxu0
  %v1692 = vadd.f32 0.0, %v1691
  %1693 = vmatmul.f32.gmra.mxu0 %v1582
  %v1694 = vpop.f32.mrf.mxu0
  %v1695 = vadd.f32 0.0, %v1694
  %1696 = vmatmul.f32.gmra.mxu0 %v1585
  %v1697 = vpop.f32.mrf.mxu0
  %v1698 = vadd.f32 0.0, %v1697
  %1699 = vmatmul.f32.gmra.mxu0 %v1588
  %v1700 = vpop.f32.mrf.mxu0
  %v1701 = vadd.f32 0.0, %v1700
  %1702 = vmatmul.f32.gmra.mxu0 %v1591
  %v1703 = vpop.f32.mrf.mxu0
  %v1704 = vadd.f32 0.0, %v1703
  %1705 = vmatmul.f32.gmra.mxu0 %v1594
  %v1706 = vpop.f32.mrf.mxu0
  %v1707 = vadd.f32 0.0, %v1706
  %1708 = vmatmul.f32.gmra.mxu0 %v1597
  %v1709 = vpop.f32.mrf.mxu0
  %v1710 = vadd.f32 0.0, %v1709
  %1711 = vmatmul.f32.gmra.mxu0 %v1600
  %v1712 = vpop.f32.mrf.mxu0
  %v1713 = vadd.f32 0.0, %v1712
  %1714 = vmatmul.f32.gmra.mxu0 %v1603
  %v1715 = vpop.f32.mrf.mxu0
  %v1716 = vadd.f32 0.0, %v1715
  %1717 = vdwg.mxu0
  %1718 = vmatpush.msra.mxu0 0.0
  %1719 = vmatpush.msra.mxu0 0.0
  %1720 = vmatpush.msra.mxu0 0.0
  %1721 = vmatpush.msra.mxu0 0.0
  %1722 = vmatpush.msra.mxu0 0.0
  %1723 = vmatpush.msra.mxu0 0.0
  %1724 = vmatpush.msra.mxu0 0.0
  %1725 = vmatpush.msra.mxu0 0.0
  %1726 = vmatpush.msra.mxu0 %v1507
  %1727 = vmatpush.msra.mxu0 %v1505
  %1728 = vmatpush.msra.mxu0 %v1503
  %1729 = vmatpush.msra.mxu0 %v1501
  %1730 = vmatpush.msra.mxu0 %v1499
  %1731 = vmatpush.msra.mxu0 %v1497
  %1732 = vmatpush.msra.mxu0 %v1495
  %1733 = vmatpush.msra.mxu0 %v1493
  %1734 = vmatmul.f32.gmra.mxu0 %v1510
  %v1735 = vpop.f32.mrf.mxu0
  %v1736 = vadd.f32 0.0, %v1735
  %1737 = vmatmul.f32.gmra.mxu0 %v1513
  %v1738 = vpop.f32.mrf.mxu0
  %v1739 = vadd.f32 0.0, %v1738
  %1740 = vmatmul.f32.gmra.mxu0 %v1516
  %v1741 = vpop.f32.mrf.mxu0
  %v1742 = vadd.f32 0.0, %v1741
  %1743 = vmatmul.f32.gmra.mxu0 %v1519
  %v1744 = vpop.f32.mrf.mxu0
  %v1745 = vadd.f32 0.0, %v1744
  %1746 = vmatmul.f32.gmra.mxu0 %v1522
  %v1747 = vpop.f32.mrf.mxu0
  %v1748 = vadd.f32 0.0, %v1747
  %1749 = vmatmul.f32.gmra.mxu0 %v1525
  %v1750 = vpop.f32.mrf.mxu0
  %v1751 = vadd.f32 0.0, %v1750
  %1752 = vmatmul.f32.gmra.mxu0 %v1528
  %v1753 = vpop.f32.mrf.mxu0
  %v1754 = vadd.f32 0.0, %v1753
  %1755 = vmatmul.f32.gmra.mxu0 %v1531
  %v1756 = vpop.f32.mrf.mxu0
  %v1757 = vadd.f32 0.0, %v1756
  %1758 = vmatmul.f32.gmra.mxu0 %v1534
  %v1759 = vpop.f32.mrf.mxu0
  %v1760 = vadd.f32 0.0, %v1759
  %1761 = vmatmul.f32.gmra.mxu0 %v1537
  %v1762 = vpop.f32.mrf.mxu0
  %v1763 = vadd.f32 0.0, %v1762
  %1764 = vmatmul.f32.gmra.mxu0 %v1540
  %v1765 = vpop.f32.mrf.mxu0
  %v1766 = vadd.f32 0.0, %v1765
  %1767 = vmatmul.f32.gmra.mxu0 %v1543
  %v1768 = vpop.f32.mrf.mxu0
  %v1769 = vadd.f32 0.0, %v1768
  %1770 = vmatmul.f32.gmra.mxu0 %v1546
  %v1771 = vpop.f32.mrf.mxu0
  %v1772 = vadd.f32 0.0, %v1771
  %1773 = vmatmul.f32.gmra.mxu0 %v1549
  %v1774 = vpop.f32.mrf.mxu0
  %v1775 = vadd.f32 0.0, %v1774
  %1776 = vmatmul.f32.gmra.mxu0 %v1552
  %v1777 = vpop.f32.mrf.mxu0
  %v1778 = vadd.f32 0.0, %v1777
  %1779 = vmatmul.f32.gmra.mxu0 %v1555
  %v1780 = vpop.f32.mrf.mxu0
  %v1781 = vadd.f32 0.0, %v1780
  %1782 = vmatmul.f32.gmra.mxu0 %v1558
  %v1783 = vpop.f32.mrf.mxu0
  %v1784 = vadd.f32 0.0, %v1783
  %1785 = vmatmul.f32.gmra.mxu0 %v1561
  %v1786 = vpop.f32.mrf.mxu0
  %v1787 = vadd.f32 0.0, %v1786
  %1788 = vmatmul.f32.gmra.mxu0 %v1564
  %v1789 = vpop.f32.mrf.mxu0
  %v1790 = vadd.f32 0.0, %v1789
  %1791 = vmatmul.f32.gmra.mxu0 %v1567
  %v1792 = vpop.f32.mrf.mxu0
  %v1793 = vadd.f32 0.0, %v1792
  %1794 = vmatmul.f32.gmra.mxu0 %v1570
  %v1795 = vpop.f32.mrf.mxu0
  %v1796 = vadd.f32 0.0, %v1795
  %1797 = vmatmul.f32.gmra.mxu0 %v1573
  %v1798 = vpop.f32.mrf.mxu0
  %v1799 = vadd.f32 0.0, %v1798
  %1800 = vmatmul.f32.gmra.mxu0 %v1576
  %v1801 = vpop.f32.mrf.mxu0
  %v1802 = vadd.f32 0.0, %v1801
  %1803 = vmatmul.f32.gmra.mxu0 %v1579
  %v1804 = vpop.f32.mrf.mxu0
  %v1805 = vadd.f32 0.0, %v1804
  %1806 = vmatmul.f32.gmra.mxu0 %v1582
  %v1807 = vpop.f32.mrf.mxu0
  %v1808 = vadd.f32 0.0, %v1807
  %1809 = vmatmul.f32.gmra.mxu0 %v1585
  %v1810 = vpop.f32.mrf.mxu0
  %v1811 = vadd.f32 0.0, %v1810
  %1812 = vmatmul.f32.gmra.mxu0 %v1588
  %v1813 = vpop.f32.mrf.mxu0
  %v1814 = vadd.f32 0.0, %v1813
  %1815 = vmatmul.f32.gmra.mxu0 %v1591
  %v1816 = vpop.f32.mrf.mxu0
  %v1817 = vadd.f32 0.0, %v1816
  %1818 = vmatmul.f32.gmra.mxu0 %v1594
  %v1819 = vpop.f32.mrf.mxu0
  %v1820 = vadd.f32 0.0, %v1819
  %1821 = vmatmul.f32.gmra.mxu0 %v1597
  %v1822 = vpop.f32.mrf.mxu0
  %v1823 = vadd.f32 0.0, %v1822
  %1824 = vmatmul.f32.gmra.mxu0 %v1600
  %v1825 = vpop.f32.mrf.mxu0
  %v1826 = vadd.f32 0.0, %v1825
  %1827 = vmatmul.f32.gmra.mxu0 %v1603
  %v1828 = vpop.f32.mrf.mxu0
  %v1829 = vadd.f32 0.0, %v1828
  %1830 = vdwg.mxu0
  %v1831 = vmul.f32 %v1623, %v1736
  %v1832 = vmul.f32 %v1626, %v1739
  %v1833 = vmul.f32 %v1629, %v1742
  %v1834 = vmul.f32 %v1632, %v1745
  %v1835 = vmul.f32 %v1635, %v1748
  %v1836 = vmul.f32 %v1638, %v1751
  %v1837 = vmul.f32 %v1641, %v1754
  %v1838 = vmul.f32 %v1644, %v1757
  %v1839 = vmul.f32 %v1647, %v1760
  %v1840 = vmul.f32 %v1650, %v1763
  %v1841 = vmul.f32 %v1653, %v1766
  %v1842 = vmul.f32 %v1656, %v1769
  %v1843 = vmul.f32 %v1659, %v1772
  %v1844 = vmul.f32 %v1662, %v1775
  %v1845 = vmul.f32 %v1665, %v1778
  %v1846 = vmul.f32 %v1668, %v1781
  %v1847 = vmul.f32 %v1671, %v1784
  %v1848 = vmul.f32 %v1674, %v1787
  %v1849 = vmul.f32 %v1677, %v1790
  %v1850 = vmul.f32 %v1680, %v1793
  %v1851 = vmul.f32 %v1683, %v1796
  %v1852 = vmul.f32 %v1686, %v1799
  %v1853 = vmul.f32 %v1689, %v1802
  %v1854 = vmul.f32 %v1692, %v1805
  %v1855 = vmul.f32 %v1695, %v1808
  %v1856 = vmul.f32 %v1698, %v1811
  %v1857 = vmul.f32 %v1701, %v1814
  %v1858 = vmul.f32 %v1704, %v1817
  %v1859 = vmul.f32 %v1707, %v1820
  %v1860 = vmul.f32 %v1710, %v1823
  %v1861 = vmul.f32 %v1713, %v1826
  %v1862 = vmul.f32 %v1716, %v1829
  %v1863 = vld [vmem:[%s1 + $0x280] sm:$0xff]
  %v1864 = vld [vmem:[%s1 + $0x288] sm:$0xff]
  %v1865 = vld [vmem:[%s1 + $0x290] sm:$0xff]
  %v1866 = vld [vmem:[%s1 + $0x298] sm:$0xff]
  %v1867 = vld [vmem:[%s1 + $0x2a0] sm:$0xff]
  %v1868 = vld [vmem:[%s1 + $0x2a8] sm:$0xff]
  %v1869 = vld [vmem:[%s1 + $0x2b0] sm:$0xff]
  %v1870 = vld [vmem:[%s1 + $0x2b8] sm:$0xff]
  %v1871 = vld [vmem:[%s1 + $0x200] sm:$0xff]
  %v1872 = vld [vmem:[%s1 + $0x208] sm:$0xff]
  %v1873 = vld [vmem:[%s1 + $0x210] sm:$0xff]
  %v1874 = vld [vmem:[%s1 + $0x218] sm:$0xff]
  %v1875 = vld [vmem:[%s1 + $0x220] sm:$0xff]
  %v1876 = vld [vmem:[%s1 + $0x228] sm:$0xff]
  %v1877 = vld [vmem:[%s1 + $0x230] sm:$0xff]
  %v1878 = vld [vmem:[%s1 + $0x238] sm:$0xff]
  %v1879 = vld [vmem:[%s1 + $0x240] sm:$0xff]
  %v1880 = vld [vmem:[%s1 + $0x248] sm:$0xff]
  %v1881 = vld [vmem:[%s1 + $0x250] sm:$0xff]
  %v1882 = vld [vmem:[%s1 + $0x258] sm:$0xff]
  %v1883 = vld [vmem:[%s1 + $0x260] sm:$0xff]
  %v1884 = vld [vmem:[%s1 + $0x268] sm:$0xff]
  %v1885 = vld [vmem:[%s1 + $0x270] sm:$0xff]
  %v1886 = vld [vmem:[%s1 + $0x278] sm:$0xff]
  %v1887 = vld [vmem:[%s1 + $0x2c0] sm:$0x1]
  %1888 = vmatpush.msra.mxu0 %v1886
  %1889 = vmatpush.msra.mxu0 %v1885
  %1890 = vmatpush.msra.mxu0 %v1884
  %1891 = vmatpush.msra.mxu0 %v1883
  %1892 = vmatpush.msra.mxu0 %v1882
  %1893 = vmatpush.msra.mxu0 %v1881
  %1894 = vmatpush.msra.mxu0 %v1880
  %1895 = vmatpush.msra.mxu0 %v1879
  %1896 = vmatpush.msra.mxu0 %v1878
  %1897 = vmatpush.msra.mxu0 %v1877
  %1898 = vmatpush.msra.mxu0 %v1876
  %1899 = vmatpush.msra.mxu0 %v1875
  %1900 = vmatpush.msra.mxu0 %v1874
  %1901 = vmatpush.msra.mxu0 %v1873
  %1902 = vmatpush.msra.mxu0 %v1872
  %1903 = vmatpush.msra.mxu0 %v1871
  %1904 = vmatmul.f32.gmra.mxu0 %v1831
  %v1905 = vpop.f32.mrf.mxu0
  %v1906 = vadd.f32 0.0, %v1905
  %1907 = vmatmul.f32.gmra.mxu0 %v1832
  %v1908 = vpop.f32.mrf.mxu0
  %v1909 = vadd.f32 0.0, %v1908
  %1910 = vmatmul.f32.gmra.mxu0 %v1833
  %v1911 = vpop.f32.mrf.mxu0
  %v1912 = vadd.f32 0.0, %v1911
  %1913 = vmatmul.f32.gmra.mxu0 %v1834
  %v1914 = vpop.f32.mrf.mxu0
  %v1915 = vadd.f32 0.0, %v1914
  %1916 = vmatmul.f32.gmra.mxu0 %v1835
  %v1917 = vpop.f32.mrf.mxu0
  %v1918 = vadd.f32 0.0, %v1917
  %1919 = vmatmul.f32.gmra.mxu0 %v1836
  %v1920 = vpop.f32.mrf.mxu0
  %v1921 = vadd.f32 0.0, %v1920
  %1922 = vmatmul.f32.gmra.mxu0 %v1837
  %v1923 = vpop.f32.mrf.mxu0
  %v1924 = vadd.f32 0.0, %v1923
  %1925 = vmatmul.f32.gmra.mxu0 %v1838
  %v1926 = vpop.f32.mrf.mxu0
  %v1927 = vadd.f32 0.0, %v1926
  %1928 = vmatmul.f32.gmra.mxu0 %v1839
  %v1929 = vpop.f32.mrf.mxu0
  %v1930 = vadd.f32 0.0, %v1929
  %1931 = vmatmul.f32.gmra.mxu0 %v1840
  %v1932 = vpop.f32.mrf.mxu0
  %v1933 = vadd.f32 0.0, %v1932
  %1934 = vmatmul.f32.gmra.mxu0 %v1841
  %v1935 = vpop.f32.mrf.mxu0
  %v1936 = vadd.f32 0.0, %v1935
  %1937 = vmatmul.f32.gmra.mxu0 %v1842
  %v1938 = vpop.f32.mrf.mxu0
  %v1939 = vadd.f32 0.0, %v1938
  %1940 = vmatmul.f32.gmra.mxu0 %v1843
  %v1941 = vpop.f32.mrf.mxu0
  %v1942 = vadd.f32 0.0, %v1941
  %1943 = vmatmul.f32.gmra.mxu0 %v1844
  %v1944 = vpop.f32.mrf.mxu0
  %v1945 = vadd.f32 0.0, %v1944
  %1946 = vmatmul.f32.gmra.mxu0 %v1845
  %v1947 = vpop.f32.mrf.mxu0
  %v1948 = vadd.f32 0.0, %v1947
  %1949 = vmatmul.f32.gmra.mxu0 %v1846
  %v1950 = vpop.f32.mrf.mxu0
  %v1951 = vadd.f32 0.0, %v1950
  %1952 = vmatmul.f32.gmra.mxu0 %v1847
  %v1953 = vpop.f32.mrf.mxu0
  %v1954 = vadd.f32 0.0, %v1953
  %1955 = vmatmul.f32.gmra.mxu0 %v1848
  %v1956 = vpop.f32.mrf.mxu0
  %v1957 = vadd.f32 0.0, %v1956
  %1958 = vmatmul.f32.gmra.mxu0 %v1849
  %v1959 = vpop.f32.mrf.mxu0
  %v1960 = vadd.f32 0.0, %v1959
  %1961 = vmatmul.f32.gmra.mxu0 %v1850
  %v1962 = vpop.f32.mrf.mxu0
  %v1963 = vadd.f32 0.0, %v1962
  %1964 = vmatmul.f32.gmra.mxu0 %v1851
  %v1965 = vpop.f32.mrf.mxu0
  %v1966 = vadd.f32 0.0, %v1965
  %1967 = vmatmul.f32.gmra.mxu0 %v1852
  %v1968 = vpop.f32.mrf.mxu0
  %v1969 = vadd.f32 0.0, %v1968
  %1970 = vmatmul.f32.gmra.mxu0 %v1853
  %v1971 = vpop.f32.mrf.mxu0
  %v1972 = vadd.f32 0.0, %v1971
  %1973 = vmatmul.f32.gmra.mxu0 %v1854
  %v1974 = vpop.f32.mrf.mxu0
  %v1975 = vadd.f32 0.0, %v1974
  %1976 = vmatmul.f32.gmra.mxu0 %v1855
  %v1977 = vpop.f32.mrf.mxu0
  %v1978 = vadd.f32 0.0, %v1977
  %1979 = vmatmul.f32.gmra.mxu0 %v1856
  %v1980 = vpop.f32.mrf.mxu0
  %v1981 = vadd.f32 0.0, %v1980
  %1982 = vmatmul.f32.gmra.mxu0 %v1857
  %v1983 = vpop.f32.mrf.mxu0
  %v1984 = vadd.f32 0.0, %v1983
  %1985 = vmatmul.f32.gmra.mxu0 %v1858
  %v1986 = vpop.f32.mrf.mxu0
  %v1987 = vadd.f32 0.0, %v1986
  %1988 = vmatmul.f32.gmra.mxu0 %v1859
  %v1989 = vpop.f32.mrf.mxu0
  %v1990 = vadd.f32 0.0, %v1989
  %1991 = vmatmul.f32.gmra.mxu0 %v1860
  %v1992 = vpop.f32.mrf.mxu0
  %v1993 = vadd.f32 0.0, %v1992
  %1994 = vmatmul.f32.gmra.mxu0 %v1861
  %v1995 = vpop.f32.mrf.mxu0
  %v1996 = vadd.f32 0.0, %v1995
  %1997 = vmatmul.f32.gmra.mxu0 %v1862
  %v1998 = vpop.f32.mrf.mxu0
  %v1999 = vadd.f32 0.0, %v1998
  %2000 = vdwg.mxu0
  %2001 = vmatpush.msra.mxu0 0.0
  %2002 = vmatpush.msra.mxu0 0.0
  %2003 = vmatpush.msra.mxu0 0.0
  %2004 = vmatpush.msra.mxu0 0.0
  %2005 = vmatpush.msra.mxu0 0.0
  %2006 = vmatpush.msra.mxu0 0.0
  %2007 = vmatpush.msra.mxu0 0.0
  %2008 = vmatpush.msra.mxu0 0.0
  %2009 = vmatpush.msra.mxu0 %v1870
  %2010 = vmatpush.msra.mxu0 %v1869
  %2011 = vmatpush.msra.mxu0 %v1868
  %2012 = vmatpush.msra.mxu0 %v1867
  %2013 = vmatpush.msra.mxu0 %v1866
  %2014 = vmatpush.msra.mxu0 %v1865
  %2015 = vmatpush.msra.mxu0 %v1864
  %2016 = vmatpush.msra.mxu0 %v1863
  %2017 = vmatmul.f32.gmra.mxu0 %v1510
  %v2018 = vpop.f32.mrf.mxu0
  %v2019 = vadd.f32 %v1906, %v2018
  %2020 = vmatmul.f32.gmra.mxu0 %v1513
  %v2021 = vpop.f32.mrf.mxu0
  %v2022 = vadd.f32 %v1909, %v2021
  %2023 = vmatmul.f32.gmra.mxu0 %v1516
  %v2024 = vpop.f32.mrf.mxu0
  %v2025 = vadd.f32 %v1912, %v2024
  %2026 = vmatmul.f32.gmra.mxu0 %v1519
  %v2027 = vpop.f32.mrf.mxu0
  %v2028 = vadd.f32 %v1915, %v2027
  %2029 = vmatmul.f32.gmra.mxu0 %v1522
  %v2030 = vpop.f32.mrf.mxu0
  %v2031 = vadd.f32 %v1918, %v2030
  %2032 = vmatmul.f32.gmra.mxu0 %v1525
  %v2033 = vpop.f32.mrf.mxu0
  %v2034 = vadd.f32 %v1921, %v2033
  %2035 = vmatmul.f32.gmra.mxu0 %v1528
  %v2036 = vpop.f32.mrf.mxu0
  %v2037 = vadd.f32 %v1924, %v2036
  %2038 = vmatmul.f32.gmra.mxu0 %v1531
  %v2039 = vpop.f32.mrf.mxu0
  %v2040 = vadd.f32 %v1927, %v2039
  %2041 = vmatmul.f32.gmra.mxu0 %v1534
  %v2042 = vpop.f32.mrf.mxu0
  %v2043 = vadd.f32 %v1930, %v2042
  %2044 = vmatmul.f32.gmra.mxu0 %v1537
  %v2045 = vpop.f32.mrf.mxu0
  %v2046 = vadd.f32 %v1933, %v2045
  %2047 = vmatmul.f32.gmra.mxu0 %v1540
  %v2048 = vpop.f32.mrf.mxu0
  %v2049 = vadd.f32 %v1936, %v2048
  %2050 = vmatmul.f32.gmra.mxu0 %v1543
  %v2051 = vpop.f32.mrf.mxu0
  %v2052 = vadd.f32 %v1939, %v2051
  %2053 = vmatmul.f32.gmra.mxu0 %v1546
  %v2054 = vpop.f32.mrf.mxu0
  %v2055 = vadd.f32 %v1942, %v2054
  %2056 = vmatmul.f32.gmra.mxu0 %v1549
  %v2057 = vpop.f32.mrf.mxu0
  %v2058 = vadd.f32 %v1945, %v2057
  %2059 = vmatmul.f32.gmra.mxu0 %v1552
  %v2060 = vpop.f32.mrf.mxu0
  %v2061 = vadd.f32 %v1948, %v2060
  %2062 = vmatmul.f32.gmra.mxu0 %v1555
  %v2063 = vpop.f32.mrf.mxu0
  %v2064 = vadd.f32 %v1951, %v2063
  %2065 = vmatmul.f32.gmra.mxu0 %v1558
  %v2066 = vpop.f32.mrf.mxu0
  %v2067 = vadd.f32 %v1954, %v2066
  %2068 = vmatmul.f32.gmra.mxu0 %v1561
  %v2069 = vpop.f32.mrf.mxu0
  %v2070 = vadd.f32 %v1957, %v2069
  %2071 = vmatmul.f32.gmra.mxu0 %v1564
  %v2072 = vpop.f32.mrf.mxu0
  %v2073 = vadd.f32 %v1960, %v2072
  %2074 = vmatmul.f32.gmra.mxu0 %v1567
  %v2075 = vpop.f32.mrf.mxu0
  %v2076 = vadd.f32 %v1963, %v2075
  %2077 = vmatmul.f32.gmra.mxu0 %v1570
  %v2078 = vpop.f32.mrf.mxu0
  %v2079 = vadd.f32 %v1966, %v2078
  %2080 = vmatmul.f32.gmra.mxu0 %v1573
  %v2081 = vpop.f32.mrf.mxu0
  %v2082 = vadd.f32 %v1969, %v2081
  %2083 = vmatmul.f32.gmra.mxu0 %v1576
  %v2084 = vpop.f32.mrf.mxu0
  %v2085 = vadd.f32 %v1972, %v2084
  %2086 = vmatmul.f32.gmra.mxu0 %v1579
  %v2087 = vpop.f32.mrf.mxu0
  %v2088 = vadd.f32 %v1975, %v2087
  %2089 = vmatmul.f32.gmra.mxu0 %v1582
  %v2090 = vpop.f32.mrf.mxu0
  %v2091 = vadd.f32 %v1978, %v2090
  %2092 = vmatmul.f32.gmra.mxu0 %v1585
  %v2093 = vpop.f32.mrf.mxu0
  %v2094 = vadd.f32 %v1981, %v2093
  %2095 = vmatmul.f32.gmra.mxu0 %v1588
  %v2096 = vpop.f32.mrf.mxu0
  %v2097 = vadd.f32 %v1984, %v2096
  %2098 = vmatmul.f32.gmra.mxu0 %v1591
  %v2099 = vpop.f32.mrf.mxu0
  %v2100 = vadd.f32 %v1987, %v2099
  %2101 = vmatmul.f32.gmra.mxu0 %v1594
  %v2102 = vpop.f32.mrf.mxu0
  %v2103 = vadd.f32 %v1990, %v2102
  %2104 = vmatmul.f32.gmra.mxu0 %v1597
  %v2105 = vpop.f32.mrf.mxu0
  %v2106 = vadd.f32 %v1993, %v2105
  %2107 = vmatmul.f32.gmra.mxu0 %v1600
  %v2108 = vpop.f32.mrf.mxu0
  %v2109 = vadd.f32 %v1996, %v2108
  %2110 = vmatmul.f32.gmra.mxu0 %v1603
  %v2111 = vpop.f32.mrf.mxu0
  %v2112 = vadd.f32 %v1999, %v2111
  %2113 = vdwg.mxu0
  %v2114 = vperm.slane %v1887, 0
  %v2115 = vadd.f32 %v2019, %v2114
  %v2116 = vadd.f32 %v2022, %v2114
  %v2117 = vadd.f32 %v2025, %v2114
  %v2118 = vadd.f32 %v2028, %v2114
  %v2119 = vadd.f32 %v2031, %v2114
  %v2120 = vadd.f32 %v2034, %v2114
  %v2121 = vadd.f32 %v2037, %v2114
  %v2122 = vadd.f32 %v2040, %v2114
  %v2123 = vadd.f32 %v2043, %v2114
  %v2124 = vadd.f32 %v2046, %v2114
  %v2125 = vadd.f32 %v2049, %v2114
  %v2126 = vadd.f32 %v2052, %v2114
  %v2127 = vadd.f32 %v2055, %v2114
  %v2128 = vadd.f32 %v2058, %v2114
  %v2129 = vadd.f32 %v2061, %v2114
  %v2130 = vadd.f32 %v2064, %v2114
  %v2131 = vadd.f32 %v2067, %v2114
  %v2132 = vadd.f32 %v2070, %v2114
  %v2133 = vadd.f32 %v2073, %v2114
  %v2134 = vadd.f32 %v2076, %v2114
  %v2135 = vadd.f32 %v2079, %v2114
  %v2136 = vadd.f32 %v2082, %v2114
  %v2137 = vadd.f32 %v2085, %v2114
  %v2138 = vadd.f32 %v2088, %v2114
  %v2139 = vadd.f32 %v2091, %v2114
  %v2140 = vadd.f32 %v2094, %v2114
  %v2141 = vadd.f32 %v2097, %v2114
  %v2142 = vadd.f32 %v2100, %v2114
  %v2143 = vadd.f32 %v2103, %v2114
  %v2144 = vadd.f32 %v2106, %v2114
  %v2145 = vadd.f32 %v2109, %v2114
  %v2146 = vadd.f32 %v2112, %v2114
  %v2147 = vmax.f32 %v2115, 0.0
  %v2148 = vmax.f32 %v2116, 0.0
  %v2149 = vmax.f32 %v2117, 0.0
  %v2150 = vmax.f32 %v2118, 0.0
  %v2151 = vmax.f32 %v2119, 0.0
  %v2152 = vmax.f32 %v2120, 0.0
  %v2153 = vmax.f32 %v2121, 0.0
  %v2154 = vmax.f32 %v2122, 0.0
  %v2155 = vmax.f32 %v2123, 0.0
  %v2156 = vmax.f32 %v2124, 0.0
  %v2157 = vmax.f32 %v2125, 0.0
  %v2158 = vmax.f32 %v2126, 0.0
  %v2159 = vmax.f32 %v2127, 0.0
  %v2160 = vmax.f32 %v2128, 0.0
  %v2161 = vmax.f32 %v2129, 0.0
  %v2162 = vmax.f32 %v2130, 0.0
  %v2163 = vmax.f32 %v2131, 0.0
  %v2164 = vmax.f32 %v2132, 0.0
  %v2165 = vmax.f32 %v2133, 0.0
  %v2166 = vmax.f32 %v2134, 0.0
  %v2167 = vmax.f32 %v2135, 0.0
  %v2168 = vmax.f32 %v2136, 0.0
  %v2169 = vmax.f32 %v2137, 0.0
  %v2170 = vmax.f32 %v2138, 0.0
  %v2171 = vmax.f32 %v2139, 0.0
  %v2172 = vmax.f32 %v2140, 0.0
  %v2173 = vmax.f32 %v2141, 0.0
  %v2174 = vmax.f32 %v2142, 0.0
  %v2175 = vmax.f32 %v2143, 0.0
  %v2176 = vmax.f32 %v2144, 0.0
  %v2177 = vmax.f32 %v2145, 0.0
  %v2178 = vmax.f32 %v2146, 0.0
  %v2179 = vld [vmem:[%s1 + $0x2c8] sm:$0xff]
  %v2180 = vld [vmem:[%s1 + $0x2d0] sm:$0xff]
  %v2181 = vld [vmem:[%s1 + $0x2d8] sm:$0xff]
  %v2182 = vld [vmem:[%s1 + $0x2e0] sm:$0xff]
  %v2183 = vld [vmem:[%s1 + $0x2e8] sm:$0x1]
  %v2184 = vperm.slane %v2183, 0
  %vm2185 = vcmask 261120
  %v2187 = vsel %vm2185, %v2147, 0
  %v2190 = vsel %vm2185, %v2148, 0
  %v2193 = vsel %vm2185, %v2149, 0
  %v2196 = vsel %vm2185, %v2150, 0
  %v2199 = vsel %vm2185, %v2151, 0
  %v2202 = vsel %vm2185, %v2152, 0
  %v2205 = vsel %vm2185, %v2153, 0
  %v2208 = vsel %vm2185, %v2154, 0
  %v2211 = vsel %vm2185, %v2155, 0
  %v2214 = vsel %vm2185, %v2156, 0
  %v2217 = vsel %vm2185, %v2157, 0
  %v2220 = vsel %vm2185, %v2158, 0
  %v2223 = vsel %vm2185, %v2159, 0
  %v2226 = vsel %vm2185, %v2160, 0
  %v2229 = vsel %vm2185, %v2161, 0
  %v2232 = vsel %vm2185, %v2162, 0
  %v2235 = vsel %vm2185, %v2163, 0
  %v2238 = vsel %vm2185, %v2164, 0
  %v2241 = vsel %vm2185, %v2165, 0
  %v2244 = vsel %vm2185, %v2166, 0
  %v2247 = vsel %vm2185, %v2167, 0
  %v2250 = vsel %vm2185, %v2168, 0
  %v2253 = vsel %vm2185, %v2169, 0
  %v2256 = vsel %vm2185, %v2170, 0
  %v2259 = vsel %vm2185, %v2171, 0
  %v2262 = vsel %vm2185, %v2172, 0
  %v2265 = vsel %vm2185, %v2173, 0
  %v2268 = vsel %vm2185, %v2174, 0
  %v2271 = vsel %vm2185, %v2175, 0
  %v2274 = vsel %vm2185, %v2176, 0
  %v2277 = vsel %vm2185, %v2177, 0
  %v2280 = vsel %vm2185, %v2178, 0
  %2282 = vmatpush.msra.mxu0 0.0
  %2283 = vmatpush.msra.mxu0 0.0
  %2284 = vmatpush.msra.mxu0 0.0
  %2285 = vmatpush.msra.mxu0 0.0
  %2286 = vmatpush.msra.mxu0 0.0
  %2287 = vmatpush.msra.mxu0 0.0
  %2288 = vmatpush.msra.mxu0 0.0
  %2289 = vmatpush.msra.mxu0 0.0
  %2290 = vmatpush.msra.mxu0 0.0
  %2291 = vmatpush.msra.mxu0 0.0
  %2292 = vmatpush.msra.mxu0 0.0
  %2293 = vmatpush.msra.mxu0 0.0
  %2294 = vmatpush.msra.mxu0 %v2182
  %2295 = vmatpush.msra.mxu0 %v2181
  %2296 = vmatpush.msra.mxu0 %v2180
  %2297 = vmatpush.msra.mxu0 %v2179
  %2298 = vmatmul.f32.gmra.mxu0 %v2187
  %v2299 = vpop.f32.mrf.mxu0
  %v2300 = vadd.f32 %v2184, %v2299
  %2301 = vmatmul.f32.gmra.mxu0 %v2190
  %v2302 = vpop.f32.mrf.mxu0
  %v2303 = vadd.f32 %v2184, %v2302
  %2304 = vmatmul.f32.gmra.mxu0 %v2193
  %v2305 = vpop.f32.mrf.mxu0
  %v2306 = vadd.f32 %v2184, %v2305
  %2307 = vmatmul.f32.gmra.mxu0 %v2196
  %v2308 = vpop.f32.mrf.mxu0
  %v2309 = vadd.f32 %v2184, %v2308
  %2310 = vmatmul.f32.gmra.mxu0 %v2199
  %v2311 = vpop.f32.mrf.mxu0
  %v2312 = vadd.f32 %v2184, %v2311
  %2313 = vmatmul.f32.gmra.mxu0 %v2202
  %v2314 = vpop.f32.mrf.mxu0
  %v2315 = vadd.f32 %v2184, %v2314
  %2316 = vmatmul.f32.gmra.mxu0 %v2205
  %v2317 = vpop.f32.mrf.mxu0
  %v2318 = vadd.f32 %v2184, %v2317
  %2319 = vmatmul.f32.gmra.mxu0 %v2208
  %v2320 = vpop.f32.mrf.mxu0
  %v2321 = vadd.f32 %v2184, %v2320
  %2322 = vmatmul.f32.gmra.mxu0 %v2211
  %v2323 = vpop.f32.mrf.mxu0
  %v2324 = vadd.f32 %v2184, %v2323
  %2325 = vmatmul.f32.gmra.mxu0 %v2214
  %v2326 = vpop.f32.mrf.mxu0
  %v2327 = vadd.f32 %v2184, %v2326
  %2328 = vmatmul.f32.gmra.mxu0 %v2217
  %v2329 = vpop.f32.mrf.mxu0
  %v2330 = vadd.f32 %v2184, %v2329
  %2331 = vmatmul.f32.gmra.mxu0 %v2220
  %v2332 = vpop.f32.mrf.mxu0
  %v2333 = vadd.f32 %v2184, %v2332
  %2334 = vmatmul.f32.gmra.mxu0 %v2223
  %v2335 = vpop.f32.mrf.mxu0
  %v2336 = vadd.f32 %v2184, %v2335
  %2337 = vmatmul.f32.gmra.mxu0 %v2226
  %v2338 = vpop.f32.mrf.mxu0
  %v2339 = vadd.f32 %v2184, %v2338
  %2340 = vmatmul.f32.gmra.mxu0 %v2229
  %v2341 = vpop.f32.mrf.mxu0
  %v2342 = vadd.f32 %v2184, %v2341
  %2343 = vmatmul.f32.gmra.mxu0 %v2232
  %v2344 = vpop.f32.mrf.mxu0
  %v2345 = vadd.f32 %v2184, %v2344
  %2346 = vmatmul.f32.gmra.mxu0 %v2235
  %v2347 = vpop.f32.mrf.mxu0
  %v2348 = vadd.f32 %v2184, %v2347
  %2349 = vmatmul.f32.gmra.mxu0 %v2238
  %v2350 = vpop.f32.mrf.mxu0
  %v2351 = vadd.f32 %v2184, %v2350
  %2352 = vmatmul.f32.gmra.mxu0 %v2241
  %v2353 = vpop.f32.mrf.mxu0
  %v2354 = vadd.f32 %v2184, %v2353
  %2355 = vmatmul.f32.gmra.mxu0 %v2244
  %v2356 = vpop.f32.mrf.mxu0
  %v2357 = vadd.f32 %v2184, %v2356
  %2358 = vmatmul.f32.gmra.mxu0 %v2247
  %v2359 = vpop.f32.mrf.mxu0
  %v2360 = vadd.f32 %v2184, %v2359
  %2361 = vmatmul.f32.gmra.mxu0 %v2250
  %v2362 = vpop.f32.mrf.mxu0
  %v2363 = vadd.f32 %v2184, %v2362
  %2364 = vmatmul.f32.gmra.mxu0 %v2253
  %v2365 = vpop.f32.mrf.mxu0
  %v2366 = vadd.f32 %v2184, %v2365
  %2367 = vmatmul.f32.gmra.mxu0 %v2256
  %v2368 = vpop.f32.mrf.mxu0
  %v2369 = vadd.f32 %v2184, %v2368
  %2370 = vmatmul.f32.gmra.mxu0 %v2259
  %v2371 = vpop.f32.mrf.mxu0
  %v2372 = vadd.f32 %v2184, %v2371
  %2373 = vmatmul.f32.gmra.mxu0 %v2262
  %v2374 = vpop.f32.mrf.mxu0
  %v2375 = vadd.f32 %v2184, %v2374
  %2376 = vmatmul.f32.gmra.mxu0 %v2265
  %v2377 = vpop.f32.mrf.mxu0
  %v2378 = vadd.f32 %v2184, %v2377
  %2379 = vmatmul.f32.gmra.mxu0 %v2268
  %v2380 = vpop.f32.mrf.mxu0
  %v2381 = vadd.f32 %v2184, %v2380
  %2382 = vmatmul.f32.gmra.mxu0 %v2271
  %v2383 = vpop.f32.mrf.mxu0
  %v2384 = vadd.f32 %v2184, %v2383
  %2385 = vmatmul.f32.gmra.mxu0 %v2274
  %v2386 = vpop.f32.mrf.mxu0
  %v2387 = vadd.f32 %v2184, %v2386
  %2388 = vmatmul.f32.gmra.mxu0 %v2277
  %v2389 = vpop.f32.mrf.mxu0
  %v2390 = vadd.f32 %v2184, %v2389
  %2391 = vmatmul.f32.gmra.mxu0 %v2280
  %v2392 = vpop.f32.mrf.mxu0
  %v2393 = vadd.f32 %v2184, %v2392
  %2394 = vdwg.mxu0
  %v2395 = vmax.f32 %v2300, 0.0
  %v2396 = vmax.f32 %v2303, 0.0
  %v2397 = vmax.f32 %v2306, 0.0
  %v2398 = vmax.f32 %v2309, 0.0
  %v2399 = vmax.f32 %v2312, 0.0
  %v2400 = vmax.f32 %v2315, 0.0
  %v2401 = vmax.f32 %v2318, 0.0
  %v2402 = vmax.f32 %v2321, 0.0
  %v2403 = vmax.f32 %v2324, 0.0
  %v2404 = vmax.f32 %v2327, 0.0
  %v2405 = vmax.f32 %v2330, 0.0
  %v2406 = vmax.f32 %v2333, 0.0
  %v2407 = vmax.f32 %v2336, 0.0
  %v2408 = vmax.f32 %v2339, 0.0
  %v2409 = vmax.f32 %v2342, 0.0
  %v2410 = vmax.f32 %v2345, 0.0
  %v2411 = vmax.f32 %v2348, 0.0
  %v2412 = vmax.f32 %v2351, 0.0
  %v2413 = vmax.f32 %v2354, 0.0
  %v2414 = vmax.f32 %v2357, 0.0
  %v2415 = vmax.f32 %v2360, 0.0
  %v2416 = vmax.f32 %v2363, 0.0
  %v2417 = vmax.f32 %v2366, 0.0
  %v2418 = vmax.f32 %v2369, 0.0
  %v2419 = vmax.f32 %v2372, 0.0
  %v2420 = vmax.f32 %v2375, 0.0
  %v2421 = vmax.f32 %v2378, 0.0
  %v2422 = vmax.f32 %v2381, 0.0
  %v2423 = vmax.f32 %v2384, 0.0
  %v2424 = vmax.f32 %v2387, 0.0
  %v2425 = vmax.f32 %v2390, 0.0
  %v2426 = vmax.f32 %v2393, 0.0
  %v2427 = vld [vmem:[%s1 + $0x2f0] sm:$0xff]
  %v2428 = vld [vmem:[%s1 + $0x2f8] sm:$0xff]
  %v2429 = vld [vmem:[%s1 + $0x300] sm:$0x1]
  %v2430 = vperm.slane %v2429, 0
  %vm2431 = vcmask 130048
  %v2433 = vsel %vm2431, %v2395, 0
  %v2436 = vsel %vm2431, %v2396, 0
  %v2439 = vsel %vm2431, %v2397, 0
  %v2442 = vsel %vm2431, %v2398, 0
  %v2445 = vsel %vm2431, %v2399, 0
  %v2448 = vsel %vm2431, %v2400, 0
  %v2451 = vsel %vm2431, %v2401, 0
  %v2454 = vsel %vm2431, %v2402, 0
  %v2457 = vsel %vm2431, %v2403, 0
  %v2460 = vsel %vm2431, %v2404, 0
  %v2463 = vsel %vm2431, %v2405, 0
  %v2466 = vsel %vm2431, %v2406, 0
  %v2469 = vsel %vm2431, %v2407, 0
  %v2472 = vsel %vm2431, %v2408, 0
  %v2475 = vsel %vm2431, %v2409, 0
  %v2478 = vsel %vm2431, %v2410, 0
  %v2481 = vsel %vm2431, %v2411, 0
  %v2484 = vsel %vm2431, %v2412, 0
  %v2487 = vsel %vm2431, %v2413, 0
  %v2490 = vsel %vm2431, %v2414, 0
  %v2493 = vsel %vm2431, %v2415, 0
  %v2496 = vsel %vm2431, %v2416, 0
  %v2499 = vsel %vm2431, %v2417, 0
  %v2502 = vsel %vm2431, %v2418, 0
  %v2505 = vsel %vm2431, %v2419, 0
  %v2508 = vsel %vm2431, %v2420, 0
  %v2511 = vsel %vm2431, %v2421, 0
  %v2514 = vsel %vm2431, %v2422, 0
  %v2517 = vsel %vm2431, %v2423, 0
  %v2520 = vsel %vm2431, %v2424, 0
  %v2523 = vsel %vm2431, %v2425, 0
  %v2526 = vsel %vm2431, %v2426, 0
  %2528 = vmatpush.msra.mxu0 0.0
  %2529 = vmatpush.msra.mxu0 0.0
  %2530 = vmatpush.msra.mxu0 0.0
  %2531 = vmatpush.msra.mxu0 0.0
  %2532 = vmatpush.msra.mxu0 0.0
  %2533 = vmatpush.msra.mxu0 0.0
  %2534 = vmatpush.msra.mxu0 0.0
  %2535 = vmatpush.msra.mxu0 0.0
  %2536 = vmatpush.msra.mxu0 0.0
  %2537 = vmatpush.msra.mxu0 0.0
  %2538 = vmatpush.msra.mxu0 0.0
  %2539 = vmatpush.msra.mxu0 0.0
  %2540 = vmatpush.msra.mxu0 0.0
  %2541 = vmatpush.msra.mxu0 0.0
  %2542 = vmatpush.msra.mxu0 %v2428
  %2543 = vmatpush.msra.mxu0 %v2427
  %2544 = vmatmul.f32.gmra.mxu0 %v2433
  %v2545 = vpop.f32.mrf.mxu0
  %v2546 = vadd.f32 %v2430, %v2545
  %2547 = vmatmul.f32.gmra.mxu0 %v2436
  %v2548 = vpop.f32.mrf.mxu0
  %v2549 = vadd.f32 %v2430, %v2548
  %2550 = vmatmul.f32.gmra.mxu0 %v2439
  %v2551 = vpop.f32.mrf.mxu0
  %v2552 = vadd.f32 %v2430, %v2551
  %2553 = vmatmul.f32.gmra.mxu0 %v2442
  %v2554 = vpop.f32.mrf.mxu0
  %v2555 = vadd.f32 %v2430, %v2554
  %2556 = vmatmul.f32.gmra.mxu0 %v2445
  %v2557 = vpop.f32.mrf.mxu0
  %v2558 = vadd.f32 %v2430, %v2557
  %2559 = vmatmul.f32.gmra.mxu0 %v2448
  %v2560 = vpop.f32.mrf.mxu0
  %v2561 = vadd.f32 %v2430, %v2560
  %2562 = vmatmul.f32.gmra.mxu0 %v2451
  %v2563 = vpop.f32.mrf.mxu0
  %v2564 = vadd.f32 %v2430, %v2563
  %2565 = vmatmul.f32.gmra.mxu0 %v2454
  %v2566 = vpop.f32.mrf.mxu0
  %v2567 = vadd.f32 %v2430, %v2566
  %2568 = vmatmul.f32.gmra.mxu0 %v2457
  %v2569 = vpop.f32.mrf.mxu0
  %v2570 = vadd.f32 %v2430, %v2569
  %2571 = vmatmul.f32.gmra.mxu0 %v2460
  %v2572 = vpop.f32.mrf.mxu0
  %v2573 = vadd.f32 %v2430, %v2572
  %2574 = vmatmul.f32.gmra.mxu0 %v2463
  %v2575 = vpop.f32.mrf.mxu0
  %v2576 = vadd.f32 %v2430, %v2575
  %2577 = vmatmul.f32.gmra.mxu0 %v2466
  %v2578 = vpop.f32.mrf.mxu0
  %v2579 = vadd.f32 %v2430, %v2578
  %2580 = vmatmul.f32.gmra.mxu0 %v2469
  %v2581 = vpop.f32.mrf.mxu0
  %v2582 = vadd.f32 %v2430, %v2581
  %2583 = vmatmul.f32.gmra.mxu0 %v2472
  %v2584 = vpop.f32.mrf.mxu0
  %v2585 = vadd.f32 %v2430, %v2584
  %2586 = vmatmul.f32.gmra.mxu0 %v2475
  %v2587 = vpop.f32.mrf.mxu0
  %v2588 = vadd.f32 %v2430, %v2587
  %2589 = vmatmul.f32.gmra.mxu0 %v2478
  %v2590 = vpop.f32.mrf.mxu0
  %v2591 = vadd.f32 %v2430, %v2590
  %2592 = vmatmul.f32.gmra.mxu0 %v2481
  %v2593 = vpop.f32.mrf.mxu0
  %v2594 = vadd.f32 %v2430, %v2593
  %2595 = vmatmul.f32.gmra.mxu0 %v2484
  %v2596 = vpop.f32.mrf.mxu0
  %v2597 = vadd.f32 %v2430, %v2596
  %2598 = vmatmul.f32.gmra.mxu0 %v2487
  %v2599 = vpop.f32.mrf.mxu0
  %v2600 = vadd.f32 %v2430, %v2599
  %2601 = vmatmul.f32.gmra.mxu0 %v2490
  %v2602 = vpop.f32.mrf.mxu0
  %v2603 = vadd.f32 %v2430, %v2602
  %2604 = vmatmul.f32.gmra.mxu0 %v2493
  %v2605 = vpop.f32.mrf.mxu0
  %v2606 = vadd.f32 %v2430, %v2605
  %2607 = vmatmul.f32.gmra.mxu0 %v2496
  %v2608 = vpop.f32.mrf.mxu0
  %v2609 = vadd.f32 %v2430, %v2608
  %2610 = vmatmul.f32.gmra.mxu0 %v2499
  %v2611 = vpop.f32.mrf.mxu0
  %v2612 = vadd.f32 %v2430, %v2611
  %2613 = vmatmul.f32.gmra.mxu0 %v2502
  %v2614 = vpop.f32.mrf.mxu0
  %v2615 = vadd.f32 %v2430, %v2614
  %2616 = vmatmul.f32.gmra.mxu0 %v2505
  %v2617 = vpop.f32.mrf.mxu0
  %v2618 = vadd.f32 %v2430, %v2617
  %2619 = vmatmul.f32.gmra.mxu0 %v2508
  %v2620 = vpop.f32.mrf.mxu0
  %v2621 = vadd.f32 %v2430, %v2620
  %2622 = vmatmul.f32.gmra.mxu0 %v2511
  %v2623 = vpop.f32.mrf.mxu0
  %v2624 = vadd.f32 %v2430, %v2623
  %2625 = vmatmul.f32.gmra.mxu0 %v2514
  %v2626 = vpop.f32.mrf.mxu0
  %v2627 = vadd.f32 %v2430, %v2626
  %2628 = vmatmul.f32.gmra.mxu0 %v2517
  %v2629 = vpop.f32.mrf.mxu0
  %v2630 = vadd.f32 %v2430, %v2629
  %2631 = vmatmul.f32.gmra.mxu0 %v2520
  %v2632 = vpop.f32.mrf.mxu0
  %v2633 = vadd.f32 %v2430, %v2632
  %2634 = vmatmul.f32.gmra.mxu0 %v2523
  %v2635 = vpop.f32.mrf.mxu0
  %v2636 = vadd.f32 %v2430, %v2635
  %2637 = vmatmul.f32.gmra.mxu0 %v2526
  %v2638 = vpop.f32.mrf.mxu0
  %v2639 = vadd.f32 %v2430, %v2638
  %2640 = vdwg.mxu0
  %v2641 = vxor.u32 %v2546, 2147483648
  %v2642 = vxor.u32 %v2549, 2147483648
  %v2643 = vxor.u32 %v2552, 2147483648
  %v2644 = vxor.u32 %v2555, 2147483648
  %v2645 = vxor.u32 %v2558, 2147483648
  %v2646 = vxor.u32 %v2561, 2147483648
  %v2647 = vxor.u32 %v2564, 2147483648
  %v2648 = vxor.u32 %v2567, 2147483648
  %v2649 = vxor.u32 %v2570, 2147483648
  %v2650 = vxor.u32 %v2573, 2147483648
  %v2651 = vxor.u32 %v2576, 2147483648
  %v2652 = vxor.u32 %v2579, 2147483648
  %v2653 = vxor.u32 %v2582, 2147483648
  %v2654 = vxor.u32 %v2585, 2147483648
  %v2655 = vxor.u32 %v2588, 2147483648
  %v2656 = vxor.u32 %v2591, 2147483648
  %v2657 = vxor.u32 %v2594, 2147483648
  %v2658 = vxor.u32 %v2597, 2147483648
  %v2659 = vxor.u32 %v2600, 2147483648
  %v2660 = vxor.u32 %v2603, 2147483648
  %v2661 = vxor.u32 %v2606, 2147483648
  %v2662 = vxor.u32 %v2609, 2147483648
  %v2663 = vxor.u32 %v2612, 2147483648
  %v2664 = vxor.u32 %v2615, 2147483648
  %v2665 = vxor.u32 %v2618, 2147483648
  %v2666 = vxor.u32 %v2621, 2147483648
  %v2667 = vxor.u32 %v2624, 2147483648
  %v2668 = vxor.u32 %v2627, 2147483648
  %v2669 = vxor.u32 %v2630, 2147483648
  %v2670 = vxor.u32 %v2633, 2147483648
  %v2671 = vxor.u32 %v2636, 2147483648
  %v2672 = vxor.u32 %v2639, 2147483648
  %v2673 = vmul.f32 %v2641, 1.442695
  %v2674 = vpow.pop %v2673
  %v2675 = vmul.f32 %v2642, 1.442695
  %v2676 = vpow.pop %v2675
  %v2677 = vmul.f32 %v2643, 1.442695
  %v2678 = vpow.pop %v2677
  %v2679 = vmul.f32 %v2644, 1.442695
  %v2680 = vpow.pop %v2679
  %v2681 = vmul.f32 %v2645, 1.442695
  %v2682 = vpow.pop %v2681
  %v2683 = vmul.f32 %v2646, 1.442695
  %v2684 = vpow.pop %v2683
  %v2685 = vmul.f32 %v2647, 1.442695
  %v2686 = vpow.pop %v2685
  %v2687 = vmul.f32 %v2648, 1.442695
  %v2688 = vpow.pop %v2687
  %v2689 = vmul.f32 %v2649, 1.442695
  %v2690 = vpow.pop %v2689
  %v2691 = vmul.f32 %v2650, 1.442695
  %v2692 = vpow.pop %v2691
  %v2693 = vmul.f32 %v2651, 1.442695
  %v2694 = vpow.pop %v2693
  %v2695 = vmul.f32 %v2652, 1.442695
  %v2696 = vpow.pop %v2695
  %v2697 = vmul.f32 %v2653, 1.442695
  %v2698 = vpow.pop %v2697
  %v2699 = vmul.f32 %v2654, 1.442695
  %v2700 = vpow.pop %v2699
  %v2701 = vmul.f32 %v2655, 1.442695
  %v2702 = vpow.pop %v2701
  %v2703 = vmul.f32 %v2656, 1.442695
  %v2704 = vpow.pop %v2703
  %v2705 = vmul.f32 %v2657, 1.442695
  %v2706 = vpow.pop %v2705
  %v2707 = vmul.f32 %v2658, 1.442695
  %v2708 = vpow.pop %v2707
  %v2709 = vmul.f32 %v2659, 1.442695
  %v2710 = vpow.pop %v2709
  %v2711 = vmul.f32 %v2660, 1.442695
  %v2712 = vpow.pop %v2711
  %v2713 = vmul.f32 %v2661, 1.442695
  %v2714 = vpow.pop %v2713
  %v2715 = vmul.f32 %v2662, 1.442695
  %v2716 = vpow.pop %v2715
  %v2717 = vmul.f32 %v2663, 1.442695
  %v2718 = vpow.pop %v2717
  %v2719 = vmul.f32 %v2664, 1.442695
  %v2720 = vpow.pop %v2719
  %v2721 = vmul.f32 %v2665, 1.442695
  %v2722 = vpow.pop %v2721
  %v2723 = vmul.f32 %v2666, 1.442695
  %v2724 = vpow.pop %v2723
  %v2725 = vmul.f32 %v2667, 1.442695
  %v2726 = vpow.pop %v2725
  %v2727 = vmul.f32 %v2668, 1.442695
  %v2728 = vpow.pop %v2727
  %v2729 = vmul.f32 %v2669, 1.442695
  %v2730 = vpow.pop %v2729
  %v2731 = vmul.f32 %v2670, 1.442695
  %v2732 = vpow.pop %v2731
  %v2733 = vmul.f32 %v2671, 1.442695
  %v2734 = vpow.pop %v2733
  %v2735 = vmul.f32 %v2672, 1.442695
  %v2736 = vpow.pop %v2735
  %v2737 = vadd.f32 %v2674, 1.0
  %v2738 = vadd.f32 %v2676, 1.0
  %v2739 = vadd.f32 %v2678, 1.0
  %v2740 = vadd.f32 %v2680, 1.0
  %v2741 = vadd.f32 %v2682, 1.0
  %v2742 = vadd.f32 %v2684, 1.0
  %v2743 = vadd.f32 %v2686, 1.0
  %v2744 = vadd.f32 %v2688, 1.0
  %v2745 = vadd.f32 %v2690, 1.0
  %v2746 = vadd.f32 %v2692, 1.0
  %v2747 = vadd.f32 %v2694, 1.0
  %v2748 = vadd.f32 %v2696, 1.0
  %v2749 = vadd.f32 %v2698, 1.0
  %v2750 = vadd.f32 %v2700, 1.0
  %v2751 = vadd.f32 %v2702, 1.0
  %v2752 = vadd.f32 %v2704, 1.0
  %v2753 = vadd.f32 %v2706, 1.0
  %v2754 = vadd.f32 %v2708, 1.0
  %v2755 = vadd.f32 %v2710, 1.0
  %v2756 = vadd.f32 %v2712, 1.0
  %v2757 = vadd.f32 %v2714, 1.0
  %v2758 = vadd.f32 %v2716, 1.0
  %v2759 = vadd.f32 %v2718, 1.0
  %v2760 = vadd.f32 %v2720, 1.0
  %v2761 = vadd.f32 %v2722, 1.0
  %v2762 = vadd.f32 %v2724, 1.0
  %v2763 = vadd.f32 %v2726, 1.0
  %v2764 = vadd.f32 %v2728, 1.0
  %v2765 = vadd.f32 %v2730, 1.0
  %v2766 = vadd.f32 %v2732, 1.0
  %v2767 = vadd.f32 %v2734, 1.0
  %v2768 = vadd.f32 %v2736, 1.0
  %v2769 = vrcp.pop %v2737
  %v2770 = vmul.f32 %v2737, %v2769
  %v2771 = vsub.f32 1.0, %v2770
  %v2772 = vmul.f32 %v2769, %v2771
  %v2773 = vadd.f32 %v2769, %v2772
  %vm2774 = vweird.f32 %v2737
  %vm2775 = vweird.f32 %v2769
  %vm2776 = vmor %vm2774, %vm2775
  %v2777 = vsel %vm2776, %v2769, %v2773
  %v2778 = vand.u32 2147483647, %v2737
  %vm2779 = vcmp.eq.f32.partialorder %v2778, 8.507059e+37
  %v2780 = vand.u32 %v2737, 2147483648
  %v2781 = vor.u32 1.1754944e-38, %v2780
  %v2782 = vsel %vm2779, %v2781, %v2777
  %v2783 = vmul.f32 1.0, %v2782
  %v2784 = vrcp.pop %v2738
  %v2785 = vmul.f32 %v2738, %v2784
  %v2786 = vsub.f32 1.0, %v2785
  %v2787 = vmul.f32 %v2784, %v2786
  %v2788 = vadd.f32 %v2784, %v2787
  %vm2789 = vweird.f32 %v2738
  %vm2790 = vweird.f32 %v2784
  %vm2791 = vmor %vm2789, %vm2790
  %v2792 = vsel %vm2791, %v2784, %v2788
  %v2793 = vand.u32 2147483647, %v2738
  %vm2794 = vcmp.eq.f32.partialorder %v2793, 8.507059e+37
  %v2795 = vand.u32 %v2738, 2147483648
  %v2796 = vor.u32 1.1754944e-38, %v2795
  %v2797 = vsel %vm2794, %v2796, %v2792
  %v2798 = vmul.f32 1.0, %v2797
  %v2799 = vrcp.pop %v2739
  %v2800 = vmul.f32 %v2739, %v2799
  %v2801 = vsub.f32 1.0, %v2800
  %v2802 = vmul.f32 %v2799, %v2801
  %v2803 = vadd.f32 %v2799, %v2802
  %vm2804 = vweird.f32 %v2739
  %vm2805 = vweird.f32 %v2799
  %vm2806 = vmor %vm2804, %vm2805
  %v2807 = vsel %vm2806, %v2799, %v2803
  %v2808 = vand.u32 2147483647, %v2739
  %vm2809 = vcmp.eq.f32.partialorder %v2808, 8.507059e+37
  %v2810 = vand.u32 %v2739, 2147483648
  %v2811 = vor.u32 1.1754944e-38, %v2810
  %v2812 = vsel %vm2809, %v2811, %v2807
  %v2813 = vmul.f32 1.0, %v2812
  %v2814 = vrcp.pop %v2740
  %v2815 = vmul.f32 %v2740, %v2814
  %v2816 = vsub.f32 1.0, %v2815
  %v2817 = vmul.f32 %v2814, %v2816
  %v2818 = vadd.f32 %v2814, %v2817
  %vm2819 = vweird.f32 %v2740
  %vm2820 = vweird.f32 %v2814
  %vm2821 = vmor %vm2819, %vm2820
  %v2822 = vsel %vm2821, %v2814, %v2818
  %v2823 = vand.u32 2147483647, %v2740
  %vm2824 = vcmp.eq.f32.partialorder %v2823, 8.507059e+37
  %v2825 = vand.u32 %v2740, 2147483648
  %v2826 = vor.u32 1.1754944e-38, %v2825
  %v2827 = vsel %vm2824, %v2826, %v2822
  %v2828 = vmul.f32 1.0, %v2827
  %v2829 = vrcp.pop %v2741
  %v2830 = vmul.f32 %v2741, %v2829
  %v2831 = vsub.f32 1.0, %v2830
  %v2832 = vmul.f32 %v2829, %v2831
  %v2833 = vadd.f32 %v2829, %v2832
  %vm2834 = vweird.f32 %v2741
  %vm2835 = vweird.f32 %v2829
  %vm2836 = vmor %vm2834, %vm2835
  %v2837 = vsel %vm2836, %v2829, %v2833
  %v2838 = vand.u32 2147483647, %v2741
  %vm2839 = vcmp.eq.f32.partialorder %v2838, 8.507059e+37
  %v2840 = vand.u32 %v2741, 2147483648
  %v2841 = vor.u32 1.1754944e-38, %v2840
  %v2842 = vsel %vm2839, %v2841, %v2837
  %v2843 = vmul.f32 1.0, %v2842
  %v2844 = vrcp.pop %v2742
  %v2845 = vmul.f32 %v2742, %v2844
  %v2846 = vsub.f32 1.0, %v2845
  %v2847 = vmul.f32 %v2844, %v2846
  %v2848 = vadd.f32 %v2844, %v2847
  %vm2849 = vweird.f32 %v2742
  %vm2850 = vweird.f32 %v2844
  %vm2851 = vmor %vm2849, %vm2850
  %v2852 = vsel %vm2851, %v2844, %v2848
  %v2853 = vand.u32 2147483647, %v2742
  %vm2854 = vcmp.eq.f32.partialorder %v2853, 8.507059e+37
  %v2855 = vand.u32 %v2742, 2147483648
  %v2856 = vor.u32 1.1754944e-38, %v2855
  %v2857 = vsel %vm2854, %v2856, %v2852
  %v2858 = vmul.f32 1.0, %v2857
  %v2859 = vrcp.pop %v2743
  %v2860 = vmul.f32 %v2743, %v2859
  %v2861 = vsub.f32 1.0, %v2860
  %v2862 = vmul.f32 %v2859, %v2861
  %v2863 = vadd.f32 %v2859, %v2862
  %vm2864 = vweird.f32 %v2743
  %vm2865 = vweird.f32 %v2859
  %vm2866 = vmor %vm2864, %vm2865
  %v2867 = vsel %vm2866, %v2859, %v2863
  %v2868 = vand.u32 2147483647, %v2743
  %vm2869 = vcmp.eq.f32.partialorder %v2868, 8.507059e+37
  %v2870 = vand.u32 %v2743, 2147483648
  %v2871 = vor.u32 1.1754944e-38, %v2870
  %v2872 = vsel %vm2869, %v2871, %v2867
  %v2873 = vmul.f32 1.0, %v2872
  %v2874 = vrcp.pop %v2744
  %v2875 = vmul.f32 %v2744, %v2874
  %v2876 = vsub.f32 1.0, %v2875
  %v2877 = vmul.f32 %v2874, %v2876
  %v2878 = vadd.f32 %v2874, %v2877
  %vm2879 = vweird.f32 %v2744
  %vm2880 = vweird.f32 %v2874
  %vm2881 = vmor %vm2879, %vm2880
  %v2882 = vsel %vm2881, %v2874, %v2878
  %v2883 = vand.u32 2147483647, %v2744
  %vm2884 = vcmp.eq.f32.partialorder %v2883, 8.507059e+37
  %v2885 = vand.u32 %v2744, 2147483648
  %v2886 = vor.u32 1.1754944e-38, %v2885
  %v2887 = vsel %vm2884, %v2886, %v2882
  %v2888 = vmul.f32 1.0, %v2887
  %v2889 = vrcp.pop %v2745
  %v2890 = vmul.f32 %v2745, %v2889
  %v2891 = vsub.f32 1.0, %v2890
  %v2892 = vmul.f32 %v2889, %v2891
  %v2893 = vadd.f32 %v2889, %v2892
  %vm2894 = vweird.f32 %v2745
  %vm2895 = vweird.f32 %v2889
  %vm2896 = vmor %vm2894, %vm2895
  %v2897 = vsel %vm2896, %v2889, %v2893
  %v2898 = vand.u32 2147483647, %v2745
  %vm2899 = vcmp.eq.f32.partialorder %v2898, 8.507059e+37
  %v2900 = vand.u32 %v2745, 2147483648
  %v2901 = vor.u32 1.1754944e-38, %v2900
  %v2902 = vsel %vm2899, %v2901, %v2897
  %v2903 = vmul.f32 1.0, %v2902
  %v2904 = vrcp.pop %v2746
  %v2905 = vmul.f32 %v2746, %v2904
  %v2906 = vsub.f32 1.0, %v2905
  %v2907 = vmul.f32 %v2904, %v2906
  %v2908 = vadd.f32 %v2904, %v2907
  %vm2909 = vweird.f32 %v2746
  %vm2910 = vweird.f32 %v2904
  %vm2911 = vmor %vm2909, %vm2910
  %v2912 = vsel %vm2911, %v2904, %v2908
  %v2913 = vand.u32 2147483647, %v2746
  %vm2914 = vcmp.eq.f32.partialorder %v2913, 8.507059e+37
  %v2915 = vand.u32 %v2746, 2147483648
  %v2916 = vor.u32 1.1754944e-38, %v2915
  %v2917 = vsel %vm2914, %v2916, %v2912
  %v2918 = vmul.f32 1.0, %v2917
  %v2919 = vrcp.pop %v2747
  %v2920 = vmul.f32 %v2747, %v2919
  %v2921 = vsub.f32 1.0, %v2920
  %v2922 = vmul.f32 %v2919, %v2921
  %v2923 = vadd.f32 %v2919, %v2922
  %vm2924 = vweird.f32 %v2747
  %vm2925 = vweird.f32 %v2919
  %vm2926 = vmor %vm2924, %vm2925
  %v2927 = vsel %vm2926, %v2919, %v2923
  %v2928 = vand.u32 2147483647, %v2747
  %vm2929 = vcmp.eq.f32.partialorder %v2928, 8.507059e+37
  %v2930 = vand.u32 %v2747, 2147483648
  %v2931 = vor.u32 1.1754944e-38, %v2930
  %v2932 = vsel %vm2929, %v2931, %v2927
  %v2933 = vmul.f32 1.0, %v2932
  %v2934 = vrcp.pop %v2748
  %v2935 = vmul.f32 %v2748, %v2934
  %v2936 = vsub.f32 1.0, %v2935
  %v2937 = vmul.f32 %v2934, %v2936
  %v2938 = vadd.f32 %v2934, %v2937
  %vm2939 = vweird.f32 %v2748
  %vm2940 = vweird.f32 %v2934
  %vm2941 = vmor %vm2939, %vm2940
  %v2942 = vsel %vm2941, %v2934, %v2938
  %v2943 = vand.u32 2147483647, %v2748
  %vm2944 = vcmp.eq.f32.partialorder %v2943, 8.507059e+37
  %v2945 = vand.u32 %v2748, 2147483648
  %v2946 = vor.u32 1.1754944e-38, %v2945
  %v2947 = vsel %vm2944, %v2946, %v2942
  %v2948 = vmul.f32 1.0, %v2947
  %v2949 = vrcp.pop %v2749
  %v2950 = vmul.f32 %v2749, %v2949
  %v2951 = vsub.f32 1.0, %v2950
  %v2952 = vmul.f32 %v2949, %v2951
  %v2953 = vadd.f32 %v2949, %v2952
  %vm2954 = vweird.f32 %v2749
  %vm2955 = vweird.f32 %v2949
  %vm2956 = vmor %vm2954, %vm2955
  %v2957 = vsel %vm2956, %v2949, %v2953
  %v2958 = vand.u32 2147483647, %v2749
  %vm2959 = vcmp.eq.f32.partialorder %v2958, 8.507059e+37
  %v2960 = vand.u32 %v2749, 2147483648
  %v2961 = vor.u32 1.1754944e-38, %v2960
  %v2962 = vsel %vm2959, %v2961, %v2957
  %v2963 = vmul.f32 1.0, %v2962
  %v2964 = vrcp.pop %v2750
  %v2965 = vmul.f32 %v2750, %v2964
  %v2966 = vsub.f32 1.0, %v2965
  %v2967 = vmul.f32 %v2964, %v2966
  %v2968 = vadd.f32 %v2964, %v2967
  %vm2969 = vweird.f32 %v2750
  %vm2970 = vweird.f32 %v2964
  %vm2971 = vmor %vm2969, %vm2970
  %v2972 = vsel %vm2971, %v2964, %v2968
  %v2973 = vand.u32 2147483647, %v2750
  %vm2974 = vcmp.eq.f32.partialorder %v2973, 8.507059e+37
  %v2975 = vand.u32 %v2750, 2147483648
  %v2976 = vor.u32 1.1754944e-38, %v2975
  %v2977 = vsel %vm2974, %v2976, %v2972
  %v2978 = vmul.f32 1.0, %v2977
  %v2979 = vrcp.pop %v2751
  %v2980 = vmul.f32 %v2751, %v2979
  %v2981 = vsub.f32 1.0, %v2980
  %v2982 = vmul.f32 %v2979, %v2981
  %v2983 = vadd.f32 %v2979, %v2982
  %vm2984 = vweird.f32 %v2751
  %vm2985 = vweird.f32 %v2979
  %vm2986 = vmor %vm2984, %vm2985
  %v2987 = vsel %vm2986, %v2979, %v2983
  %v2988 = vand.u32 2147483647, %v2751
  %vm2989 = vcmp.eq.f32.partialorder %v2988, 8.507059e+37
  %v2990 = vand.u32 %v2751, 2147483648
  %v2991 = vor.u32 1.1754944e-38, %v2990
  %v2992 = vsel %vm2989, %v2991, %v2987
  %v2993 = vmul.f32 1.0, %v2992
  %v2994 = vrcp.pop %v2752
  %v2995 = vmul.f32 %v2752, %v2994
  %v2996 = vsub.f32 1.0, %v2995
  %v2997 = vmul.f32 %v2994, %v2996
  %v2998 = vadd.f32 %v2994, %v2997
  %vm2999 = vweird.f32 %v2752
  %vm3000 = vweird.f32 %v2994
  %vm3001 = vmor %vm2999, %vm3000
  %v3002 = vsel %vm3001, %v2994, %v2998
  %v3003 = vand.u32 2147483647, %v2752
  %vm3004 = vcmp.eq.f32.partialorder %v3003, 8.507059e+37
  %v3005 = vand.u32 %v2752, 2147483648
  %v3006 = vor.u32 1.1754944e-38, %v3005
  %v3007 = vsel %vm3004, %v3006, %v3002
  %v3008 = vmul.f32 1.0, %v3007
  %v3009 = vrcp.pop %v2753
  %v3010 = vmul.f32 %v2753, %v3009
  %v3011 = vsub.f32 1.0, %v3010
  %v3012 = vmul.f32 %v3009, %v3011
  %v3013 = vadd.f32 %v3009, %v3012
  %vm3014 = vweird.f32 %v2753
  %vm3015 = vweird.f32 %v3009
  %vm3016 = vmor %vm3014, %vm3015
  %v3017 = vsel %vm3016, %v3009, %v3013
  %v3018 = vand.u32 2147483647, %v2753
  %vm3019 = vcmp.eq.f32.partialorder %v3018, 8.507059e+37
  %v3020 = vand.u32 %v2753, 2147483648
  %v3021 = vor.u32 1.1754944e-38, %v3020
  %v3022 = vsel %vm3019, %v3021, %v3017
  %v3023 = vmul.f32 1.0, %v3022
  %v3024 = vrcp.pop %v2754
  %v3025 = vmul.f32 %v2754, %v3024
  %v3026 = vsub.f32 1.0, %v3025
  %v3027 = vmul.f32 %v3024, %v3026
  %v3028 = vadd.f32 %v3024, %v3027
  %vm3029 = vweird.f32 %v2754
  %vm3030 = vweird.f32 %v3024
  %vm3031 = vmor %vm3029, %vm3030
  %v3032 = vsel %vm3031, %v3024, %v3028
  %v3033 = vand.u32 2147483647, %v2754
  %vm3034 = vcmp.eq.f32.partialorder %v3033, 8.507059e+37
  %v3035 = vand.u32 %v2754, 2147483648
  %v3036 = vor.u32 1.1754944e-38, %v3035
  %v3037 = vsel %vm3034, %v3036, %v3032
  %v3038 = vmul.f32 1.0, %v3037
  %v3039 = vrcp.pop %v2755
  %v3040 = vmul.f32 %v2755, %v3039
  %v3041 = vsub.f32 1.0, %v3040
  %v3042 = vmul.f32 %v3039, %v3041
  %v3043 = vadd.f32 %v3039, %v3042
  %vm3044 = vweird.f32 %v2755
  %vm3045 = vweird.f32 %v3039
  %vm3046 = vmor %vm3044, %vm3045
  %v3047 = vsel %vm3046, %v3039, %v3043
  %v3048 = vand.u32 2147483647, %v2755
  %vm3049 = vcmp.eq.f32.partialorder %v3048, 8.507059e+37
  %v3050 = vand.u32 %v2755, 2147483648
  %v3051 = vor.u32 1.1754944e-38, %v3050
  %v3052 = vsel %vm3049, %v3051, %v3047
  %v3053 = vmul.f32 1.0, %v3052
  %v3054 = vrcp.pop %v2756
  %v3055 = vmul.f32 %v2756, %v3054
  %v3056 = vsub.f32 1.0, %v3055
  %v3057 = vmul.f32 %v3054, %v3056
  %v3058 = vadd.f32 %v3054, %v3057
  %vm3059 = vweird.f32 %v2756
  %vm3060 = vweird.f32 %v3054
  %vm3061 = vmor %vm3059, %vm3060
  %v3062 = vsel %vm3061, %v3054, %v3058
  %v3063 = vand.u32 2147483647, %v2756
  %vm3064 = vcmp.eq.f32.partialorder %v3063, 8.507059e+37
  %v3065 = vand.u32 %v2756, 2147483648
  %v3066 = vor.u32 1.1754944e-38, %v3065
  %v3067 = vsel %vm3064, %v3066, %v3062
  %v3068 = vmul.f32 1.0, %v3067
  %v3069 = vrcp.pop %v2757
  %v3070 = vmul.f32 %v2757, %v3069
  %v3071 = vsub.f32 1.0, %v3070
  %v3072 = vmul.f32 %v3069, %v3071
  %v3073 = vadd.f32 %v3069, %v3072
  %vm3074 = vweird.f32 %v2757
  %vm3075 = vweird.f32 %v3069
  %vm3076 = vmor %vm3074, %vm3075
  %v3077 = vsel %vm3076, %v3069, %v3073
  %v3078 = vand.u32 2147483647, %v2757
  %vm3079 = vcmp.eq.f32.partialorder %v3078, 8.507059e+37
  %v3080 = vand.u32 %v2757, 2147483648
  %v3081 = vor.u32 1.1754944e-38, %v3080
  %v3082 = vsel %vm3079, %v3081, %v3077
  %v3083 = vmul.f32 1.0, %v3082
  %v3084 = vrcp.pop %v2758
  %v3085 = vmul.f32 %v2758, %v3084
  %v3086 = vsub.f32 1.0, %v3085
  %v3087 = vmul.f32 %v3084, %v3086
  %v3088 = vadd.f32 %v3084, %v3087
  %vm3089 = vweird.f32 %v2758
  %vm3090 = vweird.f32 %v3084
  %vm3091 = vmor %vm3089, %vm3090
  %v3092 = vsel %vm3091, %v3084, %v3088
  %v3093 = vand.u32 2147483647, %v2758
  %vm3094 = vcmp.eq.f32.partialorder %v3093, 8.507059e+37
  %v3095 = vand.u32 %v2758, 2147483648
  %v3096 = vor.u32 1.1754944e-38, %v3095
  %v3097 = vsel %vm3094, %v3096, %v3092
  %v3098 = vmul.f32 1.0, %v3097
  %v3099 = vrcp.pop %v2759
  %v3100 = vmul.f32 %v2759, %v3099
  %v3101 = vsub.f32 1.0, %v3100
  %v3102 = vmul.f32 %v3099, %v3101
  %v3103 = vadd.f32 %v3099, %v3102
  %vm3104 = vweird.f32 %v2759
  %vm3105 = vweird.f32 %v3099
  %vm3106 = vmor %vm3104, %vm3105
  %v3107 = vsel %vm3106, %v3099, %v3103
  %v3108 = vand.u32 2147483647, %v2759
  %vm3109 = vcmp.eq.f32.partialorder %v3108, 8.507059e+37
  %v3110 = vand.u32 %v2759, 2147483648
  %v3111 = vor.u32 1.1754944e-38, %v3110
  %v3112 = vsel %vm3109, %v3111, %v3107
  %v3113 = vmul.f32 1.0, %v3112
  %v3114 = vrcp.pop %v2760
  %v3115 = vmul.f32 %v2760, %v3114
  %v3116 = vsub.f32 1.0, %v3115
  %v3117 = vmul.f32 %v3114, %v3116
  %v3118 = vadd.f32 %v3114, %v3117
  %vm3119 = vweird.f32 %v2760
  %vm3120 = vweird.f32 %v3114
  %vm3121 = vmor %vm3119, %vm3120
  %v3122 = vsel %vm3121, %v3114, %v3118
  %v3123 = vand.u32 2147483647, %v2760
  %vm3124 = vcmp.eq.f32.partialorder %v3123, 8.507059e+37
  %v3125 = vand.u32 %v2760, 2147483648
  %v3126 = vor.u32 1.1754944e-38, %v3125
  %v3127 = vsel %vm3124, %v3126, %v3122
  %v3128 = vmul.f32 1.0, %v3127
  %v3129 = vrcp.pop %v2761
  %v3130 = vmul.f32 %v2761, %v3129
  %v3131 = vsub.f32 1.0, %v3130
  %v3132 = vmul.f32 %v3129, %v3131
  %v3133 = vadd.f32 %v3129, %v3132
  %vm3134 = vweird.f32 %v2761
  %vm3135 = vweird.f32 %v3129
  %vm3136 = vmor %vm3134, %vm3135
  %v3137 = vsel %vm3136, %v3129, %v3133
  %v3138 = vand.u32 2147483647, %v2761
  %vm3139 = vcmp.eq.f32.partialorder %v3138, 8.507059e+37
  %v3140 = vand.u32 %v2761, 2147483648
  %v3141 = vor.u32 1.1754944e-38, %v3140
  %v3142 = vsel %vm3139, %v3141, %v3137
  %v3143 = vmul.f32 1.0, %v3142
  %v3144 = vrcp.pop %v2762
  %v3145 = vmul.f32 %v2762, %v3144
  %v3146 = vsub.f32 1.0, %v3145
  %v3147 = vmul.f32 %v3144, %v3146
  %v3148 = vadd.f32 %v3144, %v3147
  %vm3149 = vweird.f32 %v2762
  %vm3150 = vweird.f32 %v3144
  %vm3151 = vmor %vm3149, %vm3150
  %v3152 = vsel %vm3151, %v3144, %v3148
  %v3153 = vand.u32 2147483647, %v2762
  %vm3154 = vcmp.eq.f32.partialorder %v3153, 8.507059e+37
  %v3155 = vand.u32 %v2762, 2147483648
  %v3156 = vor.u32 1.1754944e-38, %v3155
  %v3157 = vsel %vm3154, %v3156, %v3152
  %v3158 = vmul.f32 1.0, %v3157
  %v3159 = vrcp.pop %v2763
  %v3160 = vmul.f32 %v2763, %v3159
  %v3161 = vsub.f32 1.0, %v3160
  %v3162 = vmul.f32 %v3159, %v3161
  %v3163 = vadd.f32 %v3159, %v3162
  %vm3164 = vweird.f32 %v2763
  %vm3165 = vweird.f32 %v3159
  %vm3166 = vmor %vm3164, %vm3165
  %v3167 = vsel %vm3166, %v3159, %v3163
  %v3168 = vand.u32 2147483647, %v2763
  %vm3169 = vcmp.eq.f32.partialorder %v3168, 8.507059e+37
  %v3170 = vand.u32 %v2763, 2147483648
  %v3171 = vor.u32 1.1754944e-38, %v3170
  %v3172 = vsel %vm3169, %v3171, %v3167
  %v3173 = vmul.f32 1.0, %v3172
  %v3174 = vrcp.pop %v2764
  %v3175 = vmul.f32 %v2764, %v3174
  %v3176 = vsub.f32 1.0, %v3175
  %v3177 = vmul.f32 %v3174, %v3176
  %v3178 = vadd.f32 %v3174, %v3177
  %vm3179 = vweird.f32 %v2764
  %vm3180 = vweird.f32 %v3174
  %vm3181 = vmor %vm3179, %vm3180
  %v3182 = vsel %vm3181, %v3174, %v3178
  %v3183 = vand.u32 2147483647, %v2764
  %vm3184 = vcmp.eq.f32.partialorder %v3183, 8.507059e+37
  %v3185 = vand.u32 %v2764, 2147483648
  %v3186 = vor.u32 1.1754944e-38, %v3185
  %v3187 = vsel %vm3184, %v3186, %v3182
  %v3188 = vmul.f32 1.0, %v3187
  %v3189 = vrcp.pop %v2765
  %v3190 = vmul.f32 %v2765, %v3189
  %v3191 = vsub.f32 1.0, %v3190
  %v3192 = vmul.f32 %v3189, %v3191
  %v3193 = vadd.f32 %v3189, %v3192
  %vm3194 = vweird.f32 %v2765
  %vm3195 = vweird.f32 %v3189
  %vm3196 = vmor %vm3194, %vm3195
  %v3197 = vsel %vm3196, %v3189, %v3193
  %v3198 = vand.u32 2147483647, %v2765
  %vm3199 = vcmp.eq.f32.partialorder %v3198, 8.507059e+37
  %v3200 = vand.u32 %v2765, 2147483648
  %v3201 = vor.u32 1.1754944e-38, %v3200
  %v3202 = vsel %vm3199, %v3201, %v3197
  %v3203 = vmul.f32 1.0, %v3202
  %v3204 = vrcp.pop %v2766
  %v3205 = vmul.f32 %v2766, %v3204
  %v3206 = vsub.f32 1.0, %v3205
  %v3207 = vmul.f32 %v3204, %v3206
  %v3208 = vadd.f32 %v3204, %v3207
  %vm3209 = vweird.f32 %v2766
  %vm3210 = vweird.f32 %v3204
  %vm3211 = vmor %vm3209, %vm3210
  %v3212 = vsel %vm3211, %v3204, %v3208
  %v3213 = vand.u32 2147483647, %v2766
  %vm3214 = vcmp.eq.f32.partialorder %v3213, 8.507059e+37
  %v3215 = vand.u32 %v2766, 2147483648
  %v3216 = vor.u32 1.1754944e-38, %v3215
  %v3217 = vsel %vm3214, %v3216, %v3212
  %v3218 = vmul.f32 1.0, %v3217
  %v3219 = vrcp.pop %v2767
  %v3220 = vmul.f32 %v2767, %v3219
  %v3221 = vsub.f32 1.0, %v3220
  %v3222 = vmul.f32 %v3219, %v3221
  %v3223 = vadd.f32 %v3219, %v3222
  %vm3224 = vweird.f32 %v2767
  %vm3225 = vweird.f32 %v3219
  %vm3226 = vmor %vm3224, %vm3225
  %v3227 = vsel %vm3226, %v3219, %v3223
  %v3228 = vand.u32 2147483647, %v2767
  %vm3229 = vcmp.eq.f32.partialorder %v3228, 8.507059e+37
  %v3230 = vand.u32 %v2767, 2147483648
  %v3231 = vor.u32 1.1754944e-38, %v3230
  %v3232 = vsel %vm3229, %v3231, %v3227
  %v3233 = vmul.f32 1.0, %v3232
  %v3234 = vrcp.pop %v2768
  %v3235 = vmul.f32 %v2768, %v3234
  %v3236 = vsub.f32 1.0, %v3235
  %v3237 = vmul.f32 %v3234, %v3236
  %v3238 = vadd.f32 %v3234, %v3237
  %vm3239 = vweird.f32 %v2768
  %vm3240 = vweird.f32 %v3234
  %vm3241 = vmor %vm3239, %vm3240
  %v3242 = vsel %vm3241, %v3234, %v3238
  %v3243 = vand.u32 2147483647, %v2768
  %vm3244 = vcmp.eq.f32.partialorder %v3243, 8.507059e+37
  %v3245 = vand.u32 %v2768, 2147483648
  %v3246 = vor.u32 1.1754944e-38, %v3245
  %v3247 = vsel %vm3244, %v3246, %v3242
  %v3248 = vmul.f32 1.0, %v3247
  %vm3249 = vcmask 7168
  %3250 = vst.msk [vmem:[%s3] sm:$0xff] %vm3249, %v2783
  %3251 = vst.msk [vmem:[%s3 + $0x8] sm:$0xff] %vm3249, %v2798
  %3252 = vst.msk [vmem:[%s3 + $0x10] sm:$0xff] %vm3249, %v2813
  %3253 = vst.msk [vmem:[%s3 + $0x18] sm:$0xff] %vm3249, %v2828
  %3254 = vst.msk [vmem:[%s3 + $0x20] sm:$0xff] %vm3249, %v2843
  %3255 = vst.msk [vmem:[%s3 + $0x28] sm:$0xff] %vm3249, %v2858
  %3256 = vst.msk [vmem:[%s3 + $0x30] sm:$0xff] %vm3249, %v2873
  %3257 = vst.msk [vmem:[%s3 + $0x38] sm:$0xff] %vm3249, %v2888
  %3258 = vst.msk [vmem:[%s3 + $0x40] sm:$0xff] %vm3249, %v2903
  %3259 = vst.msk [vmem:[%s3 + $0x48] sm:$0xff] %vm3249, %v2918
  %3260 = vst.msk [vmem:[%s3 + $0x50] sm:$0xff] %vm3249, %v2933
  %3261 = vst.msk [vmem:[%s3 + $0x58] sm:$0xff] %vm3249, %v2948
  %3262 = vst.msk [vmem:[%s3 + $0x60] sm:$0xff] %vm3249, %v2963
  %3263 = vst.msk [vmem:[%s3 + $0x68] sm:$0xff] %vm3249, %v2978
  %3264 = vst.msk [vmem:[%s3 + $0x70] sm:$0xff] %vm3249, %v2993
  %3265 = vst.msk [vmem:[%s3 + $0x78] sm:$0xff] %vm3249, %v3008
  %3266 = vst.msk [vmem:[%s3 + $0x80] sm:$0xff] %vm3249, %v3023
  %3267 = vst.msk [vmem:[%s3 + $0x88] sm:$0xff] %vm3249, %v3038
  %3268 = vst.msk [vmem:[%s3 + $0x90] sm:$0xff] %vm3249, %v3053
  %3269 = vst.msk [vmem:[%s3 + $0x98] sm:$0xff] %vm3249, %v3068
  %3270 = vst.msk [vmem:[%s3 + $0xa0] sm:$0xff] %vm3249, %v3083
  %3271 = vst.msk [vmem:[%s3 + $0xa8] sm:$0xff] %vm3249, %v3098
  %3272 = vst.msk [vmem:[%s3 + $0xb0] sm:$0xff] %vm3249, %v3113
  %3273 = vst.msk [vmem:[%s3 + $0xb8] sm:$0xff] %vm3249, %v3128
  %3274 = vst.msk [vmem:[%s3 + $0xc0] sm:$0xff] %vm3249, %v3143
  %3275 = vst.msk [vmem:[%s3 + $0xc8] sm:$0xff] %vm3249, %v3158
  %3276 = vst.msk [vmem:[%s3 + $0xd0] sm:$0xff] %vm3249, %v3173
  %3277 = vst.msk [vmem:[%s3 + $0xd8] sm:$0xff] %vm3249, %v3188
  %3278 = vst.msk [vmem:[%s3 + $0xe0] sm:$0xff] %vm3249, %v3203
  %3279 = vst.msk [vmem:[%s3 + $0xe8] sm:$0xff] %vm3249, %v3218
  %3280 = vst.msk [vmem:[%s3 + $0xf0] sm:$0xff] %vm3249, %v3233
  %3281 = vst.msk [vmem:[%s3 + $0xf8] sm:$0xff] %vm3249, %v3248
  // Predicated region
  $region14: #{_forward_impl.1} parent=0 // pred_check
    _
  $region15: #{_forward_impl.1} parent=0 // pred_check_branch
    %3283 = sbr.rel (0) target = $region17
  $region16: #{_forward_impl.1} parent=0 // pred_region
    _
  $region17: #{_forward_impl.1} parent=0 // pred_fallthru
    _
  // Predicated region
  $region18: #{_forward_impl.1} parent=0 // pred_check
    _
  $region19: #{_forward_impl.1} parent=0 // pred_check_branch
    %3285 = sbr.rel (0) target = $region21
  $region20: #{_forward_impl.1} parent=0 // pred_region
    _
  $region21: #{_forward_impl.1} parent=0 // pred_fallthru
    _

</llo_original>
